<compile_context>
chip_gen: v7x
topology: tpu7x:2x2x1
jax: 0.10.0
libtpu: 0.0.40
codegen_flags: <defaults>
</compile_context>

<pallas_src>
import jax
import jax.numpy as jnp
from jax.experimental import pallas as pl
from jax.experimental.pallas import tpu as pltpu

D_IN = 768      # BERT hidden size (non-BIG_GPU branch)
D_HID = 256     # self.linear output width
HP_HID = 128    # HotPoint.linear0 output width


def _dot_t(a, b):
    """a [M, K] x b [N, K] -> [M, N]  (a @ b.T, f32 accumulation on the MXU)."""
    return jax.lax.dot_general(
        a, b, (((1,), (1,)), ((), ())), preferred_element_type=jnp.float32)


def _sigmoid(x):
    # sigmoid(x) == 0.5*tanh(0.5*x) + 0.5 : one EUP transcendental per element
    # instead of exp + divide; dominant on the [TL, L] hot_points block.
    return 0.5 * jnp.tanh(0.5 * x) + 0.5


def _fused_kernel(text_ref, word_ref,
                  wcat_ref, bcat_ref,   # [768, 384], [1, 384]       (linear | hp.linear0)
                  w0s_ref, b0s_ref,     # [768, 128+Sn], [1, 128+Sn] (hp.linear0 | linear_schema)
                  w1t_ref, b1t_ref,     # [S2, 256], [S2, 1]         (linear_1, transposed)
                  wwt_ref,              # [1, 768]                   (linear_word, transposed)
                  wa_ref, wbt_ref,      # [128, 1], [1, 128]         (hp.linear halves)
                  scal_ref,             # SMEM (2,): [b_word, b_hotpoint]
                  logits_ref, word_out_ref, schema_ref, hot_ref):
    t = pl.program_id(1)
    tl = hot_ref.shape[1]                       # static row-tile size
    row0 = pl.multiple_of(t * tl, tl)
    bf16 = jnp.bfloat16

    # ---- full-L pass: HotPoint.linear0 with linear_schema folded into the same
    # MXU weight.  Recomputed at every row tile so the tile axis carries no
    # cross-step state and both grid axes stay megacore-"parallel".
    te = jnp.dot(text_ref[0].astype(bf16), w0s_ref[...],
                 preferred_element_type=jnp.float32) + b0s_ref[...]        # [L, 128+Sn]
    t_full = jnp.maximum(te[:, :HP_HID], 0.0).astype(bf16)                 # [L, 128]
    # schema_pred = sigmoid(linear_schema(text[:, 0, :]))  (no relu on these
    # columns).  Written identically at every tile -> revisited output block is
    # race-free under the parallel tile axis.
    schema_ref[0] = _sigmoid(te[0:1, HP_HID:])

    # b_row[j] = relu(hp.linear0(text_j)) . wb  -> [1, L], lane-dense.
    b_row = _dot_t(wbt_ref[...], t_full)

    # ---- row-tile pass: [self.linear | hp.linear0] on this tile's rows in one
    # MXU sweep over K=768.
    tv_tile = text_ref[0, pl.ds(row0, tl), :].astype(bf16)                 # [TL, 768]
    hcat = jnp.dot(tv_tile, wcat_ref[...],
                   preferred_element_type=jnp.float32) + bcat_ref[...]     # [TL, 384]
    h = jnp.maximum(hcat[:, :D_HID], 0.0).astype(bf16)                     # [TL, 256]
    t_tile = jnp.maximum(hcat[:, D_HID:], 0.0).astype(bf16)                # [TL, 128]

    # logits (already permuted): [S2, TL] column tile, lane-dense along L.
    logits_ref[0] = _sigmoid(_dot_t(w1t_ref[...], h) + b1t_ref[...])

    # word_pred for this tile's rows, stored as a lane-dense [1, TL] row.
    wp = _dot_t(wwt_ref[...], word_ref[0].astype(bf16)) + scal_ref[0]
    word_out_ref[0] = _sigmoid(wp)

    # hot_points[i, j] = sigmoid(t_i.wa + t_j.wb + b) for the tile's rows i vs.
    # all columns j -- no [L, L, 256] repeat/concat, no transposes.
    a_col = jnp.dot(t_tile, wa_ref[...], preferred_element_type=jnp.float32)  # [TL, 1]
    hot = _sigmoid(a_col + b_row + scal_ref[1])                               # [TL, L]
    hot_ref[0] = hot.astype(hot_ref.dtype)


def _pick_row_tile(L, target=256):
    """Largest row tile <= target that divides L and keeps (8,128)-legal blocks."""
    if L <= target:
        return L
    for cand in range((target // 128) * 128, 0, -128):
        if L % cand == 0:
            return cand
    return L   # fall back to a single tile (block == full dims is always legal)


def baidu_baseline_forward(text_vec, word_vec, mask, params, schema_num,
                           *, row_tile=256, hot_dtype=jnp.float32):
    """Returns [logits, word_pred, hot_points, schema_pred] like the torch module.
    `mask` is accepted for signature parity (HotPoint ignores it in forward)."""
    del mask
    B, L, D = text_vec.shape
    S2 = 2 * schema_num + 1
    (wl, bl, w1, b1, ww, bw, ws, bs, w0, b0, wa, wb, bhp) = params

    bf16 = jnp.bfloat16
    f32 = jnp.float32

    TL = _pick_row_tile(L, row_tile)
    T = L // TL

    # One-time weight packing (tiny vs. the activation traffic).  Activations
    # are passed through untouched -- the bf16 cast happens inside the kernel.
    wcat = jnp.concatenate([wl, w0], axis=1).astype(bf16)            # [768, 384]
    bcat = jnp.concatenate([bl, b0], axis=1).astype(f32)             # [1, 384]
    w0s = jnp.concatenate([w0, ws], axis=1).astype(bf16)             # [768, 128+Sn]
    b0s = jnp.concatenate([b0, bs], axis=1).astype(f32)              # [1, 128+Sn]
    w1t = w1.T.astype(bf16)                                          # [S2, 256]
    b1t = b1.T.astype(f32)                                           # [S2, 1]
    wwt = ww.T.astype(bf16)                                          # [1, 768]
    wa_b = wa.astype(bf16)                                           # [128, 1]
    wbt = wb.T.astype(bf16)                                          # [1, 128]
    scal = jnp.stack([bw.reshape(()), bhp.reshape(())]).astype(f32)  # (2,)

    def wspec(a):   # whole-array weight block, constant across the grid
        return pl.BlockSpec(a.shape, lambda b, t: (0, 0))

    act_bytes = int(text_vec.dtype.itemsize)
    hot_bytes = int(jnp.dtype(hot_dtype).itemsize)
    weight_bytes = int(sum(int(x.size) * int(x.dtype.itemsize)
                           for x in (wcat, bcat, w0s, b0s, w1t, b1t, wwt, wa_b, wbt)))
    cost = pl.CostEstimate(
        flops=int(2 * B * T * (L * D * (HP_HID + schema_num)      # full-L w0|ws pass
                               + TL * D * (D_HID + HP_HID)        # tile wl|w0 pass
                               + TL * D_HID * S2                  # logits head
                               + TL * D                           # word head
                               + L * HP_HID                       # b_row
                               + TL * HP_HID)),                   # a_col
        transcendentals=int(B * T * (TL * L + TL * S2 + TL + schema_num)),
        bytes_accessed=int(2 * B * L * D * act_bytes + weight_bytes
                           + B * L * L * hot_bytes
                           + B * (S2 * L + L + schema_num) * 4),
    )

    logits, word_pred, schema_pred, hot_points = pl.pallas_call(
        _fused_kernel,
        out_shape=(
            jax.ShapeDtypeStruct((B, S2, L), f32),
            jax.ShapeDtypeStruct((B, 1, L), f32),
            jax.ShapeDtypeStruct((B, 1, schema_num), f32),
            jax.ShapeDtypeStruct((B, L, L), hot_dtype),
        ),
        grid_spec=pl.GridSpec(
            grid=(B, T),
            in_specs=[
                pl.BlockSpec((1, L, D), lambda b, t: (b, 0, 0)),    # text: resident per b
                pl.BlockSpec((1, TL, D), lambda b, t: (b, t, 0)),   # word: row-tiled
                wspec(wcat), wspec(bcat),
                wspec(w0s), wspec(b0s),
                wspec(w1t), wspec(b1t),
                wspec(wwt),
                wspec(wa_b), wspec(wbt),
                pl.BlockSpec(memory_space=pltpu.MemorySpace.SMEM),
            ],
            out_specs=[
                pl.BlockSpec((1, S2, TL), lambda b, t: (b, 0, t)),
                pl.BlockSpec((1, 1, TL), lambda b, t: (b, 0, t)),
                pl.BlockSpec((1, 1, schema_num), lambda b, t: (b, 0, 0)),
                pl.BlockSpec((1, TL, L), lambda b, t: (b, t, 0)),
            ],
        ),
        compiler_params=pltpu.CompilerParams(
            dimension_semantics=("parallel", "parallel")),
        cost_estimate=cost,
    )(text_vec, word_vec, wcat, bcat, w0s, b0s, w1t, b1t, wwt, wa_b, wbt, scal)

    return [logits, word_pred[:, 0, :], hot_points, schema_pred[:, 0, :]]


def ref_forward(text_vec, word_vec, params, schema_num):
    """Pure-JAX f32 reference mirroring the PyTorch forward literally."""
    (wl, bl, w1, b1, ww, bw, ws, bs, w0, b0, wa, wb, bhp) = params
    h = jnp.maximum(text_vec @ wl + bl, 0.0)
    logits = jax.nn.sigmoid(h @ w1 + b1).transpose(0, 2, 1)
    word_pred = jax.nn.sigmoid(word_vec @ ww + bw)[..., 0]
    t = jnp.maximum(text_vec @ w0 + b0, 0.0)
    L = t.shape[1]
    r1 = jnp.repeat(t[:, :, None, :], L, axis=2)
    r2 = jnp.repeat(t[:, None, :, :], L, axis=1)
    rep = jnp.concatenate([r1, r2], axis=-1)
    whp = jnp.concatenate([wa, wb], axis=0)
    hot = jax.nn.sigmoid((rep @ whp)[..., 0] + bhp[0, 0])
    schema = jax.nn.sigmoid(text_vec[:, 0, :] @ ws + bs[0])
    return [logits, word_pred, hot, schema]


def init_params(key, schema_num):
    S2 = schema_num * 2 + 1
    ks = jax.random.split(key, 13)
    g = lambda k, shape, scale=0.02: (scale * jax.random.normal(k, shape)).astype(jnp.float32)
    wl = g(ks[0], (D_IN, D_HID));   bl = g(ks[1], (1, D_HID))
    w1 = g(ks[2], (D_HID, S2));     b1 = g(ks[3], (1, S2))
    ww = g(ks[4], (D_IN, 1));       bw = g(ks[5], (1, 1))
    ws = g(ks[6], (D_IN, schema_num)); bs = g(ks[7], (1, schema_num))
    w0 = g(ks[8], (D_IN, HP_HID));  b0 = g(ks[9], (1, HP_HID))
    wa = g(ks[10], (HP_HID, 1))     # first half of HotPoint.linear weight (256 -> 1)
    wb = g(ks[11], (HP_HID, 1))     # second half
    bhp = g(ks[12], (1, 1))
    return (wl, bl, w1, b1, ww, bw, ws, bs, w0, b0, wa, wb, bhp)


def _check(outs, refs):
    # bf16 matmul operands with f32 accumulation vs. an all-f32 reference:
    # sigmoid outputs agree to ~1e-3; use a comfortable mixed-precision bound.
    for o, r in zip(outs, refs):
        assert o.shape == r.shape, (o.shape, r.shape)
        assert jnp.allclose(o, r, atol=1.5e-2, rtol=1.5e-2), float(jnp.max(jnp.abs(o - r)))


if __name__ == "__main__":
    key = jax.random.PRNGKey(0)

    # --- small shape (single row tile per batch element) ---
    B, L, schema_num = 2, 8, 4
    k_text, k_word, k_params = jax.random.split(key, 3)
    text_vec = jax.random.normal(k_text, (B, L, D_IN), dtype=jnp.float32)
    word_vec = jax.random.normal(k_word, (B, L, D_IN), dtype=jnp.float32)
    mask = jnp.ones((B, L), dtype=jnp.float32)
    params = init_params(k_params, schema_num)

    outs = baidu_baseline_forward(text_vec, word_vec, mask, params, schema_num)
    outs = jax.block_until_ready(outs)
    _check(outs, ref_forward(text_vec, word_vec, params, schema_num))

    # --- exercise the row-tiled (multi-step, 2-D parallel grid) path ---
    B2, L2, sn2 = 1, 256, 3
    k_t2, k_w2, k_p2 = jax.random.split(jax.random.PRNGKey(1), 3)
    text2 = jax.random.normal(k_t2, (B2, L2, D_IN), dtype=jnp.float32)
    word2 = jax.random.normal(k_w2, (B2, L2, D_IN), dtype=jnp.float32)
    mask2 = jnp.ones((B2, L2), dtype=jnp.float32)
    params2 = init_params(k_p2, sn2)

    outs2 = baidu_baseline_forward(text2, word2, mask2, params2, sn2, row_tile=128)
    outs2 = jax.block_until_ready(outs2)
    _check(outs2, ref_forward(text2, word2, params2, sn2))

    print("KERNEL_OK")
</pallas_src>

<mosaic_0001>
module attributes {stable_mosaic.version = 11 : i64} {
  func.func @_fused_kernel(%arg0: i32, %arg1: i32, %arg2: memref<1x8x768xf32, #tpu.memory_space<vmem>>, %arg3: memref<1x8x768xf32, #tpu.memory_space<vmem>>, %arg4: memref<768x384xbf16, #tpu.memory_space<vmem>>, %arg5: memref<1x384xf32, #tpu.memory_space<vmem>>, %arg6: memref<768x132xbf16, #tpu.memory_space<vmem>>, %arg7: memref<1x132xf32, #tpu.memory_space<vmem>>, %arg8: memref<9x256xbf16, #tpu.memory_space<vmem>>, %arg9: memref<9x1xf32, #tpu.memory_space<vmem>>, %arg10: memref<1x768xbf16, #tpu.memory_space<vmem>>, %arg11: memref<128x1xbf16, #tpu.memory_space<vmem>>, %arg12: memref<1x128xbf16, #tpu.memory_space<vmem>>, %arg13: memref<2xf32, #tpu.memory_space<smem>>, %arg14: memref<1x9x8xf32, #tpu.memory_space<vmem>>, %arg15: memref<1x1x8xf32, #tpu.memory_space<vmem>>, %arg16: memref<1x1x4xf32, #tpu.memory_space<vmem>>, %arg17: memref<1x8x8xf32, #tpu.memory_space<vmem>>) attributes {dimension_semantics = [#tpu.dimension_semantics<parallel>, #tpu.dimension_semantics<parallel>], iteration_bounds = array<i64: 2, 1>, scalar_prefetch = 0 : i64, scratch_operands = 0 : i64, tpu.core_type = #tpu.core_type<tc>, window_params = [{transform_indices = @transform_0, window_bounds = array<i64: 1, 8, 768>}, {transform_indices = @transform_1, window_bounds = array<i64: 1, 8, 768>}, {pipeline_mode = #tpu.pipeline_mode<synchronous>, transform_indices = @transform_2, window_bounds = array<i64: 768, 384>}, {pipeline_mode = #tpu.pipeline_mode<synchronous>, transform_indices = @transform_3, window_bounds = array<i64: 1, 384>}, {pipeline_mode = #tpu.pipeline_mode<synchronous>, transform_indices = @transform_4, window_bounds = array<i64: 768, 132>}, {pipeline_mode = #tpu.pipeline_mode<synchronous>, transform_indices = @transform_5, window_bounds = array<i64: 1, 132>}, {pipeline_mode = #tpu.pipeline_mode<synchronous>, transform_indices = @transform_6, window_bounds = array<i64: 9, 256>}, {pipeline_mode = #tpu.pipeline_mode<synchronous>, transform_indices = @transform_7, window_bounds = array<i64: 9, 1>}, {pipeline_mode = #tpu.pipeline_mode<synchronous>, transform_indices = @transform_8, window_bounds = array<i64: 1, 768>}, {pipeline_mode = #tpu.pipeline_mode<synchronous>, transform_indices = @transform_9, window_bounds = array<i64: 128, 1>}, {pipeline_mode = #tpu.pipeline_mode<synchronous>, transform_indices = @transform_10, window_bounds = array<i64: 1, 128>}, {transform_indices = @transform_11, window_bounds = array<i64: 2>}, {transform_indices = @transform_12, window_bounds = array<i64: 1, 9, 8>}, {transform_indices = @transform_13, window_bounds = array<i64: 1, 1, 8>}, {transform_indices = @transform_14, window_bounds = array<i64: 1, 1, 4>}, {transform_indices = @transform_15, window_bounds = array<i64: 1, 8, 8>}]} {
    %c8_i32 = arith.constant 8 : i32
    %0 = arith.muli %arg1, %c8_i32 : i32
    %1 = tpu.assume_multiple %0, 8 : i32
    %c0 = arith.constant 0 : index
    %c0_0 = arith.constant 0 : index
    %c0_1 = arith.constant 0 : index
    %2 = vector.load %arg2[%c0, %c0_0, %c0_1] : memref<1x8x768xf32, #tpu.memory_space<vmem>>, vector<1x8x768xf32>
    %3 = vector.shape_cast %2 : vector<1x8x768xf32> to vector<8x768xf32>
    %4 = arith.truncf %3 : vector<8x768xf32> to vector<8x768xbf16>
    %c0_2 = arith.constant 0 : index
    %c0_3 = arith.constant 0 : index
    %5 = vector.load %arg6[%c0_2, %c0_3] : memref<768x132xbf16, #tpu.memory_space<vmem>>, vector<768x132xbf16>
    %cst = arith.constant dense<0.000000e+00> : vector<8x132xf32>
    %6 = tpu.matmul %4, %5, %cst {dimension_numbers = #tpu.dot_dimension_numbers<[1], [0], [0], [1], [0, 0, 1, 1], [], []>} : vector<8x768xbf16>, vector<768x132xbf16>, vector<8x132xf32> -> vector<8x132xf32>
    %c0_4 = arith.constant 0 : index
    %c0_5 = arith.constant 0 : index
    %7 = vector.load %arg7[%c0_4, %c0_5] : memref<1x132xf32, #tpu.memory_space<vmem>>, vector<1x132xf32>
    %8 = vector.broadcast %7 : vector<1x132xf32> to vector<8x132xf32>
    %9 = arith.addf %6, %8 : vector<8x132xf32>
    %10 = vector.extract_strided_slice %9 {offsets = [0, 0], sizes = [8, 128], strides = [1, 1]} : vector<8x132xf32> to vector<8x128xf32>
    %cst_6 = arith.constant 0.000000e+00 : f32
    %11 = vector.broadcast %cst_6 : f32 to vector<8x128xf32>
    %12 = arith.maximumf %10, %11 : vector<8x128xf32>
    %13 = arith.truncf %12 : vector<8x128xf32> to vector<8x128xbf16>
    %14 = vector.extract_strided_slice %9 {offsets = [0, 128], sizes = [1, 4], strides = [1, 1]} : vector<8x132xf32> to vector<1x4xf32>
    %cst_7 = arith.constant 5.000000e-01 : f32
    %15 = vector.broadcast %cst_7 : f32 to vector<1x4xf32>
    %16 = arith.mulf %15, %14 : vector<1x4xf32>
    %17 = math.tanh %16 : vector<1x4xf32>
    %cst_8 = arith.constant 5.000000e-01 : f32
    %18 = vector.broadcast %cst_8 : f32 to vector<1x4xf32>
    %19 = arith.mulf %18, %17 : vector<1x4xf32>
    %cst_9 = arith.constant 5.000000e-01 : f32
    %20 = vector.broadcast %cst_9 : f32 to vector<1x4xf32>
    %21 = arith.addf %19, %20 : vector<1x4xf32>
    %c0_10 = arith.constant 0 : index
    %c0_11 = arith.constant 0 : index
    %c0_12 = arith.constant 0 : index
    %22 = vector.load %arg16[%c0_10, %c0_11, %c0_12] : memref<1x1x4xf32, #tpu.memory_space<vmem>>, vector<1x1x4xf32>
    %23 = vector.shape_cast %22 : vector<1x1x4xf32> to vector<1x4xf32>
    %24 = vector.shape_cast %21 : vector<1x4xf32> to vector<1x1x4xf32>
    tpu.vector_store %arg16[%c0_10, %c0_11, %c0_12], %24 {strides = array<i32>} : memref<1x1x4xf32, #tpu.memory_space<vmem>>, vector<1x1x4xf32>,
    %c0_13 = arith.constant 0 : index
    %c0_14 = arith.constant 0 : index
    %25 = vector.load %arg12[%c0_13, %c0_14] : memref<1x128xbf16, #tpu.memory_space<vmem>>, vector<1x128xbf16>
    %cst_15 = arith.constant dense<0.000000e+00> : vector<1x8xf32>
    %26 = tpu.matmul %25, %13, %cst_15 {dimension_numbers = #tpu.dot_dimension_numbers<[1], [1], [0], [0], [0, 0, 1, 0], [], []>} : vector<1x128xbf16>, vector<8x128xbf16>, vector<1x8xf32> -> vector<1x8xf32>
    %c0_16 = arith.constant 0 : index
    %27 = arith.index_cast %1 : i32 to index
    %c0_17 = arith.constant 0 : index
    %28 = vector.load %arg2[%c0_16, %27, %c0_17] : memref<1x8x768xf32, #tpu.memory_space<vmem>>, vector<1x8x768xf32>
    %29 = vector.shape_cast %28 : vector<1x8x768xf32> to vector<8x768xf32>
    %30 = arith.truncf %29 : vector<8x768xf32> to vector<8x768xbf16>
    %c0_18 = arith.constant 0 : index
    %c0_19 = arith.constant 0 : index
    %31 = vector.load %arg4[%c0_18, %c0_19] : memref<768x384xbf16, #tpu.memory_space<vmem>>, vector<768x384xbf16>
    %cst_20 = arith.constant dense<0.000000e+00> : vector<8x384xf32>
    %32 = tpu.matmul %30, %31, %cst_20 {dimension_numbers = #tpu.dot_dimension_numbers<[1], [0], [0], [1], [0, 0, 1, 1], [], []>} : vector<8x768xbf16>, vector<768x384xbf16>, vector<8x384xf32> -> vector<8x384xf32>
    %c0_21 = arith.constant 0 : index
    %c0_22 = arith.constant 0 : index
    %33 = vector.load %arg5[%c0_21, %c0_22] : memref<1x384xf32, #tpu.memory_space<vmem>>, vector<1x384xf32>
    %34 = vector.broadcast %33 : vector<1x384xf32> to vector<8x384xf32>
    %35 = arith.addf %32, %34 : vector<8x384xf32>
    %36 = vector.extract_strided_slice %35 {offsets = [0, 0], sizes = [8, 256], strides = [1, 1]} : vector<8x384xf32> to vector<8x256xf32>
    %cst_23 = arith.constant 0.000000e+00 : f32
    %37 = vector.broadcast %cst_23 : f32 to vector<8x256xf32>
    %38 = arith.maximumf %36, %37 : vector<8x256xf32>
    %39 = arith.truncf %38 : vector<8x256xf32> to vector<8x256xbf16>
    %40 = vector.extract_strided_slice %35 {offsets = [0, 256], sizes = [8, 128], strides = [1, 1]} : vector<8x384xf32> to vector<8x128xf32>
    %cst_24 = arith.constant 0.000000e+00 : f32
    %41 = vector.broadcast %cst_24 : f32 to vector<8x128xf32>
    %42 = arith.maximumf %40, %41 : vector<8x128xf32>
    %43 = arith.truncf %42 : vector<8x128xf32> to vector<8x128xbf16>
    %c0_25 = arith.constant 0 : index
    %c0_26 = arith.constant 0 : index
    %44 = vector.load %arg8[%c0_25, %c0_26] : memref<9x256xbf16, #tpu.memory_space<vmem>>, vector<9x256xbf16>
    %cst_27 = arith.constant dense<0.000000e+00> : vector<9x8xf32>
    %45 = tpu.matmul %44, %39, %cst_27 {dimension_numbers = #tpu.dot_dimension_numbers<[1], [1], [0], [0], [0, 0, 1, 0], [], []>} : vector<9x256xbf16>, vector<8x256xbf16>, vector<9x8xf32> -> vector<9x8xf32>
    %c0_28 = arith.constant 0 : index
    %c0_29 = arith.constant 0 : index
    %46 = vector.load %arg9[%c0_28, %c0_29] : memref<9x1xf32, #tpu.memory_space<vmem>>, vector<9x1xf32>
    %47 = vector.broadcast %46 : vector<9x1xf32> to vector<9x8xf32>
    %48 = arith.addf %45, %47 : vector<9x8xf32>
    %cst_30 = arith.constant 5.000000e-01 : f32
    %49 = vector.broadcast %cst_30 : f32 to vector<9x8xf32>
    %50 = arith.mulf %49, %48 : vector<9x8xf32>
    %51 = math.tanh %50 : vector<9x8xf32>
    %cst_31 = arith.constant 5.000000e-01 : f32
    %52 = vector.broadcast %cst_31 : f32 to vector<9x8xf32>
    %53 = arith.mulf %52, %51 : vector<9x8xf32>
    %cst_32 = arith.constant 5.000000e-01 : f32
    %54 = vector.broadcast %cst_32 : f32 to vector<9x8xf32>
    %55 = arith.addf %53, %54 : vector<9x8xf32>
    %c0_33 = arith.constant 0 : index
    %c0_34 = arith.constant 0 : index
    %c0_35 = arith.constant 0 : index
    %56 = vector.load %arg14[%c0_33, %c0_34, %c0_35] : memref<1x9x8xf32, #tpu.memory_space<vmem>>, vector<1x9x8xf32>
    %57 = vector.shape_cast %56 : vector<1x9x8xf32> to vector<9x8xf32>
    %58 = vector.shape_cast %55 : vector<9x8xf32> to vector<1x9x8xf32>
    tpu.vector_store %arg14[%c0_33, %c0_34, %c0_35], %58 {strides = array<i32>} : memref<1x9x8xf32, #tpu.memory_space<vmem>>, vector<1x9x8xf32>,
    %c0_36 = arith.constant 0 : index
    %c0_37 = arith.constant 0 : index
    %59 = vector.load %arg10[%c0_36, %c0_37] : memref<1x768xbf16, #tpu.memory_space<vmem>>, vector<1x768xbf16>
    %c0_38 = arith.constant 0 : index
    %c0_39 = arith.constant 0 : index
    %c0_40 = arith.constant 0 : index
    %60 = vector.load %arg3[%c0_38, %c0_39, %c0_40] : memref<1x8x768xf32, #tpu.memory_space<vmem>>, vector<1x8x768xf32>
    %61 = vector.shape_cast %60 : vector<1x8x768xf32> to vector<8x768xf32>
    %62 = arith.truncf %61 : vector<8x768xf32> to vector<8x768xbf16>
    %cst_41 = arith.constant dense<0.000000e+00> : vector<1x8xf32>
    %63 = tpu.matmul %59, %62, %cst_41 {dimension_numbers = #tpu.dot_dimension_numbers<[1], [1], [0], [0], [0, 0, 1, 0], [], []>} : vector<1x768xbf16>, vector<8x768xbf16>, vector<1x8xf32> -> vector<1x8xf32>
    %c0_42 = arith.constant 0 : index
    %64 = memref.load %arg13[%c0_42] : memref<2xf32, #tpu.memory_space<smem>>
    %65 = vector.broadcast %64 : f32 to vector<1x8xf32>
    %66 = arith.addf %63, %65 : vector<1x8xf32>
    %cst_43 = arith.constant 5.000000e-01 : f32
    %67 = vector.broadcast %cst_43 : f32 to vector<1x8xf32>
    %68 = arith.mulf %67, %66 : vector<1x8xf32>
    %69 = math.tanh %68 : vector<1x8xf32>
    %cst_44 = arith.constant 5.000000e-01 : f32
    %70 = vector.broadcast %cst_44 : f32 to vector<1x8xf32>
    %71 = arith.mulf %70, %69 : vector<1x8xf32>
    %cst_45 = arith.constant 5.000000e-01 : f32
    %72 = vector.broadcast %cst_45 : f32 to vector<1x8xf32>
    %73 = arith.addf %71, %72 : vector<1x8xf32>
    %c0_46 = arith.constant 0 : index
    %c0_47 = arith.constant 0 : index
    %c0_48 = arith.constant 0 : index
    %74 = vector.load %arg15[%c0_46, %c0_47, %c0_48] : memref<1x1x8xf32, #tpu.memory_space<vmem>>, vector<1x1x8xf32>
    %75 = vector.shape_cast %74 : vector<1x1x8xf32> to vector<1x8xf32>
    %76 = vector.shape_cast %73 : vector<1x8xf32> to vector<1x1x8xf32>
    tpu.vector_store %arg15[%c0_46, %c0_47, %c0_48], %76 {strides = array<i32>} : memref<1x1x8xf32, #tpu.memory_space<vmem>>, vector<1x1x8xf32>,
    %c0_49 = arith.constant 0 : index
    %c0_50 = arith.constant 0 : index
    %77 = vector.load %arg11[%c0_49, %c0_50] : memref<128x1xbf16, #tpu.memory_space<vmem>>, vector<128x1xbf16>
    %cst_51 = arith.constant dense<0.000000e+00> : vector<8x1xf32>
    %78 = tpu.matmul %43, %77, %cst_51 {dimension_numbers = #tpu.dot_dimension_numbers<[1], [0], [0], [1], [0, 0, 1, 1], [], []>} : vector<8x128xbf16>, vector<128x1xbf16>, vector<8x1xf32> -> vector<8x1xf32>
    %79 = vector.broadcast %78 : vector<8x1xf32> to vector<8x8xf32>
    %80 = vector.broadcast %26 : vector<1x8xf32> to vector<8x8xf32>
    %81 = arith.addf %79, %80 : vector<8x8xf32>
    %c1 = arith.constant 1 : index
    %82 = memref.load %arg13[%c1] : memref<2xf32, #tpu.memory_space<smem>>
    %83 = vector.broadcast %82 : f32 to vector<8x8xf32>
    %84 = arith.addf %81, %83 : vector<8x8xf32>
    %cst_52 = arith.constant 5.000000e-01 : f32
    %85 = vector.broadcast %cst_52 : f32 to vector<8x8xf32>
    %86 = arith.mulf %85, %84 : vector<8x8xf32>
    %87 = math.tanh %86 : vector<8x8xf32>
    %cst_53 = arith.constant 5.000000e-01 : f32
    %88 = vector.broadcast %cst_53 : f32 to vector<8x8xf32>
    %89 = arith.mulf %88, %87 : vector<8x8xf32>
    %cst_54 = arith.constant 5.000000e-01 : f32
    %90 = vector.broadcast %cst_54 : f32 to vector<8x8xf32>
    %91 = arith.addf %89, %90 : vector<8x8xf32>
    %c0_55 = arith.constant 0 : index
    %c0_56 = arith.constant 0 : index
    %c0_57 = arith.constant 0 : index
    %92 = vector.load %arg17[%c0_55, %c0_56, %c0_57] : memref<1x8x8xf32, #tpu.memory_space<vmem>>, vector<1x8x8xf32>
    %93 = vector.shape_cast %92 : vector<1x8x8xf32> to vector<8x8xf32>
    %94 = vector.shape_cast %91 : vector<8x8xf32> to vector<1x8x8xf32>
    tpu.vector_store %arg17[%c0_55, %c0_56, %c0_57], %94 {strides = array<i32>} : memref<1x8x8xf32, #tpu.memory_space<vmem>>, vector<1x8x8xf32>,
    return
  }
  func.func @transform_0(%arg0: i32, %arg1: i32) -> (i32, i32, i32) {
    %c0_i32 = arith.constant 0 : i32
    %c0_i32_0 = arith.constant 0 : i32
    %c0_i32_1 = arith.constant 0 : i32
    return %arg0, %c0_i32, %c0_i32_0 : i32, i32, i32
  }
  func.func @transform_1(%arg0: i32, %arg1: i32) -> (i32, i32, i32) {
    %c0_i32 = arith.constant 0 : i32
    %c0_i32_0 = arith.constant 0 : i32
    return %arg0, %arg1, %c0_i32 : i32, i32, i32
  }
  func.func @transform_2(%arg0: i32, %arg1: i32) -> (i32, i32) {
    %c0_i32 = arith.constant 0 : i32
    %c0_i32_0 = arith.constant 0 : i32
    %c0_i32_1 = arith.constant 0 : i32
    return %c0_i32, %c0_i32_0 : i32, i32
  }
  func.func @transform_3(%arg0: i32, %arg1: i32) -> (i32, i32) {
    %c0_i32 = arith.constant 0 : i32
    %c0_i32_0 = arith.constant 0 : i32
    %c0_i32_1 = arith.constant 0 : i32
    return %c0_i32, %c0_i32_0 : i32, i32
  }
  func.func @transform_4(%arg0: i32, %arg1: i32) -> (i32, i32) {
    %c0_i32 = arith.constant 0 : i32
    %c0_i32_0 = arith.constant 0 : i32
    %c0_i32_1 = arith.constant 0 : i32
    return %c0_i32, %c0_i32_0 : i32, i32
  }
  func.func @transform_5(%arg0: i32, %arg1: i32) -> (i32, i32) {
    %c0_i32 = arith.constant 0 : i32
    %c0_i32_0 = arith.constant 0 : i32
    %c0_i32_1 = arith.constant 0 : i32
    return %c0_i32, %c0_i32_0 : i32, i32
  }
  func.func @transform_6(%arg0: i32, %arg1: i32) -> (i32, i32) {
    %c0_i32 = arith.constant 0 : i32
    %c0_i32_0 = arith.constant 0 : i32
    %c0_i32_1 = arith.constant 0 : i32
    return %c0_i32, %c0_i32_0 : i32, i32
  }
  func.func @transform_7(%arg0: i32, %arg1: i32) -> (i32, i32) {
    %c0_i32 = arith.constant 0 : i32
    %c0_i32_0 = arith.constant 0 : i32
    %c0_i32_1 = arith.constant 0 : i32
    return %c0_i32, %c0_i32_0 : i32, i32
  }
  func.func @transform_8(%arg0: i32, %arg1: i32) -> (i32, i32) {
    %c0_i32 = arith.constant 0 : i32
    %c0_i32_0 = arith.constant 0 : i32
    %c0_i32_1 = arith.constant 0 : i32
    return %c0_i32, %c0_i32_0 : i32, i32
  }
  func.func @transform_9(%arg0: i32, %arg1: i32) -> (i32, i32) {
    %c0_i32 = arith.constant 0 : i32
    %c0_i32_0 = arith.constant 0 : i32
    %c0_i32_1 = arith.constant 0 : i32
    return %c0_i32, %c0_i32_0 : i32, i32
  }
  func.func @transform_10(%arg0: i32, %arg1: i32) -> (i32, i32) {
    %c0_i32 = arith.constant 0 : i32
    %c0_i32_0 = arith.constant 0 : i32
    %c0_i32_1 = arith.constant 0 : i32
    return %c0_i32, %c0_i32_0 : i32, i32
  }
  func.func @transform_11(%arg0: i32, %arg1: i32) -> i32 {
    %c0_i32 = arith.constant 0 : i32
    %c0_i32_0 = arith.constant 0 : i32
    return %c0_i32 : i32
  }
  func.func @transform_12(%arg0: i32, %arg1: i32) -> (i32, i32, i32) {
    %c0_i32 = arith.constant 0 : i32
    %c0_i32_0 = arith.constant 0 : i32
    return %arg0, %c0_i32, %arg1 : i32, i32, i32
  }
  func.func @transform_13(%arg0: i32, %arg1: i32) -> (i32, i32, i32) {
    %c0_i32 = arith.constant 0 : i32
    %c0_i32_0 = arith.constant 0 : i32
    return %arg0, %c0_i32, %arg1 : i32, i32, i32
  }
  func.func @transform_14(%arg0: i32, %arg1: i32) -> (i32, i32, i32) {
    %c0_i32 = arith.constant 0 : i32
    %c0_i32_0 = arith.constant 0 : i32
    %c0_i32_1 = arith.constant 0 : i32
    return %arg0, %c0_i32, %c0_i32_0 : i32, i32, i32
  }
  func.func @transform_15(%arg0: i32, %arg1: i32) -> (i32, i32, i32) {
    %c0_i32 = arith.constant 0 : i32
    %c0_i32_0 = arith.constant 0 : i32
    return %arg0, %arg1, %c0_i32 : i32, i32, i32
  }
}

</mosaic_0001>

<llo_original>
// kernel: tpu_custom_call.1
$region0: #{tpu_custom_call.1}
  #allocation0 [shape = 'u32[]', space=smem, size = 0x4, offset = 0x4, fixed_abs, tag = 'smem constant byte address 0x4 - core index']
  #allocation1 [shape = 'u32[144,128]{1,0:T(1,128)}', space=vmem, size = 0x12000, scoped, tag = 'internal scratch']
  %s0 = inlined_call_operand.vmem [shape: f32[2,8,768], index: 0, kind: input, shape index: {}]
  %s1 = inlined_call_operand.hbm [shape: f32[2,8,768], index: 1, kind: input, shape index: {}]
  %s2 = inlined_call_operand.vmem [shape: bf16[768,384], index: 2, kind: input, shape index: {}]
  %s3 = inlined_call_operand.hbm [shape: f32[1,384], index: 3, kind: input, shape index: {}]
  %s4 = inlined_call_operand.vmem [shape: bf16[768,132], index: 4, kind: input, shape index: {}]
  %s5 = inlined_call_operand.vmem [shape: f32[1,132], index: 5, kind: input, shape index: {}]
  %s6 = inlined_call_operand.vmem [shape: bf16[9,256], index: 6, kind: input, shape index: {}]
  %s7 = inlined_call_operand.vmem [shape: f32[9,1], index: 7, kind: input, shape index: {}]
  %s8 = inlined_call_operand.vmem [shape: bf16[1,768], index: 8, kind: input, shape index: {}]
  %s9 = inlined_call_operand.vmem [shape: bf16[128,1], index: 9, kind: input, shape index: {}]
  %s10 = inlined_call_operand.vmem [shape: bf16[1,128], index: 10, kind: input, shape index: {}]
  %s11 = inlined_call_operand.vmem [shape: f32[2], index: 11, kind: input, shape index: {}]
  %s12 = inlined_call_operand.vmem [shape: f32[2,9,8], index: 12, kind: output, shape index: {0}]
  %s13 = inlined_call_operand.hbm [shape: f32[2,1,8], index: 13, kind: output, shape index: {1}]
  %s14 = inlined_call_operand.hbm [shape: f32[2,1,4], index: 14, kind: output, shape index: {2}]
  %s15 = inlined_call_operand.hbm [shape: f32[2,8,8], index: 15, kind: output, shape index: {3}]
  %16 = xla_tuple %s12, %s13, %s14, %s15
  %s17 = sld [smem:[#allocation0]]
  $region117: #{tpu_custom_call.1} parent=0
    _
  %s19 = ssub.s32 1, %s17
  %s20 = scalar_select 0, %s19, %s17
  $region1: #{tpu_custom_call.1} parent=0
    #allocation2 [shape = 'u8[49152]{0}', space=vmem, size = 0xc000, scoped, tag = 'input window, operand 1']
    #allocation3 [shape = 's32[2]{0}', space=sflag, size = 0x8, scoped, tag = 'scoped memory for tpu_custom_call.1']
    #allocation4 [shape = 's32[2]{0}', space=sflag, size = 0x8, scoped, tag = 'scoped memory for tpu_custom_call.1']
    #allocation5 [shape = 's32[2]{0}', space=sflag, size = 0x8, scoped, tag = 'scoped memory for tpu_custom_call.1']
    #allocation6 [shape = 'u8[1536]{0}', space=vmem, size = 0x800, scoped, tag = 'input window, operand 3, single buffered']
    #allocation7 [shape = 's32[1]{0}', space=sflag, size = 0x4, scoped, tag = 'scoped memory for tpu_custom_call.1']
    #allocation8 [shape = 'u8[512]{0}', space=smem, size = 0x200, scoped, tag = 'input window, operand 11, single buffered']
    #allocation9 [shape = 'u8[1024]{0}', space=vmem, size = 0x400, scoped, tag = 'output window, operand 1']
    #allocation10 [shape = 'u8[1024]{0}', space=vmem, size = 0x400, scoped, tag = 'output window, operand 2']
    #allocation11 [shape = 's32[2]{0}', space=sflag, size = 0x8, scoped, tag = 'scoped memory for tpu_custom_call.1']
    #allocation12 [shape = 'u8[8192]{0}', space=vmem, size = 0x2000, scoped, tag = 'output window, operand 3']
    %21 = vsyncpa [#allocation3], 0
    %s22 = scalar_lea.sflag [#allocation3], 1
    %23 = vsyncpa %s22, 0
    %24 = vsyncpa [#allocation7], 0
    %25 = vsyncpa [#allocation5], 0
    %26 = vsyncpa [#allocation4], 0
    %s27 = scalar_lea.sflag [#allocation4], 1
    %28 = vsyncpa %s27, 0
    %29 = vsyncpa [#allocation11], 0
    %s30 = scalar_lea.sflag [#allocation11], 1
    %31 = vsyncpa %s30, 0
    loop: start=0, step=1, limit=4
    $region2: #{tpu_custom_call.1} parent=1 // loop_pre_header
      _
    $region3: #{tpu_custom_call.1} parent=1 // loop_header
      %s33 = sphi 0, %s37
      %p34 = scmp.ge.s32.totalorder %s33, 4
      %s40 = sphi 0, %s52
      %s41 = sphi 0, %s48
      %s42 = sphi 0, %s40
      %s43 = sphi 0, %s41
      %s44 = sphi 0, %s42
      %s45 = sphi 0, %s43
      %s55 = sphi 0, %s57
      %s58 = sphi 0, %s55
      %s59 = sphi 0, %s58
      %s75 = sphi 0, %s59
      %s83 = sphi 0, %s85
      %s86 = sphi 0, %s83
      %s87 = sphi 0, %s86
      %s103 = sphi 0, %s87
      %s107 = sphi 0, %s107
      %s109 = sphi 0, %s107
      %s110 = sphi 0, %s109
      %s124 = sphi 0, %s110
      %s128 = sphi 0, %s128
      %s130 = sphi 0, %s128
      %s131 = sphi 0, %s130
      %s145 = sphi 0, %s131
      %s149 = sphi 0, %s149
      %s151 = sphi 0, %s149
      %s152 = sphi 0, %s151
      %s166 = sphi 0, %s152
      %s170 = sphi 0, %s170
      %s172 = sphi 0, %s170
      %s173 = sphi 0, %s172
      %s187 = sphi 0, %s173
      %s191 = sphi 0, %s191
      %s193 = sphi 0, %s191
      %s194 = sphi 0, %s193
      %s208 = sphi 0, %s194
      %s212 = sphi 0, %s212
      %s214 = sphi 0, %s212
      %s215 = sphi 0, %s214
      %s229 = sphi 0, %s215
      %s233 = sphi 0, %s233
      %s235 = sphi 0, %s233
      %s236 = sphi 0, %s235
      %s250 = sphi 0, %s236
      %s254 = sphi 0, %s254
      %s256 = sphi 0, %s254
      %s257 = sphi 0, %s256
      %s271 = sphi 0, %s257
      %s275 = sphi 0, %s275
      %s277 = sphi 0, %s275
      %s278 = sphi 0, %s277
      %s292 = sphi 0, %s278
      %s296 = sphi 0, %s296
      %s298 = sphi 0, %s296
      %s299 = sphi 0, %s298
      %s313 = sphi 0, %s299
      %s321 = sphi 0, %s323
      %s324 = sphi 0, %s321
      %s325 = sphi 0, %s324
      %s341 = sphi 0, %s325
      %s349 = sphi 0, %s351
      %s352 = sphi 0, %s349
      %s353 = sphi 0, %s352
      %s369 = sphi 0, %s353
      %s375 = sphi 0, %s377
      %s378 = sphi 0, %s375
      %s379 = sphi 0, %s378
      %s395 = sphi 0, %s379
      %s403 = sphi 0, %s405
      %s406 = sphi 0, %s403
      %s407 = sphi 0, %s406
      %s423 = sphi 0, %s407
    $region4: #{tpu_custom_call.1} parent=1 // loop_header_branch
      %36 = sbr.rel (%p34) target = $region8
    $region5: #{tpu_custom_call.1} parent=1 // loop_body
      %s38 = ssub.s32 %s33, 1
      %s39 = ssub.s32 %s33, 2
      %s46 = sadd.s32 1, %s41
      %p47 = scmp.ge.s32.totalorder %s46, 1
      %s48 = scalar_select %p47, 0, %s46
      %s49 = sadd.s32 1, %s40
      %s50 = scalar_select %p47, %s49, %s40
      %p51 = scmp.ge.s32.totalorder %s50, 2
      %s52 = scalar_select %p51, 0, %s50
      %s53 = ssub.s32 %s40, %s52
      %p54 = scmp.eq.s32.totalorder %s53, 0
      %s56 = sadd.s32 %s55, 1
      %s57 = scalar_select %p54, %s55, %s56
      %p60 = pneg %p54
      %p61 = scmp.eq.s32.totalorder %s33, 1
      %p62 = por %p60, %p61
      %p63 = scmp.ne.s32.totalorder %s55, %s58
      %p64 = scmp.eq.s32.totalorder %s33, 0
      %p65 = por %p63, %p64
      %p66 = scmp.ne.s32.totalorder %s55, %s58
      %p67 = scmp.eq.s32.totalorder %s38, 1
      %p68 = por %p66, %p67
      %p69 = scmp.ne.s32.totalorder %s58, %s59
      %p70 = scmp.eq.s32.totalorder %s38, 0
      %p71 = por %p69, %p70
      %p72 = scmp.ne.s32.totalorder %s58, %s59
      %p73 = scmp.eq.s32.totalorder %s39, 1
      %p74 = por %p72, %p73
      %p76 = scmp.ne.s32.totalorder %s59, %s75
      %p77 = scmp.eq.s32.totalorder %s39, 0
      %p78 = por %p76, %p77
      %s79 = ssub.s32 %s40, %s52
      %s80 = ssub.s32 %s41, %s48
      %s81 = sor.u32 %s79, %s80
      %p82 = scmp.eq.s32.totalorder %s81, 0
      %s84 = sadd.s32 %s83, 1
      %s85 = scalar_select %p82, %s83, %s84
      %p88 = pneg %p82
      %p89 = scmp.eq.s32.totalorder %s33, 1
      %p90 = por %p88, %p89
      %p91 = scmp.ne.s32.totalorder %s83, %s86
      %p92 = scmp.eq.s32.totalorder %s33, 0
      %p93 = por %p91, %p92
      %p94 = scmp.ne.s32.totalorder %s83, %s86
      %p95 = scmp.eq.s32.totalorder %s38, 1
      %p96 = por %p94, %p95
      %p97 = scmp.ne.s32.totalorder %s86, %s87
      %p98 = scmp.eq.s32.totalorder %s38, 0
      %p99 = por %p97, %p98
      %p100 = scmp.ne.s32.totalorder %s86, %s87
      %p101 = scmp.eq.s32.totalorder %s39, 1
      %p102 = por %p100, %p101
      %p104 = scmp.ne.s32.totalorder %s87, %s103
      %p105 = scmp.eq.s32.totalorder %s39, 0
      %p106 = por %p104, %p105
      %s108 = sadd.s32 %s107, 1
      %p111 = scmp.eq.s32.totalorder %s33, 1
      %p112 = scmp.ne.s32.totalorder %s107, %s109
      %p113 = scmp.eq.s32.totalorder %s33, 0
      %p114 = por %p112, %p113
      %p115 = scmp.ne.s32.totalorder %s107, %s109
      %p116 = scmp.eq.s32.totalorder %s38, 1
      %p117 = por %p115, %p116
      %p118 = scmp.ne.s32.totalorder %s109, %s110
      %p119 = scmp.eq.s32.totalorder %s38, 0
      %p120 = por %p118, %p119
      %p121 = scmp.ne.s32.totalorder %s109, %s110
      %p122 = scmp.eq.s32.totalorder %s39, 1
      %p123 = por %p121, %p122
      %p125 = scmp.ne.s32.totalorder %s110, %s124
      %p126 = scmp.eq.s32.totalorder %s39, 0
      %p127 = por %p125, %p126
      %s129 = sadd.s32 %s128, 1
      %p132 = scmp.eq.s32.totalorder %s33, 1
      %p133 = scmp.ne.s32.totalorder %s128, %s130
      %p134 = scmp.eq.s32.totalorder %s33, 0
      %p135 = por %p133, %p134
      %p136 = scmp.ne.s32.totalorder %s128, %s130
      %p137 = scmp.eq.s32.totalorder %s38, 1
      %p138 = por %p136, %p137
      %p139 = scmp.ne.s32.totalorder %s130, %s131
      %p140 = scmp.eq.s32.totalorder %s38, 0
      %p141 = por %p139, %p140
      %p142 = scmp.ne.s32.totalorder %s130, %s131
      %p143 = scmp.eq.s32.totalorder %s39, 1
      %p144 = por %p142, %p143
      %p146 = scmp.ne.s32.totalorder %s131, %s145
      %p147 = scmp.eq.s32.totalorder %s39, 0
      %p148 = por %p146, %p147
      %s150 = sadd.s32 %s149, 1
      %p153 = scmp.eq.s32.totalorder %s33, 1
      %p154 = scmp.ne.s32.totalorder %s149, %s151
      %p155 = scmp.eq.s32.totalorder %s33, 0
      %p156 = por %p154, %p155
      %p157 = scmp.ne.s32.totalorder %s149, %s151
      %p158 = scmp.eq.s32.totalorder %s38, 1
      %p159 = por %p157, %p158
      %p160 = scmp.ne.s32.totalorder %s151, %s152
      %p161 = scmp.eq.s32.totalorder %s38, 0
      %p162 = por %p160, %p161
      %p163 = scmp.ne.s32.totalorder %s151, %s152
      %p164 = scmp.eq.s32.totalorder %s39, 1
      %p165 = por %p163, %p164
      %p167 = scmp.ne.s32.totalorder %s152, %s166
      %p168 = scmp.eq.s32.totalorder %s39, 0
      %p169 = por %p167, %p168
      %s171 = sadd.s32 %s170, 1
      %p174 = scmp.eq.s32.totalorder %s33, 1
      %p175 = scmp.ne.s32.totalorder %s170, %s172
      %p176 = scmp.eq.s32.totalorder %s33, 0
      %p177 = por %p175, %p176
      %p178 = scmp.ne.s32.totalorder %s170, %s172
      %p179 = scmp.eq.s32.totalorder %s38, 1
      %p180 = por %p178, %p179
      %p181 = scmp.ne.s32.totalorder %s172, %s173
      %p182 = scmp.eq.s32.totalorder %s38, 0
      %p183 = por %p181, %p182
      %p184 = scmp.ne.s32.totalorder %s172, %s173
      %p185 = scmp.eq.s32.totalorder %s39, 1
      %p186 = por %p184, %p185
      %p188 = scmp.ne.s32.totalorder %s173, %s187
      %p189 = scmp.eq.s32.totalorder %s39, 0
      %p190 = por %p188, %p189
      %s192 = sadd.s32 %s191, 1
      %p195 = scmp.eq.s32.totalorder %s33, 1
      %p196 = scmp.ne.s32.totalorder %s191, %s193
      %p197 = scmp.eq.s32.totalorder %s33, 0
      %p198 = por %p196, %p197
      %p199 = scmp.ne.s32.totalorder %s191, %s193
      %p200 = scmp.eq.s32.totalorder %s38, 1
      %p201 = por %p199, %p200
      %p202 = scmp.ne.s32.totalorder %s193, %s194
      %p203 = scmp.eq.s32.totalorder %s38, 0
      %p204 = por %p202, %p203
      %p205 = scmp.ne.s32.totalorder %s193, %s194
      %p206 = scmp.eq.s32.totalorder %s39, 1
      %p207 = por %p205, %p206
      %p209 = scmp.ne.s32.totalorder %s194, %s208
      %p210 = scmp.eq.s32.totalorder %s39, 0
      %p211 = por %p209, %p210
      %s213 = sadd.s32 %s212, 1
      %p216 = scmp.eq.s32.totalorder %s33, 1
      %p217 = scmp.ne.s32.totalorder %s212, %s214
      %p218 = scmp.eq.s32.totalorder %s33, 0
      %p219 = por %p217, %p218
      %p220 = scmp.ne.s32.totalorder %s212, %s214
      %p221 = scmp.eq.s32.totalorder %s38, 1
      %p222 = por %p220, %p221
      %p223 = scmp.ne.s32.totalorder %s214, %s215
      %p224 = scmp.eq.s32.totalorder %s38, 0
      %p225 = por %p223, %p224
      %p226 = scmp.ne.s32.totalorder %s214, %s215
      %p227 = scmp.eq.s32.totalorder %s39, 1
      %p228 = por %p226, %p227
      %p230 = scmp.ne.s32.totalorder %s215, %s229
      %p231 = scmp.eq.s32.totalorder %s39, 0
      %p232 = por %p230, %p231
      %s234 = sadd.s32 %s233, 1
      %p237 = scmp.eq.s32.totalorder %s33, 1
      %p238 = scmp.ne.s32.totalorder %s233, %s235
      %p239 = scmp.eq.s32.totalorder %s33, 0
      %p240 = por %p238, %p239
      %p241 = scmp.ne.s32.totalorder %s233, %s235
      %p242 = scmp.eq.s32.totalorder %s38, 1
      %p243 = por %p241, %p242
      %p244 = scmp.ne.s32.totalorder %s235, %s236
      %p245 = scmp.eq.s32.totalorder %s38, 0
      %p246 = por %p244, %p245
      %p247 = scmp.ne.s32.totalorder %s235, %s236
      %p248 = scmp.eq.s32.totalorder %s39, 1
      %p249 = por %p247, %p248
      %p251 = scmp.ne.s32.totalorder %s236, %s250
      %p252 = scmp.eq.s32.totalorder %s39, 0
      %p253 = por %p251, %p252
      %s255 = sadd.s32 %s254, 1
      %p258 = scmp.eq.s32.totalorder %s33, 1
      %p259 = scmp.ne.s32.totalorder %s254, %s256
      %p260 = scmp.eq.s32.totalorder %s33, 0
      %p261 = por %p259, %p260
      %p262 = scmp.ne.s32.totalorder %s254, %s256
      %p263 = scmp.eq.s32.totalorder %s38, 1
      %p264 = por %p262, %p263
      %p265 = scmp.ne.s32.totalorder %s256, %s257
      %p266 = scmp.eq.s32.totalorder %s38, 0
      %p267 = por %p265, %p266
      %p268 = scmp.ne.s32.totalorder %s256, %s257
      %p269 = scmp.eq.s32.totalorder %s39, 1
      %p270 = por %p268, %p269
      %p272 = scmp.ne.s32.totalorder %s257, %s271
      %p273 = scmp.eq.s32.totalorder %s39, 0
      %p274 = por %p272, %p273
      %s276 = sadd.s32 %s275, 1
      %p279 = scmp.eq.s32.totalorder %s33, 1
      %p280 = scmp.ne.s32.totalorder %s275, %s277
      %p281 = scmp.eq.s32.totalorder %s33, 0
      %p282 = por %p280, %p281
      %p283 = scmp.ne.s32.totalorder %s275, %s277
      %p284 = scmp.eq.s32.totalorder %s38, 1
      %p285 = por %p283, %p284
      %p286 = scmp.ne.s32.totalorder %s277, %s278
      %p287 = scmp.eq.s32.totalorder %s38, 0
      %p288 = por %p286, %p287
      %p289 = scmp.ne.s32.totalorder %s277, %s278
      %p290 = scmp.eq.s32.totalorder %s39, 1
      %p291 = por %p289, %p290
      %p293 = scmp.ne.s32.totalorder %s278, %s292
      %p294 = scmp.eq.s32.totalorder %s39, 0
      %p295 = por %p293, %p294
      %s297 = sadd.s32 %s296, 1
      %p300 = scmp.eq.s32.totalorder %s33, 1
      %p301 = scmp.ne.s32.totalorder %s296, %s298
      %p302 = scmp.eq.s32.totalorder %s33, 0
      %p303 = por %p301, %p302
      %p304 = scmp.ne.s32.totalorder %s296, %s298
      %p305 = scmp.eq.s32.totalorder %s38, 1
      %p306 = por %p304, %p305
      %p307 = scmp.ne.s32.totalorder %s298, %s299
      %p308 = scmp.eq.s32.totalorder %s38, 0
      %p309 = por %p307, %p308
      %p310 = scmp.ne.s32.totalorder %s298, %s299
      %p311 = scmp.eq.s32.totalorder %s39, 1
      %p312 = por %p310, %p311
      %p314 = scmp.ne.s32.totalorder %s299, %s313
      %p315 = scmp.eq.s32.totalorder %s39, 0
      %p316 = por %p314, %p315
      %s317 = ssub.s32 %s40, %s52
      %s318 = ssub.s32 %s41, %s48
      %s319 = sor.u32 %s317, %s318
      %p320 = scmp.eq.s32.totalorder %s319, 0
      %s322 = sadd.s32 %s321, 1
      %s323 = scalar_select %p320, %s321, %s322
      %p326 = pneg %p320
      %p327 = scmp.eq.s32.totalorder %s33, 1
      %p328 = por %p326, %p327
      %p329 = scmp.ne.s32.totalorder %s321, %s324
      %p330 = scmp.eq.s32.totalorder %s33, 0
      %p331 = por %p329, %p330
      %p332 = scmp.ne.s32.totalorder %s321, %s324
      %p333 = scmp.eq.s32.totalorder %s38, 1
      %p334 = por %p332, %p333
      %p335 = scmp.ne.s32.totalorder %s324, %s325
      %p336 = scmp.eq.s32.totalorder %s38, 0
      %p337 = por %p335, %p336
      %p338 = scmp.ne.s32.totalorder %s324, %s325
      %p339 = scmp.eq.s32.totalorder %s39, 1
      %p340 = por %p338, %p339
      %p342 = scmp.ne.s32.totalorder %s325, %s341
      %p343 = scmp.eq.s32.totalorder %s39, 0
      %p344 = por %p342, %p343
      %s345 = ssub.s32 %s40, %s52
      %s346 = ssub.s32 %s41, %s48
      %s347 = sor.u32 %s345, %s346
      %p348 = scmp.eq.s32.totalorder %s347, 0
      %s350 = sadd.s32 %s349, 1
      %s351 = scalar_select %p348, %s349, %s350
      %p354 = pneg %p348
      %p355 = scmp.eq.s32.totalorder %s33, 1
      %p356 = por %p354, %p355
      %p357 = scmp.ne.s32.totalorder %s349, %s352
      %p358 = scmp.eq.s32.totalorder %s33, 0
      %p359 = por %p357, %p358
      %p360 = scmp.ne.s32.totalorder %s349, %s352
      %p361 = scmp.eq.s32.totalorder %s38, 1
      %p362 = por %p360, %p361
      %p363 = scmp.ne.s32.totalorder %s352, %s353
      %p364 = scmp.eq.s32.totalorder %s38, 0
      %p365 = por %p363, %p364
      %p366 = scmp.ne.s32.totalorder %s352, %s353
      %p367 = scmp.eq.s32.totalorder %s39, 1
      %p368 = por %p366, %p367
      %p370 = scmp.ne.s32.totalorder %s353, %s369
      %p371 = scmp.eq.s32.totalorder %s39, 0
      %p372 = por %p370, %p371
      %s373 = ssub.s32 %s40, %s52
      %p374 = scmp.eq.s32.totalorder %s373, 0
      %s376 = sadd.s32 %s375, 1
      %s377 = scalar_select %p374, %s375, %s376
      %p380 = pneg %p374
      %p381 = scmp.eq.s32.totalorder %s33, 1
      %p382 = por %p380, %p381
      %p383 = scmp.ne.s32.totalorder %s375, %s378
      %p384 = scmp.eq.s32.totalorder %s33, 0
      %p385 = por %p383, %p384
      %p386 = scmp.ne.s32.totalorder %s375, %s378
      %p387 = scmp.eq.s32.totalorder %s38, 1
      %p388 = por %p386, %p387
      %p389 = scmp.ne.s32.totalorder %s378, %s379
      %p390 = scmp.eq.s32.totalorder %s38, 0
      %p391 = por %p389, %p390
      %p392 = scmp.ne.s32.totalorder %s378, %s379
      %p393 = scmp.eq.s32.totalorder %s39, 1
      %p394 = por %p392, %p393
      %p396 = scmp.ne.s32.totalorder %s379, %s395
      %p397 = scmp.eq.s32.totalorder %s39, 0
      %p398 = por %p396, %p397
      %s399 = ssub.s32 %s40, %s52
      %s400 = ssub.s32 %s41, %s48
      %s401 = sor.u32 %s399, %s400
      %p402 = scmp.eq.s32.totalorder %s401, 0
      %s404 = sadd.s32 %s403, 1
      %s405 = scalar_select %p402, %s403, %s404
      %p408 = pneg %p402
      %p409 = scmp.eq.s32.totalorder %s33, 1
      %p410 = por %p408, %p409
      %p411 = scmp.ne.s32.totalorder %s403, %s406
      %p412 = scmp.eq.s32.totalorder %s33, 0
      %p413 = por %p411, %p412
      %p414 = scmp.ne.s32.totalorder %s403, %s406
      %p415 = scmp.eq.s32.totalorder %s38, 1
      %p416 = por %p414, %p415
      %p417 = scmp.ne.s32.totalorder %s406, %s407
      %p418 = scmp.eq.s32.totalorder %s38, 0
      %p419 = por %p417, %p418
      %p420 = scmp.ne.s32.totalorder %s406, %s407
      %p421 = scmp.eq.s32.totalorder %s39, 1
      %p422 = por %p420, %p421
      %p424 = scmp.ne.s32.totalorder %s407, %s423
      %p425 = scmp.eq.s32.totalorder %s39, 0
      %p426 = por %p424, %p425
      %p427 = scmp.le.s32.totalorder 1, %s33
      %p428 = scmp.lt.s32.totalorder %s33, 3
      %p429 = pnand %p427, %p428
      %p430 = pneg %p429
      // Predicated region
      $region9: #{tpu_custom_call.1} parent=5 // pred_check
        _
      $region10: #{tpu_custom_call.1} parent=5 // pred_check_branch
        %432 = sbr.rel (%p429) target = $region12
      $region11: #{tpu_custom_call.1} parent=5 // pred_region
        %s433 = ssub.s32 %s33, 1
        // Predicated region
        $region13: #{tpu_custom_call.1} parent=11 // pred_check
          %p434 = pneg %p120
        $region14: #{tpu_custom_call.1} parent=11 // pred_check_branch
          %436 = sbr.rel (%p434) target = $region16
        $region15: #{tpu_custom_call.1} parent=11 // pred_region
          _
        $region16: #{tpu_custom_call.1} parent=11 // pred_fallthru
          _
        // Predicated region
        $region17: #{tpu_custom_call.1} parent=11 // pred_check
          %p437 = pneg %p141
        $region18: #{tpu_custom_call.1} parent=11 // pred_check_branch
          %439 = sbr.rel (%p437) target = $region20
        $region19: #{tpu_custom_call.1} parent=11 // pred_region
          %s441 = ssub.s32 48, 48
          %442 = vsyncadd [#allocation7], %s441
          %s444 = sshll.u32 [#allocation6], 4
          %s445 = int_to_ptr.vmem [resolvable:$true] %s444
          %447 = dma.hbm_to_vmem [thread:$0]  %s3, 48, %s445, [#allocation7]
        $region20: #{tpu_custom_call.1} parent=11 // pred_fallthru
          _
        // Predicated region
        $region21: #{tpu_custom_call.1} parent=11 // pred_check
          %p448 = pneg %p162
        $region22: #{tpu_custom_call.1} parent=11 // pred_check_branch
          %450 = sbr.rel (%p448) target = $region24
        $region23: #{tpu_custom_call.1} parent=11 // pred_region
          _
        $region24: #{tpu_custom_call.1} parent=11 // pred_fallthru
          _
        // Predicated region
        $region25: #{tpu_custom_call.1} parent=11 // pred_check
          %p451 = pneg %p183
        $region26: #{tpu_custom_call.1} parent=11 // pred_check_branch
          %453 = sbr.rel (%p451) target = $region28
        $region27: #{tpu_custom_call.1} parent=11 // pred_region
          _
        $region28: #{tpu_custom_call.1} parent=11 // pred_fallthru
          _
        // Predicated region
        $region29: #{tpu_custom_call.1} parent=11 // pred_check
          %p454 = pneg %p204
        $region30: #{tpu_custom_call.1} parent=11 // pred_check_branch
          %456 = sbr.rel (%p454) target = $region32
        $region31: #{tpu_custom_call.1} parent=11 // pred_region
          _
        $region32: #{tpu_custom_call.1} parent=11 // pred_fallthru
          _
        // Predicated region
        $region33: #{tpu_custom_call.1} parent=11 // pred_check
          %p457 = pneg %p225
        $region34: #{tpu_custom_call.1} parent=11 // pred_check_branch
          %459 = sbr.rel (%p457) target = $region36
        $region35: #{tpu_custom_call.1} parent=11 // pred_region
          _
        $region36: #{tpu_custom_call.1} parent=11 // pred_fallthru
          _
        // Predicated region
        $region37: #{tpu_custom_call.1} parent=11 // pred_check
          %p460 = pneg %p246
        $region38: #{tpu_custom_call.1} parent=11 // pred_check_branch
          %462 = sbr.rel (%p460) target = $region40
        $region39: #{tpu_custom_call.1} parent=11 // pred_region
          _
        $region40: #{tpu_custom_call.1} parent=11 // pred_fallthru
          _
        // Predicated region
        $region41: #{tpu_custom_call.1} parent=11 // pred_check
          %p463 = pneg %p267
        $region42: #{tpu_custom_call.1} parent=11 // pred_check_branch
          %465 = sbr.rel (%p463) target = $region44
        $region43: #{tpu_custom_call.1} parent=11 // pred_region
          _
        $region44: #{tpu_custom_call.1} parent=11 // pred_fallthru
          _
        // Predicated region
        $region45: #{tpu_custom_call.1} parent=11 // pred_check
          %p466 = pneg %p288
        $region46: #{tpu_custom_call.1} parent=11 // pred_check_branch
          %468 = sbr.rel (%p466) target = $region48
        $region47: #{tpu_custom_call.1} parent=11 // pred_region
          _
        $region48: #{tpu_custom_call.1} parent=11 // pred_fallthru
          _
        // Predicated region
        $region49: #{tpu_custom_call.1} parent=11 // pred_check
          %p469 = pneg %p309
        $region50: #{tpu_custom_call.1} parent=11 // pred_check_branch
          %471 = sbr.rel (%p469) target = $region52
        $region51: #{tpu_custom_call.1} parent=11 // pred_region
          %s473 = ssub.s32 16, 16
          %474 = vsyncadd [#allocation5], %s473
          %s476 = sshll.u32 %s11, 4
          %s477 = int_to_ptr.vmem [resolvable:$true] %s476
          %479 = dma.vmem_to_smem %s477, 16, [#allocation8], [#allocation5]
        $region52: #{tpu_custom_call.1} parent=11 // pred_fallthru
          _
      $region12: #{tpu_custom_call.1} parent=5 // pred_fallthru
        _
      %p480 = scmp.lt.s32.totalorder %s33, 2
      // Predicated region
      $region53: #{tpu_custom_call.1} parent=5 // pred_check
        %p481 = pneg %p480
      $region54: #{tpu_custom_call.1} parent=5 // pred_check_branch
        %483 = sbr.rel (%p481) target = $region56
      $region55: #{tpu_custom_call.1} parent=5 // pred_region
        // Predicated region
        $region57: #{tpu_custom_call.1} parent=55 // pred_check
          %p484 = pneg %p65
        $region58: #{tpu_custom_call.1} parent=55 // pred_check_branch
          %486 = sbr.rel (%p484) target = $region60
        $region59: #{tpu_custom_call.1} parent=55 // pred_region
          %p487 = scmp.lt.s32.totalorder %s40, 1
          %s488 = scalar_select %p487, %s40, 1
          %s489 = smul.addr %s488, 6
          %s490 = smul.addr %s489, 8
          %s491 = scalar_lea.vmem %s0, %s490
        $region60: #{tpu_custom_call.1} parent=55 // pred_fallthru
          _
        // Predicated region
        $region61: #{tpu_custom_call.1} parent=55 // pred_check
          %p492 = pneg %p93
        $region62: #{tpu_custom_call.1} parent=55 // pred_check_branch
          %494 = sbr.rel (%p492) target = $region64
        $region63: #{tpu_custom_call.1} parent=55 // pred_region
          %s495 = sand.u32 %s83, 1
          %s496 = scalar_lea.sflag [#allocation3], %s495
          %s497 = sand.u32 %s83, 1
          %s498 = smul.addr %s497, 48
          %s499 = scalar_lea.vmem [#allocation2], %s498
          %s501 = ssub.s32 768, 768
          %502 = vsyncadd %s496, %s501
          %s503 = smul.addr %s41, 6
          %s504 = smul.addr %s40, 6
          %s505 = sadd.s32 %s503, %s504
          %s506 = smul.addr %s505, 128
          %s507 = scalar_lea.hbm %s1, %s506
          %s509 = sshll.u32 %s499, 4
          %s510 = int_to_ptr.vmem [resolvable:$true] %s509
          %512 = dma.hbm_to_vmem [thread:$0]  %s507, 768, %s510, %s496
        $region64: #{tpu_custom_call.1} parent=55 // pred_fallthru
          _
      $region56: #{tpu_custom_call.1} parent=5 // pred_fallthru
        _
      %p513 = scmp.le.s32.totalorder 1, %s33
      %p514 = scmp.lt.s32.totalorder %s33, 3
      %p515 = pnand %p513, %p514
      %p516 = pneg %p515
      // Predicated region
      $region65: #{tpu_custom_call.1} parent=5 // pred_check
        _
      $region66: #{tpu_custom_call.1} parent=5 // pred_check_branch
        %518 = sbr.rel (%p515) target = $region68
      $region67: #{tpu_custom_call.1} parent=5 // pred_region
        %s519 = ssub.s32 %s33, 1
        %s520 = sand.u32 %s86, 1
        %s521 = scalar_lea.sflag [#allocation3], %s520
        %s522 = sand.u32 %s86, 1
        %s523 = smul.addr %s522, 48
        %s524 = scalar_lea.vmem [#allocation2], %s523
        // Predicated region
        $region69: #{tpu_custom_call.1} parent=67 // pred_check
          %p525 = pneg %p99
        $region70: #{tpu_custom_call.1} parent=67 // pred_check_branch
          %527 = sbr.rel (%p525) target = $region72
        $region71: #{tpu_custom_call.1} parent=67 // pred_region
          %528 = dma.done %s521, 768
        $region72: #{tpu_custom_call.1} parent=67 // pred_fallthru
          _
        // Predicated region
        $region73: #{tpu_custom_call.1} parent=67 // pred_check
          %p529 = pneg %p141
        $region74: #{tpu_custom_call.1} parent=67 // pred_check_branch
          %531 = sbr.rel (%p529) target = $region76
        $region75: #{tpu_custom_call.1} parent=67 // pred_region
          %532 = dma.done [#allocation7], 48
        $region76: #{tpu_custom_call.1} parent=67 // pred_fallthru
          _
        // Predicated region
        $region77: #{tpu_custom_call.1} parent=67 // pred_check
          %p533 = pneg %p309
        $region78: #{tpu_custom_call.1} parent=67 // pred_check_branch
          %535 = sbr.rel (%p533) target = $region80
        $region79: #{tpu_custom_call.1} parent=67 // pred_region
          %536 = dma.done [#allocation5], 16
        $region80: #{tpu_custom_call.1} parent=67 // pred_fallthru
          _
        %537 = sfence
        %p538 = scmp.lt.s32.totalorder %s42, 1
        %s539 = scalar_select %p538, %s42, 1
        %s540 = smul.addr %s539, 6
        %s541 = smul.addr %s540, 8
        %s542 = scalar_lea.vmem %s0, %s541
        %p543 = pneg %p71
        %p544 = pneg %p68
        %s545 = sand.u32 %s86, 1
        %s546 = scalar_lea.sflag [#allocation3], %s545
        %s547 = sand.u32 %s86, 1
        %s548 = smul.addr %s547, 48
        %s549 = scalar_lea.vmem [#allocation2], %s548
        %p550 = pneg %p99
        %p551 = pneg %p96
        %p552 = pneg %p120
        %p553 = pneg %p117
        %p554 = pneg %p141
        %p555 = pneg %p138
        %p556 = pneg %p162
        %p557 = pneg %p159
        %p558 = pneg %p183
        %p559 = pneg %p180
        %p560 = pneg %p204
        %p561 = pneg %p201
        %p562 = pneg %p225
        %p563 = pneg %p222
        %p564 = pneg %p246
        %p565 = pneg %p243
        %p566 = pneg %p267
        %p567 = pneg %p264
        %p568 = pneg %p288
        %p569 = pneg %p285
        %p570 = pneg %p309
        %p571 = pneg %p306
        %p572 = pneg %p337
        %p573 = pneg %p334
        %p574 = scmp.lt.s32.totalorder %s42, 1
        %s575 = scalar_select %p574, %s42, 1
        %p576 = scmp.lt.s32.totalorder %s43, 0
        %s577 = scalar_select %p576, %s43, 0
        %s578 = smul.addr %s575, 2
        %s579 = sadd.s32 %s577, %s578
        %s580 = smul.addr %s579, 8
        %s581 = scalar_lea.vmem %s12, %s580
        %p582 = pneg %p365
        %p583 = pneg %p362
        %s584 = sand.u32 %s352, 1
        %s585 = scalar_lea.sflag [#allocation4], %s584
        %s586 = sand.u32 %s352, 1
        %s587 = scalar_lea.vmem [#allocation9], %s586
        %p588 = pneg %p391
        %p589 = pneg %p388
        %s590 = sand.u32 %s38, 1
        %s591 = scalar_lea.sflag [#allocation11], %s590
        %s592 = sand.u32 %s378, 1
        %s593 = scalar_lea.vmem [#allocation10], %s592
        %p594 = pneg %p419
        %p595 = pneg %p416
        %s596 = sand.u32 %s38, 1
        %s597 = scalar_lea.sflag [#allocation11], %s596
        %s598 = sand.u32 %s406, 1
        %s599 = smul.addr %s598, 8
        %s600 = scalar_lea.vmem [#allocation12], %s599
        %p601 = scmp.lt.s32.totalorder %s42, 1
        %s602 = scalar_select %p601, %s42, 1
        %s603 = smul.addr %s602, 6
        %s604 = smul.addr %s603, 8
        %s605 = scalar_lea.vmem %s0, %s604
        %p606 = scmp.lt.s32.totalorder %s42, 1
        %s607 = scalar_select %p606, %s42, 1
        %p608 = scmp.lt.s32.totalorder %s43, 0
        %s609 = scalar_select %p608, %s43, 0
        %s610 = smul.addr %s607, 2
        %s611 = sadd.s32 %s609, %s610
        %s612 = smul.addr %s611, 8
        %s613 = scalar_lea.vmem %s12, %s612
        %s615 = smul.u32 %s43, 8
        %v616 = vld [vmem:[%s605] sm:$0xff]
        %v617 = vld [vmem:[%s605 + $0x8] sm:$0xff]
        %v618 = vld [vmem:[%s605 + $0x10] sm:$0xff]
        %v619 = vld [vmem:[%s605 + $0x18] sm:$0xff]
        %v620 = vld [vmem:[%s605 + $0x20] sm:$0xff]
        %v621 = vld [vmem:[%s605 + $0x28] sm:$0xff]
        %v622 = vpack.c.bf16 %v616, %v616
        %v623 = vpack.c.bf16 %v617, %v617
        %v624 = vpack.c.bf16 %v618, %v618
        %v625 = vpack.c.bf16 %v619, %v619
        %v626 = vpack.c.bf16 %v620, %v620
        %v627 = vpack.c.bf16 %v621, %v621
        %v628 = vld [vmem:[%s4] sm:$0xff]
        %v629 = vld [vmem:[%s4 + $0x8] sm:$0xff]
        %v630 = vld [vmem:[%s4 + $0x10] sm:$0xff]
        %v631 = vld [vmem:[%s4 + $0x18] sm:$0xff]
        %v632 = vld [vmem:[%s4 + $0x20] sm:$0xff]
        %v633 = vld [vmem:[%s4 + $0x28] sm:$0xff]
        %v634 = vld [vmem:[%s4 + $0x30] sm:$0xff]
        %v635 = vld [vmem:[%s4 + $0x38] sm:$0xff]
        %v636 = vld [vmem:[%s4 + $0x40] sm:$0xff]
        %v637 = vld [vmem:[%s4 + $0x48] sm:$0xff]
        %v638 = vld [vmem:[%s4 + $0x50] sm:$0xff]
        %v639 = vld [vmem:[%s4 + $0x58] sm:$0xff]
        %v640 = vld [vmem:[%s4 + $0x60] sm:$0xff]
        %v641 = vld [vmem:[%s4 + $0x68] sm:$0xff]
        %v642 = vld [vmem:[%s4 + $0x70] sm:$0xff]
        %v643 = vld [vmem:[%s4 + $0x78] sm:$0xff]
        %v644 = vld [vmem:[%s4 + $0x80] sm:$0xff]
        %v645 = vld [vmem:[%s4 + $0x88] sm:$0xff]
        %v646 = vld [vmem:[%s4 + $0x90] sm:$0xff]
        %v647 = vld [vmem:[%s4 + $0x98] sm:$0xff]
        %v648 = vld [vmem:[%s4 + $0xa0] sm:$0xff]
        %v649 = vld [vmem:[%s4 + $0xa8] sm:$0xff]
        %v650 = vld [vmem:[%s4 + $0xb0] sm:$0xff]
        %v651 = vld [vmem:[%s4 + $0xb8] sm:$0xff]
        %v652 = vld [vmem:[%s4 + $0xc0] sm:$0xff]
        %v653 = vld [vmem:[%s4 + $0xc8] sm:$0xff]
        %v654 = vld [vmem:[%s4 + $0xd0] sm:$0xff]
        %v655 = vld [vmem:[%s4 + $0xd8] sm:$0xff]
        %v656 = vld [vmem:[%s4 + $0xe0] sm:$0xff]
        %v657 = vld [vmem:[%s4 + $0xe8] sm:$0xff]
        %v658 = vld [vmem:[%s4 + $0xf0] sm:$0xff]
        %v659 = vld [vmem:[%s4 + $0xf8] sm:$0xff]
        %v660 = vld [vmem:[%s4 + $0x100] sm:$0xff]
        %v661 = vld [vmem:[%s4 + $0x108] sm:$0xff]
        %v662 = vld [vmem:[%s4 + $0x110] sm:$0xff]
        %v663 = vld [vmem:[%s4 + $0x118] sm:$0xff]
        %v664 = vld [vmem:[%s4 + $0x120] sm:$0xff]
        %v665 = vld [vmem:[%s4 + $0x128] sm:$0xff]
        %v666 = vld [vmem:[%s4 + $0x130] sm:$0xff]
        %v667 = vld [vmem:[%s4 + $0x138] sm:$0xff]
        %v668 = vld [vmem:[%s4 + $0x140] sm:$0xff]
        %v669 = vld [vmem:[%s4 + $0x148] sm:$0xff]
        %v670 = vld [vmem:[%s4 + $0x150] sm:$0xff]
        %v671 = vld [vmem:[%s4 + $0x158] sm:$0xff]
        %v672 = vld [vmem:[%s4 + $0x160] sm:$0xff]
        %v673 = vld [vmem:[%s4 + $0x168] sm:$0xff]
        %v674 = vld [vmem:[%s4 + $0x170] sm:$0xff]
        %v675 = vld [vmem:[%s4 + $0x178] sm:$0xff]
        %v676 = vld [vmem:[%s4 + $0x180] sm:$0xff]
        %v677 = vld [vmem:[%s4 + $0x188] sm:$0xff]
        %v678 = vld [vmem:[%s4 + $0x190] sm:$0xff]
        %v679 = vld [vmem:[%s4 + $0x198] sm:$0xff]
        %v680 = vld [vmem:[%s4 + $0x1a0] sm:$0xff]
        %v681 = vld [vmem:[%s4 + $0x1a8] sm:$0xff]
        %v682 = vld [vmem:[%s4 + $0x1b0] sm:$0xff]
        %v683 = vld [vmem:[%s4 + $0x1b8] sm:$0xff]
        %v684 = vld [vmem:[%s4 + $0x1c0] sm:$0xff]
        %v685 = vld [vmem:[%s4 + $0x1c8] sm:$0xff]
        %v686 = vld [vmem:[%s4 + $0x1d0] sm:$0xff]
        %v687 = vld [vmem:[%s4 + $0x1d8] sm:$0xff]
        %v688 = vld [vmem:[%s4 + $0x1e0] sm:$0xff]
        %v689 = vld [vmem:[%s4 + $0x1e8] sm:$0xff]
        %v690 = vld [vmem:[%s4 + $0x1f0] sm:$0xff]
        %v691 = vld [vmem:[%s4 + $0x1f8] sm:$0xff]
        %v692 = vld [vmem:[%s4 + $0x200] sm:$0xff]
        %v693 = vld [vmem:[%s4 + $0x208] sm:$0xff]
        %v694 = vld [vmem:[%s4 + $0x210] sm:$0xff]
        %v695 = vld [vmem:[%s4 + $0x218] sm:$0xff]
        %v696 = vld [vmem:[%s4 + $0x220] sm:$0xff]
        %v697 = vld [vmem:[%s4 + $0x228] sm:$0xff]
        %v698 = vld [vmem:[%s4 + $0x230] sm:$0xff]
        %v699 = vld [vmem:[%s4 + $0x238] sm:$0xff]
        %v700 = vld [vmem:[%s4 + $0x240] sm:$0xff]
        %v701 = vld [vmem:[%s4 + $0x248] sm:$0xff]
        %v702 = vld [vmem:[%s4 + $0x250] sm:$0xff]
        %v703 = vld [vmem:[%s4 + $0x258] sm:$0xff]
        %v704 = vld [vmem:[%s4 + $0x260] sm:$0xff]
        %v705 = vld [vmem:[%s4 + $0x268] sm:$0xff]
        %v706 = vld [vmem:[%s4 + $0x270] sm:$0xff]
        %v707 = vld [vmem:[%s4 + $0x278] sm:$0xff]
        %v708 = vld [vmem:[%s4 + $0x280] sm:$0xff]
        %v709 = vld [vmem:[%s4 + $0x288] sm:$0xff]
        %v710 = vld [vmem:[%s4 + $0x290] sm:$0xff]
        %v711 = vld [vmem:[%s4 + $0x298] sm:$0xff]
        %v712 = vld [vmem:[%s4 + $0x2a0] sm:$0xff]
        %v713 = vld [vmem:[%s4 + $0x2a8] sm:$0xff]
        %v714 = vld [vmem:[%s4 + $0x2b0] sm:$0xff]
        %v715 = vld [vmem:[%s4 + $0x2b8] sm:$0xff]
        %v716 = vld [vmem:[%s4 + $0x2c0] sm:$0xff]
        %v717 = vld [vmem:[%s4 + $0x2c8] sm:$0xff]
        %v718 = vld [vmem:[%s4 + $0x2d0] sm:$0xff]
        %v719 = vld [vmem:[%s4 + $0x2d8] sm:$0xff]
        %v720 = vld [vmem:[%s4 + $0x2e0] sm:$0xff]
        %v721 = vld [vmem:[%s4 + $0x2e8] sm:$0xff]
        %v722 = vld [vmem:[%s4 + $0x2f0] sm:$0xff]
        %v723 = vld [vmem:[%s4 + $0x2f8] sm:$0xff]
        %v724 = vld [vmem:[%s5] sm:$0x3]
        %v726 = vlaneseq
        %v727 = vshrl.u32 %v726, 7
        %v728 = vsub.s32 0, %v727
        %v729 = vrot.slane %v724, %v728
        %v730 = vlaneseq
        %v731 = vshrl.u32 %v730, 7
        %v732 = vsub.s32 1, %v731
        %v733 = vrot.slane %v724, %v732
        %v832 = vunpack.c.l.b16 %v628
        %v833 = vunpack.c.h.b16 %v628
        %v834 = vunpack.c.l.b16 %v629
        %v835 = vunpack.c.h.b16 %v629
        %v836 = vunpack.c.l.b16 %v630
        %v837 = vunpack.c.h.b16 %v630
        %v838 = vunpack.c.l.b16 %v631
        %v839 = vunpack.c.h.b16 %v631
        %v840 = vunpack.c.l.b16 %v632
        %v841 = vunpack.c.h.b16 %v632
        %v842 = vunpack.c.l.b16 %v633
        %v843 = vunpack.c.h.b16 %v633
        %v844 = vunpack.c.l.b16 %v634
        %v845 = vunpack.c.h.b16 %v634
        %v846 = vunpack.c.l.b16 %v635
        %v847 = vunpack.c.h.b16 %v635
        %v848 = vunpack.c.l.b16 %v636
        %v849 = vunpack.c.h.b16 %v636
        %v850 = vunpack.c.l.b16 %v637
        %v851 = vunpack.c.h.b16 %v637
        %v852 = vunpack.c.l.b16 %v638
        %v853 = vunpack.c.h.b16 %v638
        %v854 = vunpack.c.l.b16 %v639
        %v855 = vunpack.c.h.b16 %v639
        %v856 = vunpack.c.l.b16 %v640
        %v857 = vunpack.c.h.b16 %v640
        %v858 = vunpack.c.l.b16 %v641
        %v859 = vunpack.c.h.b16 %v641
        %v860 = vunpack.c.l.b16 %v642
        %v861 = vunpack.c.h.b16 %v642
        %v862 = vunpack.c.l.b16 %v643
        %v863 = vunpack.c.h.b16 %v643
        %v864 = vunpack.c.l.b16 %v644
        %v865 = vunpack.c.h.b16 %v644
        %v866 = vunpack.c.l.b16 %v645
        %v867 = vunpack.c.h.b16 %v645
        %v868 = vunpack.c.l.b16 %v646
        %v869 = vunpack.c.h.b16 %v646
        %v870 = vunpack.c.l.b16 %v647
        %v871 = vunpack.c.h.b16 %v647
        %v872 = vunpack.c.l.b16 %v648
        %v873 = vunpack.c.h.b16 %v648
        %v874 = vunpack.c.l.b16 %v649
        %v875 = vunpack.c.h.b16 %v649
        %v876 = vunpack.c.l.b16 %v650
        %v877 = vunpack.c.h.b16 %v650
        %v878 = vunpack.c.l.b16 %v651
        %v879 = vunpack.c.h.b16 %v651
        %v880 = vunpack.c.l.b16 %v652
        %v881 = vunpack.c.h.b16 %v652
        %v882 = vunpack.c.l.b16 %v653
        %v883 = vunpack.c.h.b16 %v653
        %v884 = vunpack.c.l.b16 %v654
        %v885 = vunpack.c.h.b16 %v654
        %v886 = vunpack.c.l.b16 %v655
        %v887 = vunpack.c.h.b16 %v655
        %v888 = vunpack.c.l.b16 %v656
        %v889 = vunpack.c.h.b16 %v656
        %v890 = vunpack.c.l.b16 %v657
        %v891 = vunpack.c.h.b16 %v657
        %v892 = vunpack.c.l.b16 %v658
        %v893 = vunpack.c.h.b16 %v658
        %v894 = vunpack.c.l.b16 %v659
        %v895 = vunpack.c.h.b16 %v659
        %v896 = vunpack.c.l.b16 %v660
        %v897 = vunpack.c.h.b16 %v660
        %v898 = vunpack.c.l.b16 %v661
        %v899 = vunpack.c.h.b16 %v661
        %v900 = vunpack.c.l.b16 %v662
        %v901 = vunpack.c.h.b16 %v662
        %v902 = vunpack.c.l.b16 %v663
        %v903 = vunpack.c.h.b16 %v663
        %v904 = vunpack.c.l.b16 %v664
        %v905 = vunpack.c.h.b16 %v664
        %v906 = vunpack.c.l.b16 %v665
        %v907 = vunpack.c.h.b16 %v665
        %v908 = vunpack.c.l.b16 %v666
        %v909 = vunpack.c.h.b16 %v666
        %v910 = vunpack.c.l.b16 %v667
        %v911 = vunpack.c.h.b16 %v667
        %v912 = vunpack.c.l.b16 %v668
        %v913 = vunpack.c.h.b16 %v668
        %v914 = vunpack.c.l.b16 %v669
        %v915 = vunpack.c.h.b16 %v669
        %v916 = vunpack.c.l.b16 %v670
        %v917 = vunpack.c.h.b16 %v670
        %v918 = vunpack.c.l.b16 %v671
        %v919 = vunpack.c.h.b16 %v671
        %v920 = vunpack.c.l.b16 %v672
        %v921 = vunpack.c.h.b16 %v672
        %v922 = vunpack.c.l.b16 %v673
        %v923 = vunpack.c.h.b16 %v673
        %v924 = vunpack.c.l.b16 %v674
        %v925 = vunpack.c.h.b16 %v674
        %v926 = vunpack.c.l.b16 %v675
        %v927 = vunpack.c.h.b16 %v675
        %v928 = vunpack.c.l.b16 %v676
        %v929 = vunpack.c.h.b16 %v676
        %v930 = vunpack.c.l.b16 %v677
        %v931 = vunpack.c.h.b16 %v677
        %v932 = vunpack.c.l.b16 %v678
        %v933 = vunpack.c.h.b16 %v678
        %v934 = vunpack.c.l.b16 %v679
        %v935 = vunpack.c.h.b16 %v679
        %v936 = vunpack.c.l.b16 %v680
        %v937 = vunpack.c.h.b16 %v680
        %v938 = vunpack.c.l.b16 %v681
        %v939 = vunpack.c.h.b16 %v681
        %v940 = vunpack.c.l.b16 %v682
        %v941 = vunpack.c.h.b16 %v682
        %v942 = vunpack.c.l.b16 %v683
        %v943 = vunpack.c.h.b16 %v683
        %v944 = vunpack.c.l.b16 %v684
        %v945 = vunpack.c.h.b16 %v684
        %v946 = vunpack.c.l.b16 %v685
        %v947 = vunpack.c.h.b16 %v685
        %v948 = vunpack.c.l.b16 %v686
        %v949 = vunpack.c.h.b16 %v686
        %v950 = vunpack.c.l.b16 %v687
        %v951 = vunpack.c.h.b16 %v687
        %v952 = vunpack.c.l.b16 %v688
        %v953 = vunpack.c.h.b16 %v688
        %v954 = vunpack.c.l.b16 %v689
        %v955 = vunpack.c.h.b16 %v689
        %v956 = vunpack.c.l.b16 %v690
        %v957 = vunpack.c.h.b16 %v690
        %v958 = vunpack.c.l.b16 %v691
        %v959 = vunpack.c.h.b16 %v691
        %v960 = vunpack.c.l.b16 %v692
        %v961 = vunpack.c.h.b16 %v692
        %v962 = vunpack.c.l.b16 %v693
        %v963 = vunpack.c.h.b16 %v693
        %v964 = vunpack.c.l.b16 %v694
        %v965 = vunpack.c.h.b16 %v694
        %v966 = vunpack.c.l.b16 %v695
        %v967 = vunpack.c.h.b16 %v695
        %v968 = vunpack.c.l.b16 %v696
        %v969 = vunpack.c.h.b16 %v696
        %v970 = vunpack.c.l.b16 %v697
        %v971 = vunpack.c.h.b16 %v697
        %v972 = vunpack.c.l.b16 %v698
        %v973 = vunpack.c.h.b16 %v698
        %v974 = vunpack.c.l.b16 %v699
        %v975 = vunpack.c.h.b16 %v699
        %v976 = vunpack.c.l.b16 %v700
        %v977 = vunpack.c.h.b16 %v700
        %v978 = vunpack.c.l.b16 %v701
        %v979 = vunpack.c.h.b16 %v701
        %v980 = vunpack.c.l.b16 %v702
        %v981 = vunpack.c.h.b16 %v702
        %v982 = vunpack.c.l.b16 %v703
        %v983 = vunpack.c.h.b16 %v703
        %v984 = vunpack.c.l.b16 %v704
        %v985 = vunpack.c.h.b16 %v704
        %v986 = vunpack.c.l.b16 %v705
        %v987 = vunpack.c.h.b16 %v705
        %v988 = vunpack.c.l.b16 %v706
        %v989 = vunpack.c.h.b16 %v706
        %v990 = vunpack.c.l.b16 %v707
        %v991 = vunpack.c.h.b16 %v707
        %v992 = vunpack.c.l.b16 %v708
        %v993 = vunpack.c.h.b16 %v708
        %v994 = vunpack.c.l.b16 %v709
        %v995 = vunpack.c.h.b16 %v709
        %v996 = vunpack.c.l.b16 %v710
        %v997 = vunpack.c.h.b16 %v710
        %v998 = vunpack.c.l.b16 %v711
        %v999 = vunpack.c.h.b16 %v711
        %v1000 = vunpack.c.l.b16 %v712
        %v1001 = vunpack.c.h.b16 %v712
        %v1002 = vunpack.c.l.b16 %v713
        %v1003 = vunpack.c.h.b16 %v713
        %v1004 = vunpack.c.l.b16 %v714
        %v1005 = vunpack.c.h.b16 %v714
        %v1006 = vunpack.c.l.b16 %v715
        %v1007 = vunpack.c.h.b16 %v715
        %v1008 = vunpack.c.l.b16 %v716
        %v1009 = vunpack.c.h.b16 %v716
        %v1010 = vunpack.c.l.b16 %v717
        %v1011 = vunpack.c.h.b16 %v717
        %v1012 = vunpack.c.l.b16 %v718
        %v1013 = vunpack.c.h.b16 %v718
        %v1014 = vunpack.c.l.b16 %v719
        %v1015 = vunpack.c.h.b16 %v719
        %v1016 = vunpack.c.l.b16 %v720
        %v1017 = vunpack.c.h.b16 %v720
        %v1018 = vunpack.c.l.b16 %v721
        %v1019 = vunpack.c.h.b16 %v721
        %v1020 = vunpack.c.l.b16 %v722
        %v1021 = vunpack.c.h.b16 %v722
        %v1022 = vunpack.c.l.b16 %v723
        %v1023 = vunpack.c.h.b16 %v723
        %v1024 = vpack.c.b16 %v834, %v832
        %v1025 = vpack.c.b16 %v835, %v833
        %v1026 = vpack.c.b16 %v838, %v836
        %v1027 = vpack.c.b16 %v839, %v837
        %v1028 = vpack.c.b16 %v842, %v840
        %v1029 = vpack.c.b16 %v843, %v841
        %v1030 = vpack.c.b16 %v846, %v844
        %v1031 = vpack.c.b16 %v847, %v845
        %v1032 = vpack.c.b16 %v850, %v848
        %v1033 = vpack.c.b16 %v851, %v849
        %v1034 = vpack.c.b16 %v854, %v852
        %v1035 = vpack.c.b16 %v855, %v853
        %v1036 = vpack.c.b16 %v858, %v856
        %v1037 = vpack.c.b16 %v859, %v857
        %v1038 = vpack.c.b16 %v862, %v860
        %v1039 = vpack.c.b16 %v863, %v861
        %v1040 = vpack.c.b16 %v866, %v864
        %v1041 = vpack.c.b16 %v867, %v865
        %v1042 = vpack.c.b16 %v870, %v868
        %v1043 = vpack.c.b16 %v871, %v869
        %v1044 = vpack.c.b16 %v874, %v872
        %v1045 = vpack.c.b16 %v875, %v873
        %v1046 = vpack.c.b16 %v878, %v876
        %v1047 = vpack.c.b16 %v879, %v877
        %v1048 = vpack.c.b16 %v882, %v880
        %v1049 = vpack.c.b16 %v883, %v881
        %v1050 = vpack.c.b16 %v886, %v884
        %v1051 = vpack.c.b16 %v887, %v885
        %v1052 = vpack.c.b16 %v890, %v888
        %v1053 = vpack.c.b16 %v891, %v889
        %v1054 = vpack.c.b16 %v894, %v892
        %v1055 = vpack.c.b16 %v895, %v893
        %v1056 = vpack.c.b16 %v898, %v896
        %v1057 = vpack.c.b16 %v899, %v897
        %v1058 = vpack.c.b16 %v902, %v900
        %v1059 = vpack.c.b16 %v903, %v901
        %v1060 = vpack.c.b16 %v906, %v904
        %v1061 = vpack.c.b16 %v907, %v905
        %v1062 = vpack.c.b16 %v910, %v908
        %v1063 = vpack.c.b16 %v911, %v909
        %v1064 = vpack.c.b16 %v914, %v912
        %v1065 = vpack.c.b16 %v915, %v913
        %v1066 = vpack.c.b16 %v918, %v916
        %v1067 = vpack.c.b16 %v919, %v917
        %v1068 = vpack.c.b16 %v922, %v920
        %v1069 = vpack.c.b16 %v923, %v921
        %v1070 = vpack.c.b16 %v926, %v924
        %v1071 = vpack.c.b16 %v927, %v925
        %v1072 = vpack.c.b16 %v930, %v928
        %v1073 = vpack.c.b16 %v931, %v929
        %v1074 = vpack.c.b16 %v934, %v932
        %v1075 = vpack.c.b16 %v935, %v933
        %v1076 = vpack.c.b16 %v938, %v936
        %v1077 = vpack.c.b16 %v939, %v937
        %v1078 = vpack.c.b16 %v942, %v940
        %v1079 = vpack.c.b16 %v943, %v941
        %v1080 = vpack.c.b16 %v946, %v944
        %v1081 = vpack.c.b16 %v947, %v945
        %v1082 = vpack.c.b16 %v950, %v948
        %v1083 = vpack.c.b16 %v951, %v949
        %v1084 = vpack.c.b16 %v954, %v952
        %v1085 = vpack.c.b16 %v955, %v953
        %v1086 = vpack.c.b16 %v958, %v956
        %v1087 = vpack.c.b16 %v959, %v957
        %v1088 = vpack.c.b16 %v962, %v960
        %v1089 = vpack.c.b16 %v963, %v961
        %v1090 = vpack.c.b16 %v966, %v964
        %v1091 = vpack.c.b16 %v967, %v965
        %v1092 = vpack.c.b16 %v970, %v968
        %v1093 = vpack.c.b16 %v971, %v969
        %v1094 = vpack.c.b16 %v974, %v972
        %v1095 = vpack.c.b16 %v975, %v973
        %v1096 = vpack.c.b16 %v978, %v976
        %v1097 = vpack.c.b16 %v979, %v977
        %v1098 = vpack.c.b16 %v982, %v980
        %v1099 = vpack.c.b16 %v983, %v981
        %v1100 = vpack.c.b16 %v986, %v984
        %v1101 = vpack.c.b16 %v987, %v985
        %v1102 = vpack.c.b16 %v990, %v988
        %v1103 = vpack.c.b16 %v991, %v989
        %v1104 = vpack.c.b16 %v994, %v992
        %v1105 = vpack.c.b16 %v995, %v993
        %v1106 = vpack.c.b16 %v998, %v996
        %v1107 = vpack.c.b16 %v999, %v997
        %v1108 = vpack.c.b16 %v1002, %v1000
        %v1109 = vpack.c.b16 %v1003, %v1001
        %v1110 = vpack.c.b16 %v1006, %v1004
        %v1111 = vpack.c.b16 %v1007, %v1005
        %v1112 = vpack.c.b16 %v1010, %v1008
        %v1113 = vpack.c.b16 %v1011, %v1009
        %v1114 = vpack.c.b16 %v1014, %v1012
        %v1115 = vpack.c.b16 %v1015, %v1013
        %v1116 = vpack.c.b16 %v1018, %v1016
        %v1117 = vpack.c.b16 %v1019, %v1017
        %v1118 = vpack.c.b16 %v1022, %v1020
        %v1119 = vpack.c.b16 %v1023, %v1021
        %1216 = vmatprep.subr.bf16.mxu0 %v1025
        %1217 = vmatpush1.bf16.msra.mxu0 %v1024
        %1218 = vmatprep.subr.bf16.mxu0 %v1027
        %1219 = vmatpush1.bf16.msra.mxu0 %v1026
        %1220 = vmatprep.subr.bf16.mxu0 %v1029
        %1221 = vmatpush1.bf16.msra.mxu0 %v1028
        %1222 = vmatprep.subr.bf16.mxu0 %v1031
        %1223 = vmatpush1.bf16.msra.mxu0 %v1030
        %1224 = vmatprep.subr.bf16.mxu0 %v1033
        %1225 = vmatpush1.bf16.msra.mxu0 %v1032
        %1226 = vmatprep.subr.bf16.mxu0 %v1035
        %1227 = vmatpush1.bf16.msra.mxu0 %v1034
        %1228 = vmatprep.subr.bf16.mxu0 %v1037
        %1229 = vmatpush1.bf16.msra.mxu0 %v1036
        %1230 = vmatprep.subr.bf16.mxu0 %v1039
        %1231 = vmatpush1.bf16.msra.mxu0 %v1038
        %1232 = vmatprep.subr.bf16.mxu0 %v1041
        %1233 = vmatpush1.bf16.msra.mxu0 %v1040
        %1234 = vmatprep.subr.bf16.mxu0 %v1043
        %1235 = vmatpush1.bf16.msra.mxu0 %v1042
        %1236 = vmatprep.subr.bf16.mxu0 %v1045
        %1237 = vmatpush1.bf16.msra.mxu0 %v1044
        %1238 = vmatprep.subr.bf16.mxu0 %v1047
        %1239 = vmatpush1.bf16.msra.mxu0 %v1046
        %1240 = vmatprep.subr.bf16.mxu0 %v1049
        %1241 = vmatpush1.bf16.msra.mxu0 %v1048
        %1242 = vmatprep.subr.bf16.mxu0 %v1051
        %1243 = vmatpush1.bf16.msra.mxu0 %v1050
        %1244 = vmatprep.subr.bf16.mxu0 %v1053
        %1245 = vmatpush1.bf16.msra.mxu0 %v1052
        %1246 = vmatprep.subr.bf16.mxu0 %v1055
        %1247 = vmatpush1.bf16.msra.mxu0 %v1054
        %1248 = vmatprep.mubr.bf16.mxu0 %v623
        %1249 = vmatmul.mubr.bf16.gmra.mrb[0].mxu0 %v622
        %v1250 = vpop.f32.mrb[0].mxu0
        %v1251 = vadd.f32 %v729, %v1250
        %v1252 = vpop.f32.mrb[0].mxu0
        %v1253 = vadd.f32 %v733, %v1252
        %v1254 = vpop.f32.mrb[0].mxu0
        %v1255 = vpop.f32.mrb[0].mxu0
        %1256 = vdwg.mxu0
        %1257 = vmatprep.subr.bf16.mxu0 %v1057
        %1258 = vmatpush1.bf16.msra.mxu0 %v1056
        %1259 = vmatprep.subr.bf16.mxu0 %v1059
        %1260 = vmatpush1.bf16.msra.mxu0 %v1058
        %1261 = vmatprep.subr.bf16.mxu0 %v1061
        %1262 = vmatpush1.bf16.msra.mxu0 %v1060
        %1263 = vmatprep.subr.bf16.mxu0 %v1063
        %1264 = vmatpush1.bf16.msra.mxu0 %v1062
        %1265 = vmatprep.subr.bf16.mxu0 %v1065
        %1266 = vmatpush1.bf16.msra.mxu0 %v1064
        %1267 = vmatprep.subr.bf16.mxu0 %v1067
        %1268 = vmatpush1.bf16.msra.mxu0 %v1066
        %1269 = vmatprep.subr.bf16.mxu0 %v1069
        %1270 = vmatpush1.bf16.msra.mxu0 %v1068
        %1271 = vmatprep.subr.bf16.mxu0 %v1071
        %1272 = vmatpush1.bf16.msra.mxu0 %v1070
        %1273 = vmatprep.subr.bf16.mxu0 %v1073
        %1274 = vmatpush1.bf16.msra.mxu0 %v1072
        %1275 = vmatprep.subr.bf16.mxu0 %v1075
        %1276 = vmatpush1.bf16.msra.mxu0 %v1074
        %1277 = vmatprep.subr.bf16.mxu0 %v1077
        %1278 = vmatpush1.bf16.msra.mxu0 %v1076
        %1279 = vmatprep.subr.bf16.mxu0 %v1079
        %1280 = vmatpush1.bf16.msra.mxu0 %v1078
        %1281 = vmatprep.subr.bf16.mxu0 %v1081
        %1282 = vmatpush1.bf16.msra.mxu0 %v1080
        %1283 = vmatprep.subr.bf16.mxu0 %v1083
        %1284 = vmatpush1.bf16.msra.mxu0 %v1082
        %1285 = vmatprep.subr.bf16.mxu0 %v1085
        %1286 = vmatpush1.bf16.msra.mxu0 %v1084
        %1287 = vmatprep.subr.bf16.mxu0 %v1087
        %1288 = vmatpush1.bf16.msra.mxu0 %v1086
        %1289 = vmatprep.mubr.bf16.mxu0 %v625
        %1290 = vmatmul.mubr.bf16.gmra.mrb[0].mxu0 %v624
        %v1291 = vpop.f32.mrb[0].mxu0
        %v1292 = vadd.f32 %v1251, %v1291
        %v1293 = vpop.f32.mrb[0].mxu0
        %v1294 = vadd.f32 %v1253, %v1293
        %v1295 = vpop.f32.mrb[0].mxu0
        %v1296 = vpop.f32.mrb[0].mxu0
        %1297 = vdwg.mxu0
        %1298 = vmatprep.subr.bf16.mxu0 %v1089
        %1299 = vmatpush1.bf16.msra.mxu0 %v1088
        %1300 = vmatprep.subr.bf16.mxu0 %v1091
        %1301 = vmatpush1.bf16.msra.mxu0 %v1090
        %1302 = vmatprep.subr.bf16.mxu0 %v1093
        %1303 = vmatpush1.bf16.msra.mxu0 %v1092
        %1304 = vmatprep.subr.bf16.mxu0 %v1095
        %1305 = vmatpush1.bf16.msra.mxu0 %v1094
        %1306 = vmatprep.subr.bf16.mxu0 %v1097
        %1307 = vmatpush1.bf16.msra.mxu0 %v1096
        %1308 = vmatprep.subr.bf16.mxu0 %v1099
        %1309 = vmatpush1.bf16.msra.mxu0 %v1098
        %1310 = vmatprep.subr.bf16.mxu0 %v1101
        %1311 = vmatpush1.bf16.msra.mxu0 %v1100
        %1312 = vmatprep.subr.bf16.mxu0 %v1103
        %1313 = vmatpush1.bf16.msra.mxu0 %v1102
        %1314 = vmatprep.subr.bf16.mxu0 %v1105
        %1315 = vmatpush1.bf16.msra.mxu0 %v1104
        %1316 = vmatprep.subr.bf16.mxu0 %v1107
        %1317 = vmatpush1.bf16.msra.mxu0 %v1106
        %1318 = vmatprep.subr.bf16.mxu0 %v1109
        %1319 = vmatpush1.bf16.msra.mxu0 %v1108
        %1320 = vmatprep.subr.bf16.mxu0 %v1111
        %1321 = vmatpush1.bf16.msra.mxu0 %v1110
        %1322 = vmatprep.subr.bf16.mxu0 %v1113
        %1323 = vmatpush1.bf16.msra.mxu0 %v1112
        %1324 = vmatprep.subr.bf16.mxu0 %v1115
        %1325 = vmatpush1.bf16.msra.mxu0 %v1114
        %1326 = vmatprep.subr.bf16.mxu0 %v1117
        %1327 = vmatpush1.bf16.msra.mxu0 %v1116
        %1328 = vmatprep.subr.bf16.mxu0 %v1119
        %1329 = vmatpush1.bf16.msra.mxu0 %v1118
        %1330 = vmatprep.mubr.bf16.mxu0 %v627
        %1331 = vmatmul.mubr.bf16.gmra.mrb[0].mxu0 %v626
        %v1332 = vpop.f32.mrb[0].mxu0
        %v1333 = vadd.f32 %v1292, %v1332
        %v1334 = vpop.f32.mrb[0].mxu0
        %v1335 = vadd.f32 %v1294, %v1334
        %v1336 = vpop.f32.mrb[0].mxu0
        %v1337 = vpop.f32.mrb[0].mxu0
        %1338 = vdwg.mxu0
        %v1339 = vmax.f32 %v1333, 0.0
        %v1340 = vpack.c.bf16 %v1339, %v1339
        %v1341 = vmul.f32 %v1335, 0.5
        %v1342 = vtanh.pop %v1341
        %v1343 = vmul.f32 %v1342, 0.5
        %v1344 = vadd.f32 %v1343, 0.5
        %vm1345 = vcmask 24576
        %1346 = vst.msk [vmem:[%s593] sm:$0x1] %vm1345, %v1344
        %v1347 = vld [vmem:[%s10] sm:$0x1]
        %1348 = vmatprep.subr.bf16.mxu0 0
        %1349 = vmatpush1.bf16.xpose.msra.mxu0 %v1340
        %1350 = vmatprep.subr.bf16.mxu0 0
        %1351 = vmatpush1.bf16.xpose.msra.mxu0 0
        %1352 = vmatprep.subr.bf16.mxu0 0
        %1353 = vmatpush1.bf16.xpose.msra.mxu0 0
        %1354 = vmatprep.subr.bf16.mxu0 0
        %1355 = vmatpush1.bf16.xpose.msra.mxu0 0
        %1356 = vmatprep.subr.bf16.mxu0 0
        %1357 = vmatpush1.bf16.xpose.msra.mxu0 0
        %1358 = vmatprep.subr.bf16.mxu0 0
        %1359 = vmatpush1.bf16.xpose.msra.mxu0 0
        %1360 = vmatprep.subr.bf16.mxu0 0
        %1361 = vmatpush1.bf16.xpose.msra.mxu0 0
        %1362 = vmatprep.subr.bf16.mxu0 0
        %1363 = vmatpush1.bf16.xpose.msra.mxu0 0
        %1364 = vmatprep.subr.bf16.mxu0 0
        %1365 = vmatpush1.bf16.xpose.msra.mxu0 0
        %1366 = vmatprep.subr.bf16.mxu0 0
        %1367 = vmatpush1.bf16.xpose.msra.mxu0 0
        %1368 = vmatprep.subr.bf16.mxu0 0
        %1369 = vmatpush1.bf16.xpose.msra.mxu0 0
        %1370 = vmatprep.subr.bf16.mxu0 0
        %1371 = vmatpush1.bf16.xpose.msra.mxu0 0
        %1372 = vmatprep.subr.bf16.mxu0 0
        %1373 = vmatpush1.bf16.xpose.msra.mxu0 0
        %1374 = vmatprep.subr.bf16.mxu0 0
        %1375 = vmatpush1.bf16.xpose.msra.mxu0 0
        %1376 = vmatprep.subr.bf16.mxu0 0
        %1377 = vmatpush1.bf16.xpose.msra.mxu0 0
        %1378 = vmatprep.subr.bf16.mxu0 0
        %1379 = vmatpush1.bf16.xpose.msra.mxu0 0
        %1380 = vmatprep.mubr.bf16.mxu0 0
        %1381 = vmatmul.mubr.bf16.gmra.mrb[0].mxu0 %v1347
        %v1382 = vpop.f32.mrb[0].mxu0
        %v1383 = vadd.f32 0.0, %v1382
        %v1384 = vpop.f32.mrb[0].mxu0
        %v1385 = vpop.f32.mrb[0].mxu0
        %v1386 = vpop.f32.mrb[0].mxu0
        %1387 = vdwg.mxu0
        %s1388 = sshra.s32 %s615, 3
        %s1389 = sand.u32 %s615, 7
        %s1390 = smul.u32 %s1388, 6
        %s1391 = smul.addr %s1390, 8
        %s1392 = scalar_lea.vmem %s605, %s1391
        %v1393 = vld [vmem:[%s1392] sm:$0xff]
        %v1394 = vld [vmem:[%s1392 + $0x8] sm:$0xff]
        %v1395 = vld [vmem:[%s1392 + $0x10] sm:$0xff]
        %v1396 = vld [vmem:[%s1392 + $0x18] sm:$0xff]
        %v1397 = vld [vmem:[%s1392 + $0x20] sm:$0xff]
        %v1398 = vld [vmem:[%s1392 + $0x28] sm:$0xff]
        %v1399 = vpack.c.bf16 %v1393, %v1393
        %v1400 = vpack.c.bf16 %v1394, %v1394
        %v1401 = vpack.c.bf16 %v1395, %v1395
        %v1402 = vpack.c.bf16 %v1396, %v1396
        %v1403 = vpack.c.bf16 %v1397, %v1397
        %v1404 = vpack.c.bf16 %v1398, %v1398
        %v1405 = vld [vmem:[%s2] sm:$0xff]
        %v1406 = vld [vmem:[%s2 + $0x8] sm:$0xf]
        %v1407 = vld [vmem:[%s2 + $0xc] sm:$0xff]
        %v1408 = vld [vmem:[%s2 + $0x14] sm:$0xf]
        %v1409 = vld [vmem:[%s2 + $0x18] sm:$0xff]
        %v1410 = vld [vmem:[%s2 + $0x20] sm:$0xf]
        %v1411 = vld [vmem:[%s2 + $0x24] sm:$0xff]
        %v1412 = vld [vmem:[%s2 + $0x2c] sm:$0xf]
        %v1413 = vld [vmem:[%s2 + $0x30] sm:$0xff]
        %v1414 = vld [vmem:[%s2 + $0x38] sm:$0xf]
        %v1415 = vld [vmem:[%s2 + $0x3c] sm:$0xff]
        %v1416 = vld [vmem:[%s2 + $0x44] sm:$0xf]
        %v1417 = vld [vmem:[%s2 + $0x48] sm:$0xff]
        %v1418 = vld [vmem:[%s2 + $0x50] sm:$0xf]
        %v1419 = vld [vmem:[%s2 + $0x54] sm:$0xff]
        %v1420 = vld [vmem:[%s2 + $0x5c] sm:$0xf]
        %v1421 = vld [vmem:[%s2 + $0x60] sm:$0xff]
        %v1422 = vld [vmem:[%s2 + $0x68] sm:$0xf]
        %v1423 = vld [vmem:[%s2 + $0x6c] sm:$0xff]
        %v1424 = vld [vmem:[%s2 + $0x74] sm:$0xf]
        %v1425 = vld [vmem:[%s2 + $0x78] sm:$0xff]
        %v1426 = vld [vmem:[%s2 + $0x80] sm:$0xf]
        %v1427 = vld [vmem:[%s2 + $0x84] sm:$0xff]
        %v1428 = vld [vmem:[%s2 + $0x8c] sm:$0xf]
        %v1429 = vld [vmem:[%s2 + $0x90] sm:$0xff]
        %v1430 = vld [vmem:[%s2 + $0x98] sm:$0xf]
        %v1431 = vld [vmem:[%s2 + $0x9c] sm:$0xff]
        %v1432 = vld [vmem:[%s2 + $0xa4] sm:$0xf]
        %v1433 = vld [vmem:[%s2 + $0xa8] sm:$0xff]
        %v1434 = vld [vmem:[%s2 + $0xb0] sm:$0xf]
        %v1435 = vld [vmem:[%s2 + $0xb4] sm:$0xff]
        %v1436 = vld [vmem:[%s2 + $0xbc] sm:$0xf]
        %v1437 = vld [vmem:[%s2 + $0xc0] sm:$0xff]
        %v1438 = vld [vmem:[%s2 + $0xc8] sm:$0xf]
        %v1439 = vld [vmem:[%s2 + $0xcc] sm:$0xff]
        %v1440 = vld [vmem:[%s2 + $0xd4] sm:$0xf]
        %v1441 = vld [vmem:[%s2 + $0xd8] sm:$0xff]
        %v1442 = vld [vmem:[%s2 + $0xe0] sm:$0xf]
        %v1443 = vld [vmem:[%s2 + $0xe4] sm:$0xff]
        %v1444 = vld [vmem:[%s2 + $0xec] sm:$0xf]
        %v1445 = vld [vmem:[%s2 + $0xf0] sm:$0xff]
        %v1446 = vld [vmem:[%s2 + $0xf8] sm:$0xf]
        %v1447 = vld [vmem:[%s2 + $0xfc] sm:$0xff]
        %v1448 = vld [vmem:[%s2 + $0x104] sm:$0xf]
        %v1449 = vld [vmem:[%s2 + $0x108] sm:$0xff]
        %v1450 = vld [vmem:[%s2 + $0x110] sm:$0xf]
        %v1451 = vld [vmem:[%s2 + $0x114] sm:$0xff]
        %v1452 = vld [vmem:[%s2 + $0x11c] sm:$0xf]
        %v1453 = vld [vmem:[%s2 + $0x120] sm:$0xff]
        %v1454 = vld [vmem:[%s2 + $0x128] sm:$0xf]
        %v1455 = vld [vmem:[%s2 + $0x12c] sm:$0xff]
        %v1456 = vld [vmem:[%s2 + $0x134] sm:$0xf]
        %v1457 = vld [vmem:[%s2 + $0x138] sm:$0xff]
        %v1458 = vld [vmem:[%s2 + $0x140] sm:$0xf]
        %v1459 = vld [vmem:[%s2 + $0x144] sm:$0xff]
        %v1460 = vld [vmem:[%s2 + $0x14c] sm:$0xf]
        %v1461 = vld [vmem:[%s2 + $0x150] sm:$0xff]
        %v1462 = vld [vmem:[%s2 + $0x158] sm:$0xf]
        %v1463 = vld [vmem:[%s2 + $0x15c] sm:$0xff]
        %v1464 = vld [vmem:[%s2 + $0x164] sm:$0xf]
        %v1465 = vld [vmem:[%s2 + $0x168] sm:$0xff]
        %v1466 = vld [vmem:[%s2 + $0x170] sm:$0xf]
        %v1467 = vld [vmem:[%s2 + $0x174] sm:$0xff]
        %v1468 = vld [vmem:[%s2 + $0x17c] sm:$0xf]
        %v1469 = vld [vmem:[%s2 + $0x180] sm:$0xff]
        %v1470 = vld [vmem:[%s2 + $0x188] sm:$0xf]
        %v1471 = vld [vmem:[%s2 + $0x18c] sm:$0xff]
        %v1472 = vld [vmem:[%s2 + $0x194] sm:$0xf]
        %v1473 = vld [vmem:[%s2 + $0x198] sm:$0xff]
        %v1474 = vld [vmem:[%s2 + $0x1a0] sm:$0xf]
        %v1475 = vld [vmem:[%s2 + $0x1a4] sm:$0xff]
        %v1476 = vld [vmem:[%s2 + $0x1ac] sm:$0xf]
        %v1477 = vld [vmem:[%s2 + $0x1b0] sm:$0xff]
        %v1478 = vld [vmem:[%s2 + $0x1b8] sm:$0xf]
        %v1479 = vld [vmem:[%s2 + $0x1bc] sm:$0xff]
        %v1480 = vld [vmem:[%s2 + $0x1c4] sm:$0xf]
        %v1481 = vld [vmem:[%s2 + $0x1c8] sm:$0xff]
        %v1482 = vld [vmem:[%s2 + $0x1d0] sm:$0xf]
        %v1483 = vld [vmem:[%s2 + $0x1d4] sm:$0xff]
        %v1484 = vld [vmem:[%s2 + $0x1dc] sm:$0xf]
        %v1485 = vld [vmem:[%s2 + $0x1e0] sm:$0xff]
        %v1486 = vld [vmem:[%s2 + $0x1e8] sm:$0xf]
        %v1487 = vld [vmem:[%s2 + $0x1ec] sm:$0xff]
        %v1488 = vld [vmem:[%s2 + $0x1f4] sm:$0xf]
        %v1489 = vld [vmem:[%s2 + $0x1f8] sm:$0xff]
        %v1490 = vld [vmem:[%s2 + $0x200] sm:$0xf]
        %v1491 = vld [vmem:[%s2 + $0x204] sm:$0xff]
        %v1492 = vld [vmem:[%s2 + $0x20c] sm:$0xf]
        %v1493 = vld [vmem:[%s2 + $0x210] sm:$0xff]
        %v1494 = vld [vmem:[%s2 + $0x218] sm:$0xf]
        %v1495 = vld [vmem:[%s2 + $0x21c] sm:$0xff]
        %v1496 = vld [vmem:[%s2 + $0x224] sm:$0xf]
        %v1497 = vld [vmem:[%s2 + $0x228] sm:$0xff]
        %v1498 = vld [vmem:[%s2 + $0x230] sm:$0xf]
        %v1499 = vld [vmem:[%s2 + $0x234] sm:$0xff]
        %v1500 = vld [vmem:[%s2 + $0x23c] sm:$0xf]
        %v1501 = vld [vmem:[%s2 + $0x240] sm:$0xff]
        %v1502 = vld [vmem:[%s2 + $0x248] sm:$0xf]
        %v1503 = vld [vmem:[%s2 + $0x24c] sm:$0xff]
        %v1504 = vld [vmem:[%s2 + $0x254] sm:$0xf]
        %v1505 = vld [vmem:[%s2 + $0x258] sm:$0xff]
        %v1506 = vld [vmem:[%s2 + $0x260] sm:$0xf]
        %v1507 = vld [vmem:[%s2 + $0x264] sm:$0xff]
        %v1508 = vld [vmem:[%s2 + $0x26c] sm:$0xf]
        %v1509 = vld [vmem:[%s2 + $0x270] sm:$0xff]
        %v1510 = vld [vmem:[%s2 + $0x278] sm:$0xf]
        %v1511 = vld [vmem:[%s2 + $0x27c] sm:$0xff]
        %v1512 = vld [vmem:[%s2 + $0x284] sm:$0xf]
        %v1513 = vld [vmem:[%s2 + $0x288] sm:$0xff]
        %v1514 = vld [vmem:[%s2 + $0x290] sm:$0xf]
        %v1515 = vld [vmem:[%s2 + $0x294] sm:$0xff]
        %v1516 = vld [vmem:[%s2 + $0x29c] sm:$0xf]
        %v1517 = vld [vmem:[%s2 + $0x2a0] sm:$0xff]
        %v1518 = vld [vmem:[%s2 + $0x2a8] sm:$0xf]
        %v1519 = vld [vmem:[%s2 + $0x2ac] sm:$0xff]
        %v1520 = vld [vmem:[%s2 + $0x2b4] sm:$0xf]
        %v1521 = vld [vmem:[%s2 + $0x2b8] sm:$0xff]
        %v1522 = vld [vmem:[%s2 + $0x2c0] sm:$0xf]
        %v1523 = vld [vmem:[%s2 + $0x2c4] sm:$0xff]
        %v1524 = vld [vmem:[%s2 + $0x2cc] sm:$0xf]
        %v1525 = vld [vmem:[%s2 + $0x2d0] sm:$0xff]
        %v1526 = vld [vmem:[%s2 + $0x2d8] sm:$0xf]
        %v1527 = vld [vmem:[%s2 + $0x2dc] sm:$0xff]
        %v1528 = vld [vmem:[%s2 + $0x2e4] sm:$0xf]
        %v1529 = vld [vmem:[%s2 + $0x2e8] sm:$0xff]
        %v1530 = vld [vmem:[%s2 + $0x2f0] sm:$0xf]
        %v1531 = vld [vmem:[%s2 + $0x2f4] sm:$0xff]
        %v1532 = vld [vmem:[%s2 + $0x2fc] sm:$0xf]
        %v1533 = vld [vmem:[%s2 + $0x300] sm:$0xff]
        %v1534 = vld [vmem:[%s2 + $0x308] sm:$0xf]
        %v1535 = vld [vmem:[%s2 + $0x30c] sm:$0xff]
        %v1536 = vld [vmem:[%s2 + $0x314] sm:$0xf]
        %v1537 = vld [vmem:[%s2 + $0x318] sm:$0xff]
        %v1538 = vld [vmem:[%s2 + $0x320] sm:$0xf]
        %v1539 = vld [vmem:[%s2 + $0x324] sm:$0xff]
        %v1540 = vld [vmem:[%s2 + $0x32c] sm:$0xf]
        %v1541 = vld [vmem:[%s2 + $0x330] sm:$0xff]
        %v1542 = vld [vmem:[%s2 + $0x338] sm:$0xf]
        %v1543 = vld [vmem:[%s2 + $0x33c] sm:$0xff]
        %v1544 = vld [vmem:[%s2 + $0x344] sm:$0xf]
        %v1545 = vld [vmem:[%s2 + $0x348] sm:$0xff]
        %v1546 = vld [vmem:[%s2 + $0x350] sm:$0xf]
        %v1547 = vld [vmem:[%s2 + $0x354] sm:$0xff]
        %v1548 = vld [vmem:[%s2 + $0x35c] sm:$0xf]
        %v1549 = vld [vmem:[%s2 + $0x360] sm:$0xff]
        %v1550 = vld [vmem:[%s2 + $0x368] sm:$0xf]
        %v1551 = vld [vmem:[%s2 + $0x36c] sm:$0xff]
        %v1552 = vld [vmem:[%s2 + $0x374] sm:$0xf]
        %v1553 = vld [vmem:[%s2 + $0x378] sm:$0xff]
        %v1554 = vld [vmem:[%s2 + $0x380] sm:$0xf]
        %v1555 = vld [vmem:[%s2 + $0x384] sm:$0xff]
        %v1556 = vld [vmem:[%s2 + $0x38c] sm:$0xf]
        %v1557 = vld [vmem:[%s2 + $0x390] sm:$0xff]
        %v1558 = vld [vmem:[%s2 + $0x398] sm:$0xf]
        %v1559 = vld [vmem:[%s2 + $0x39c] sm:$0xff]
        %v1560 = vld [vmem:[%s2 + $0x3a4] sm:$0xf]
        %v1561 = vld [vmem:[%s2 + $0x3a8] sm:$0xff]
        %v1562 = vld [vmem:[%s2 + $0x3b0] sm:$0xf]
        %v1563 = vld [vmem:[%s2 + $0x3b4] sm:$0xff]
        %v1564 = vld [vmem:[%s2 + $0x3bc] sm:$0xf]
        %v1565 = vld [vmem:[%s2 + $0x3c0] sm:$0xff]
        %v1566 = vld [vmem:[%s2 + $0x3c8] sm:$0xf]
        %v1567 = vld [vmem:[%s2 + $0x3cc] sm:$0xff]
        %v1568 = vld [vmem:[%s2 + $0x3d4] sm:$0xf]
        %v1569 = vld [vmem:[%s2 + $0x3d8] sm:$0xff]
        %v1570 = vld [vmem:[%s2 + $0x3e0] sm:$0xf]
        %v1571 = vld [vmem:[%s2 + $0x3e4] sm:$0xff]
        %v1572 = vld [vmem:[%s2 + $0x3ec] sm:$0xf]
        %v1573 = vld [vmem:[%s2 + $0x3f0] sm:$0xff]
        %v1574 = vld [vmem:[%s2 + $0x3f8] sm:$0xf]
        %v1575 = vld [vmem:[%s2 + $0x3fc] sm:$0xff]
        %v1576 = vld [vmem:[%s2 + $0x404] sm:$0xf]
        %v1577 = vld [vmem:[%s2 + $0x408] sm:$0xff]
        %v1578 = vld [vmem:[%s2 + $0x410] sm:$0xf]
        %v1579 = vld [vmem:[%s2 + $0x414] sm:$0xff]
        %v1580 = vld [vmem:[%s2 + $0x41c] sm:$0xf]
        %v1581 = vld [vmem:[%s2 + $0x420] sm:$0xff]
        %v1582 = vld [vmem:[%s2 + $0x428] sm:$0xf]
        %v1583 = vld [vmem:[%s2 + $0x42c] sm:$0xff]
        %v1584 = vld [vmem:[%s2 + $0x434] sm:$0xf]
        %v1585 = vld [vmem:[%s2 + $0x438] sm:$0xff]
        %v1586 = vld [vmem:[%s2 + $0x440] sm:$0xf]
        %v1587 = vld [vmem:[%s2 + $0x444] sm:$0xff]
        %v1588 = vld [vmem:[%s2 + $0x44c] sm:$0xf]
        %v1589 = vld [vmem:[%s2 + $0x450] sm:$0xff]
        %v1590 = vld [vmem:[%s2 + $0x458] sm:$0xf]
        %v1591 = vld [vmem:[%s2 + $0x45c] sm:$0xff]
        %v1592 = vld [vmem:[%s2 + $0x464] sm:$0xf]
        %v1593 = vld [vmem:[%s2 + $0x468] sm:$0xff]
        %v1594 = vld [vmem:[%s2 + $0x470] sm:$0xf]
        %v1595 = vld [vmem:[%s2 + $0x474] sm:$0xff]
        %v1596 = vld [vmem:[%s2 + $0x47c] sm:$0xf]
        %v1597 = vld [vmem:[#allocation6] sm:$0x7]
        %v1599 = vlaneseq
        %v1600 = vshrl.u32 %v1599, 7
        %v1601 = vsub.s32 0, %v1600
        %v1602 = vrot.slane %v1597, %v1601
        %v1603 = vlaneseq
        %v1604 = vshrl.u32 %v1603, 7
        %v1605 = vsub.s32 1, %v1604
        %v1606 = vrot.slane %v1597, %v1605
        %v1607 = vlaneseq
        %v1608 = vshrl.u32 %v1607, 7
        %v1609 = vsub.s32 2, %v1608
        %v1610 = vrot.slane %v1597, %v1609
        %v1806 = vunpack.c.l.b16 %v1405
        %v1807 = vunpack.c.h.b16 %v1405
        %v1808 = vunpack.c.l.b16 %v1406
        %v1809 = vunpack.c.l.b16 %v1407
        %v1810 = vunpack.c.h.b16 %v1407
        %v1811 = vunpack.c.l.b16 %v1408
        %v1812 = vunpack.c.l.b16 %v1409
        %v1813 = vunpack.c.h.b16 %v1409
        %v1814 = vunpack.c.l.b16 %v1410
        %v1815 = vunpack.c.l.b16 %v1411
        %v1816 = vunpack.c.h.b16 %v1411
        %v1817 = vunpack.c.l.b16 %v1412
        %v1818 = vunpack.c.l.b16 %v1413
        %v1819 = vunpack.c.h.b16 %v1413
        %v1820 = vunpack.c.l.b16 %v1414
        %v1821 = vunpack.c.l.b16 %v1415
        %v1822 = vunpack.c.h.b16 %v1415
        %v1823 = vunpack.c.l.b16 %v1416
        %v1824 = vunpack.c.l.b16 %v1417
        %v1825 = vunpack.c.h.b16 %v1417
        %v1826 = vunpack.c.l.b16 %v1418
        %v1827 = vunpack.c.l.b16 %v1419
        %v1828 = vunpack.c.h.b16 %v1419
        %v1829 = vunpack.c.l.b16 %v1420
        %v1830 = vunpack.c.l.b16 %v1421
        %v1831 = vunpack.c.h.b16 %v1421
        %v1832 = vunpack.c.l.b16 %v1422
        %v1833 = vunpack.c.l.b16 %v1423
        %v1834 = vunpack.c.h.b16 %v1423
        %v1835 = vunpack.c.l.b16 %v1424
        %v1836 = vunpack.c.l.b16 %v1425
        %v1837 = vunpack.c.h.b16 %v1425
        %v1838 = vunpack.c.l.b16 %v1426
        %v1839 = vunpack.c.l.b16 %v1427
        %v1840 = vunpack.c.h.b16 %v1427
        %v1841 = vunpack.c.l.b16 %v1428
        %v1842 = vunpack.c.l.b16 %v1429
        %v1843 = vunpack.c.h.b16 %v1429
        %v1844 = vunpack.c.l.b16 %v1430
        %v1845 = vunpack.c.l.b16 %v1431
        %v1846 = vunpack.c.h.b16 %v1431
        %v1847 = vunpack.c.l.b16 %v1432
        %v1848 = vunpack.c.l.b16 %v1433
        %v1849 = vunpack.c.h.b16 %v1433
        %v1850 = vunpack.c.l.b16 %v1434
        %v1851 = vunpack.c.l.b16 %v1435
        %v1852 = vunpack.c.h.b16 %v1435
        %v1853 = vunpack.c.l.b16 %v1436
        %v1854 = vunpack.c.l.b16 %v1437
        %v1855 = vunpack.c.h.b16 %v1437
        %v1856 = vunpack.c.l.b16 %v1438
        %v1857 = vunpack.c.l.b16 %v1439
        %v1858 = vunpack.c.h.b16 %v1439
        %v1859 = vunpack.c.l.b16 %v1440
        %v1860 = vunpack.c.l.b16 %v1441
        %v1861 = vunpack.c.h.b16 %v1441
        %v1862 = vunpack.c.l.b16 %v1442
        %v1863 = vunpack.c.l.b16 %v1443
        %v1864 = vunpack.c.h.b16 %v1443
        %v1865 = vunpack.c.l.b16 %v1444
        %v1866 = vunpack.c.l.b16 %v1445
        %v1867 = vunpack.c.h.b16 %v1445
        %v1868 = vunpack.c.l.b16 %v1446
        %v1869 = vunpack.c.l.b16 %v1447
        %v1870 = vunpack.c.h.b16 %v1447
        %v1871 = vunpack.c.l.b16 %v1448
        %v1872 = vunpack.c.l.b16 %v1449
        %v1873 = vunpack.c.h.b16 %v1449
        %v1874 = vunpack.c.l.b16 %v1450
        %v1875 = vunpack.c.l.b16 %v1451
        %v1876 = vunpack.c.h.b16 %v1451
        %v1877 = vunpack.c.l.b16 %v1452
        %v1878 = vunpack.c.l.b16 %v1453
        %v1879 = vunpack.c.h.b16 %v1453
        %v1880 = vunpack.c.l.b16 %v1454
        %v1881 = vunpack.c.l.b16 %v1455
        %v1882 = vunpack.c.h.b16 %v1455
        %v1883 = vunpack.c.l.b16 %v1456
        %v1884 = vunpack.c.l.b16 %v1457
        %v1885 = vunpack.c.h.b16 %v1457
        %v1886 = vunpack.c.l.b16 %v1458
        %v1887 = vunpack.c.l.b16 %v1459
        %v1888 = vunpack.c.h.b16 %v1459
        %v1889 = vunpack.c.l.b16 %v1460
        %v1890 = vunpack.c.l.b16 %v1461
        %v1891 = vunpack.c.h.b16 %v1461
        %v1892 = vunpack.c.l.b16 %v1462
        %v1893 = vunpack.c.l.b16 %v1463
        %v1894 = vunpack.c.h.b16 %v1463
        %v1895 = vunpack.c.l.b16 %v1464
        %v1896 = vunpack.c.l.b16 %v1465
        %v1897 = vunpack.c.h.b16 %v1465
        %v1898 = vunpack.c.l.b16 %v1466
        %v1899 = vunpack.c.l.b16 %v1467
        %v1900 = vunpack.c.h.b16 %v1467
        %v1901 = vunpack.c.l.b16 %v1468
        %v1902 = vunpack.c.l.b16 %v1469
        %v1903 = vunpack.c.h.b16 %v1469
        %v1904 = vunpack.c.l.b16 %v1470
        %v1905 = vunpack.c.l.b16 %v1471
        %v1906 = vunpack.c.h.b16 %v1471
        %v1907 = vunpack.c.l.b16 %v1472
        %v1908 = vunpack.c.l.b16 %v1473
        %v1909 = vunpack.c.h.b16 %v1473
        %v1910 = vunpack.c.l.b16 %v1474
        %v1911 = vunpack.c.l.b16 %v1475
        %v1912 = vunpack.c.h.b16 %v1475
        %v1913 = vunpack.c.l.b16 %v1476
        %v1914 = vunpack.c.l.b16 %v1477
        %v1915 = vunpack.c.h.b16 %v1477
        %v1916 = vunpack.c.l.b16 %v1478
        %v1917 = vunpack.c.l.b16 %v1479
        %v1918 = vunpack.c.h.b16 %v1479
        %v1919 = vunpack.c.l.b16 %v1480
        %v1920 = vunpack.c.l.b16 %v1481
        %v1921 = vunpack.c.h.b16 %v1481
        %v1922 = vunpack.c.l.b16 %v1482
        %v1923 = vunpack.c.l.b16 %v1483
        %v1924 = vunpack.c.h.b16 %v1483
        %v1925 = vunpack.c.l.b16 %v1484
        %v1926 = vunpack.c.l.b16 %v1485
        %v1927 = vunpack.c.h.b16 %v1485
        %v1928 = vunpack.c.l.b16 %v1486
        %v1929 = vunpack.c.l.b16 %v1487
        %v1930 = vunpack.c.h.b16 %v1487
        %v1931 = vunpack.c.l.b16 %v1488
        %v1932 = vunpack.c.l.b16 %v1489
        %v1933 = vunpack.c.h.b16 %v1489
        %v1934 = vunpack.c.l.b16 %v1490
        %v1935 = vunpack.c.l.b16 %v1491
        %v1936 = vunpack.c.h.b16 %v1491
        %v1937 = vunpack.c.l.b16 %v1492
        %v1938 = vunpack.c.l.b16 %v1493
        %v1939 = vunpack.c.h.b16 %v1493
        %v1940 = vunpack.c.l.b16 %v1494
        %v1941 = vunpack.c.l.b16 %v1495
        %v1942 = vunpack.c.h.b16 %v1495
        %v1943 = vunpack.c.l.b16 %v1496
        %v1944 = vunpack.c.l.b16 %v1497
        %v1945 = vunpack.c.h.b16 %v1497
        %v1946 = vunpack.c.l.b16 %v1498
        %v1947 = vunpack.c.l.b16 %v1499
        %v1948 = vunpack.c.h.b16 %v1499
        %v1949 = vunpack.c.l.b16 %v1500
        %v1950 = vunpack.c.l.b16 %v1501
        %v1951 = vunpack.c.h.b16 %v1501
        %v1952 = vunpack.c.l.b16 %v1502
        %v1953 = vunpack.c.l.b16 %v1503
        %v1954 = vunpack.c.h.b16 %v1503
        %v1955 = vunpack.c.l.b16 %v1504
        %v1956 = vunpack.c.l.b16 %v1505
        %v1957 = vunpack.c.h.b16 %v1505
        %v1958 = vunpack.c.l.b16 %v1506
        %v1959 = vunpack.c.l.b16 %v1507
        %v1960 = vunpack.c.h.b16 %v1507
        %v1961 = vunpack.c.l.b16 %v1508
        %v1962 = vunpack.c.l.b16 %v1509
        %v1963 = vunpack.c.h.b16 %v1509
        %v1964 = vunpack.c.l.b16 %v1510
        %v1965 = vunpack.c.l.b16 %v1511
        %v1966 = vunpack.c.h.b16 %v1511
        %v1967 = vunpack.c.l.b16 %v1512
        %v1968 = vunpack.c.l.b16 %v1513
        %v1969 = vunpack.c.h.b16 %v1513
        %v1970 = vunpack.c.l.b16 %v1514
        %v1971 = vunpack.c.l.b16 %v1515
        %v1972 = vunpack.c.h.b16 %v1515
        %v1973 = vunpack.c.l.b16 %v1516
        %v1974 = vunpack.c.l.b16 %v1517
        %v1975 = vunpack.c.h.b16 %v1517
        %v1976 = vunpack.c.l.b16 %v1518
        %v1977 = vunpack.c.l.b16 %v1519
        %v1978 = vunpack.c.h.b16 %v1519
        %v1979 = vunpack.c.l.b16 %v1520
        %v1980 = vunpack.c.l.b16 %v1521
        %v1981 = vunpack.c.h.b16 %v1521
        %v1982 = vunpack.c.l.b16 %v1522
        %v1983 = vunpack.c.l.b16 %v1523
        %v1984 = vunpack.c.h.b16 %v1523
        %v1985 = vunpack.c.l.b16 %v1524
        %v1986 = vunpack.c.l.b16 %v1525
        %v1987 = vunpack.c.h.b16 %v1525
        %v1988 = vunpack.c.l.b16 %v1526
        %v1989 = vunpack.c.l.b16 %v1527
        %v1990 = vunpack.c.h.b16 %v1527
        %v1991 = vunpack.c.l.b16 %v1528
        %v1992 = vunpack.c.l.b16 %v1529
        %v1993 = vunpack.c.h.b16 %v1529
        %v1994 = vunpack.c.l.b16 %v1530
        %v1995 = vunpack.c.l.b16 %v1531
        %v1996 = vunpack.c.h.b16 %v1531
        %v1997 = vunpack.c.l.b16 %v1532
        %v1998 = vunpack.c.l.b16 %v1533
        %v1999 = vunpack.c.h.b16 %v1533
        %v2000 = vunpack.c.l.b16 %v1534
        %v2001 = vunpack.c.l.b16 %v1535
        %v2002 = vunpack.c.h.b16 %v1535
        %v2003 = vunpack.c.l.b16 %v1536
        %v2004 = vunpack.c.l.b16 %v1537
        %v2005 = vunpack.c.h.b16 %v1537
        %v2006 = vunpack.c.l.b16 %v1538
        %v2007 = vunpack.c.l.b16 %v1539
        %v2008 = vunpack.c.h.b16 %v1539
        %v2009 = vunpack.c.l.b16 %v1540
        %v2010 = vunpack.c.l.b16 %v1541
        %v2011 = vunpack.c.h.b16 %v1541
        %v2012 = vunpack.c.l.b16 %v1542
        %v2013 = vunpack.c.l.b16 %v1543
        %v2014 = vunpack.c.h.b16 %v1543
        %v2015 = vunpack.c.l.b16 %v1544
        %v2016 = vunpack.c.l.b16 %v1545
        %v2017 = vunpack.c.h.b16 %v1545
        %v2018 = vunpack.c.l.b16 %v1546
        %v2019 = vunpack.c.l.b16 %v1547
        %v2020 = vunpack.c.h.b16 %v1547
        %v2021 = vunpack.c.l.b16 %v1548
        %v2022 = vunpack.c.l.b16 %v1549
        %v2023 = vunpack.c.h.b16 %v1549
        %v2024 = vunpack.c.l.b16 %v1550
        %v2025 = vunpack.c.l.b16 %v1551
        %v2026 = vunpack.c.h.b16 %v1551
        %v2027 = vunpack.c.l.b16 %v1552
        %v2028 = vunpack.c.l.b16 %v1553
        %v2029 = vunpack.c.h.b16 %v1553
        %v2030 = vunpack.c.l.b16 %v1554
        %v2031 = vunpack.c.l.b16 %v1555
        %v2032 = vunpack.c.h.b16 %v1555
        %v2033 = vunpack.c.l.b16 %v1556
        %v2034 = vunpack.c.l.b16 %v1557
        %v2035 = vunpack.c.h.b16 %v1557
        %v2036 = vunpack.c.l.b16 %v1558
        %v2037 = vunpack.c.l.b16 %v1559
        %v2038 = vunpack.c.h.b16 %v1559
        %v2039 = vunpack.c.l.b16 %v1560
        %v2040 = vunpack.c.l.b16 %v1561
        %v2041 = vunpack.c.h.b16 %v1561
        %v2042 = vunpack.c.l.b16 %v1562
        %v2043 = vunpack.c.l.b16 %v1563
        %v2044 = vunpack.c.h.b16 %v1563
        %v2045 = vunpack.c.l.b16 %v1564
        %v2046 = vunpack.c.l.b16 %v1565
        %v2047 = vunpack.c.h.b16 %v1565
        %v2048 = vunpack.c.l.b16 %v1566
        %v2049 = vunpack.c.l.b16 %v1567
        %v2050 = vunpack.c.h.b16 %v1567
        %v2051 = vunpack.c.l.b16 %v1568
        %v2052 = vunpack.c.l.b16 %v1569
        %v2053 = vunpack.c.h.b16 %v1569
        %v2054 = vunpack.c.l.b16 %v1570
        %v2055 = vunpack.c.l.b16 %v1571
        %v2056 = vunpack.c.h.b16 %v1571
        %v2057 = vunpack.c.l.b16 %v1572
        %v2058 = vunpack.c.l.b16 %v1573
        %v2059 = vunpack.c.h.b16 %v1573
        %v2060 = vunpack.c.l.b16 %v1574
        %v2061 = vunpack.c.l.b16 %v1575
        %v2062 = vunpack.c.h.b16 %v1575
        %v2063 = vunpack.c.l.b16 %v1576
        %v2064 = vunpack.c.l.b16 %v1577
        %v2065 = vunpack.c.h.b16 %v1577
        %v2066 = vunpack.c.l.b16 %v1578
        %v2067 = vunpack.c.l.b16 %v1579
        %v2068 = vunpack.c.h.b16 %v1579
        %v2069 = vunpack.c.l.b16 %v1580
        %v2070 = vunpack.c.l.b16 %v1581
        %v2071 = vunpack.c.h.b16 %v1581
        %v2072 = vunpack.c.l.b16 %v1582
        %v2073 = vunpack.c.l.b16 %v1583
        %v2074 = vunpack.c.h.b16 %v1583
        %v2075 = vunpack.c.l.b16 %v1584
        %v2076 = vunpack.c.l.b16 %v1585
        %v2077 = vunpack.c.h.b16 %v1585
        %v2078 = vunpack.c.l.b16 %v1586
        %v2079 = vunpack.c.l.b16 %v1587
        %v2080 = vunpack.c.h.b16 %v1587
        %v2081 = vunpack.c.l.b16 %v1588
        %v2082 = vunpack.c.l.b16 %v1589
        %v2083 = vunpack.c.h.b16 %v1589
        %v2084 = vunpack.c.l.b16 %v1590
        %v2085 = vunpack.c.l.b16 %v1591
        %v2086 = vunpack.c.h.b16 %v1591
        %v2087 = vunpack.c.l.b16 %v1592
        %v2088 = vunpack.c.l.b16 %v1593
        %v2089 = vunpack.c.h.b16 %v1593
        %v2090 = vunpack.c.l.b16 %v1594
        %v2091 = vunpack.c.l.b16 %v1595
        %v2092 = vunpack.c.h.b16 %v1595
        %v2093 = vunpack.c.l.b16 %v1596
        %v2094 = vpack.c.b16 %v1809, %v1806
        %v2095 = vpack.c.b16 %v1810, %v1807
        %v2096 = vpack.c.b16 %v1811, %v1808
        %v2097 = vpack.c.b16 %v1815, %v1812
        %v2098 = vpack.c.b16 %v1816, %v1813
        %v2099 = vpack.c.b16 %v1817, %v1814
        %v2100 = vpack.c.b16 %v1821, %v1818
        %v2101 = vpack.c.b16 %v1822, %v1819
        %v2102 = vpack.c.b16 %v1823, %v1820
        %v2103 = vpack.c.b16 %v1827, %v1824
        %v2104 = vpack.c.b16 %v1828, %v1825
        %v2105 = vpack.c.b16 %v1829, %v1826
        %v2106 = vpack.c.b16 %v1833, %v1830
        %v2107 = vpack.c.b16 %v1834, %v1831
        %v2108 = vpack.c.b16 %v1835, %v1832
        %v2109 = vpack.c.b16 %v1839, %v1836
        %v2110 = vpack.c.b16 %v1840, %v1837
        %v2111 = vpack.c.b16 %v1841, %v1838
        %v2112 = vpack.c.b16 %v1845, %v1842
        %v2113 = vpack.c.b16 %v1846, %v1843
        %v2114 = vpack.c.b16 %v1847, %v1844
        %v2115 = vpack.c.b16 %v1851, %v1848
        %v2116 = vpack.c.b16 %v1852, %v1849
        %v2117 = vpack.c.b16 %v1853, %v1850
        %v2118 = vpack.c.b16 %v1857, %v1854
        %v2119 = vpack.c.b16 %v1858, %v1855
        %v2120 = vpack.c.b16 %v1859, %v1856
        %v2121 = vpack.c.b16 %v1863, %v1860
        %v2122 = vpack.c.b16 %v1864, %v1861
        %v2123 = vpack.c.b16 %v1865, %v1862
        %v2124 = vpack.c.b16 %v1869, %v1866
        %v2125 = vpack.c.b16 %v1870, %v1867
        %v2126 = vpack.c.b16 %v1871, %v1868
        %v2127 = vpack.c.b16 %v1875, %v1872
        %v2128 = vpack.c.b16 %v1876, %v1873
        %v2129 = vpack.c.b16 %v1877, %v1874
        %v2130 = vpack.c.b16 %v1881, %v1878
        %v2131 = vpack.c.b16 %v1882, %v1879
        %v2132 = vpack.c.b16 %v1883, %v1880
        %v2133 = vpack.c.b16 %v1887, %v1884
        %v2134 = vpack.c.b16 %v1888, %v1885
        %v2135 = vpack.c.b16 %v1889, %v1886
        %v2136 = vpack.c.b16 %v1893, %v1890
        %v2137 = vpack.c.b16 %v1894, %v1891
        %v2138 = vpack.c.b16 %v1895, %v1892
        %v2139 = vpack.c.b16 %v1899, %v1896
        %v2140 = vpack.c.b16 %v1900, %v1897
        %v2141 = vpack.c.b16 %v1901, %v1898
        %v2142 = vpack.c.b16 %v1905, %v1902
        %v2143 = vpack.c.b16 %v1906, %v1903
        %v2144 = vpack.c.b16 %v1907, %v1904
        %v2145 = vpack.c.b16 %v1911, %v1908
        %v2146 = vpack.c.b16 %v1912, %v1909
        %v2147 = vpack.c.b16 %v1913, %v1910
        %v2148 = vpack.c.b16 %v1917, %v1914
        %v2149 = vpack.c.b16 %v1918, %v1915
        %v2150 = vpack.c.b16 %v1919, %v1916
        %v2151 = vpack.c.b16 %v1923, %v1920
        %v2152 = vpack.c.b16 %v1924, %v1921
        %v2153 = vpack.c.b16 %v1925, %v1922
        %v2154 = vpack.c.b16 %v1929, %v1926
        %v2155 = vpack.c.b16 %v1930, %v1927
        %v2156 = vpack.c.b16 %v1931, %v1928
        %v2157 = vpack.c.b16 %v1935, %v1932
        %v2158 = vpack.c.b16 %v1936, %v1933
        %v2159 = vpack.c.b16 %v1937, %v1934
        %v2160 = vpack.c.b16 %v1941, %v1938
        %v2161 = vpack.c.b16 %v1942, %v1939
        %v2162 = vpack.c.b16 %v1943, %v1940
        %v2163 = vpack.c.b16 %v1947, %v1944
        %v2164 = vpack.c.b16 %v1948, %v1945
        %v2165 = vpack.c.b16 %v1949, %v1946
        %v2166 = vpack.c.b16 %v1953, %v1950
        %v2167 = vpack.c.b16 %v1954, %v1951
        %v2168 = vpack.c.b16 %v1955, %v1952
        %v2169 = vpack.c.b16 %v1959, %v1956
        %v2170 = vpack.c.b16 %v1960, %v1957
        %v2171 = vpack.c.b16 %v1961, %v1958
        %v2172 = vpack.c.b16 %v1965, %v1962
        %v2173 = vpack.c.b16 %v1966, %v1963
        %v2174 = vpack.c.b16 %v1967, %v1964
        %v2175 = vpack.c.b16 %v1971, %v1968
        %v2176 = vpack.c.b16 %v1972, %v1969
        %v2177 = vpack.c.b16 %v1973, %v1970
        %v2178 = vpack.c.b16 %v1977, %v1974
        %v2179 = vpack.c.b16 %v1978, %v1975
        %v2180 = vpack.c.b16 %v1979, %v1976
        %v2181 = vpack.c.b16 %v1983, %v1980
        %v2182 = vpack.c.b16 %v1984, %v1981
        %v2183 = vpack.c.b16 %v1985, %v1982
        %v2184 = vpack.c.b16 %v1989, %v1986
        %v2185 = vpack.c.b16 %v1990, %v1987
        %v2186 = vpack.c.b16 %v1991, %v1988
        %v2187 = vpack.c.b16 %v1995, %v1992
        %v2188 = vpack.c.b16 %v1996, %v1993
        %v2189 = vpack.c.b16 %v1997, %v1994
        %v2190 = vpack.c.b16 %v2001, %v1998
        %v2191 = vpack.c.b16 %v2002, %v1999
        %v2192 = vpack.c.b16 %v2003, %v2000
        %v2193 = vpack.c.b16 %v2007, %v2004
        %v2194 = vpack.c.b16 %v2008, %v2005
        %v2195 = vpack.c.b16 %v2009, %v2006
        %v2196 = vpack.c.b16 %v2013, %v2010
        %v2197 = vpack.c.b16 %v2014, %v2011
        %v2198 = vpack.c.b16 %v2015, %v2012
        %v2199 = vpack.c.b16 %v2019, %v2016
        %v2200 = vpack.c.b16 %v2020, %v2017
        %v2201 = vpack.c.b16 %v2021, %v2018
        %v2202 = vpack.c.b16 %v2025, %v2022
        %v2203 = vpack.c.b16 %v2026, %v2023
        %v2204 = vpack.c.b16 %v2027, %v2024
        %v2205 = vpack.c.b16 %v2031, %v2028
        %v2206 = vpack.c.b16 %v2032, %v2029
        %v2207 = vpack.c.b16 %v2033, %v2030
        %v2208 = vpack.c.b16 %v2037, %v2034
        %v2209 = vpack.c.b16 %v2038, %v2035
        %v2210 = vpack.c.b16 %v2039, %v2036
        %v2211 = vpack.c.b16 %v2043, %v2040
        %v2212 = vpack.c.b16 %v2044, %v2041
        %v2213 = vpack.c.b16 %v2045, %v2042
        %v2214 = vpack.c.b16 %v2049, %v2046
        %v2215 = vpack.c.b16 %v2050, %v2047
        %v2216 = vpack.c.b16 %v2051, %v2048
        %v2217 = vpack.c.b16 %v2055, %v2052
        %v2218 = vpack.c.b16 %v2056, %v2053
        %v2219 = vpack.c.b16 %v2057, %v2054
        %v2220 = vpack.c.b16 %v2061, %v2058
        %v2221 = vpack.c.b16 %v2062, %v2059
        %v2222 = vpack.c.b16 %v2063, %v2060
        %v2223 = vpack.c.b16 %v2067, %v2064
        %v2224 = vpack.c.b16 %v2068, %v2065
        %v2225 = vpack.c.b16 %v2069, %v2066
        %v2226 = vpack.c.b16 %v2073, %v2070
        %v2227 = vpack.c.b16 %v2074, %v2071
        %v2228 = vpack.c.b16 %v2075, %v2072
        %v2229 = vpack.c.b16 %v2079, %v2076
        %v2230 = vpack.c.b16 %v2080, %v2077
        %v2231 = vpack.c.b16 %v2081, %v2078
        %v2232 = vpack.c.b16 %v2085, %v2082
        %v2233 = vpack.c.b16 %v2086, %v2083
        %v2234 = vpack.c.b16 %v2087, %v2084
        %v2235 = vpack.c.b16 %v2091, %v2088
        %v2236 = vpack.c.b16 %v2092, %v2089
        %v2237 = vpack.c.b16 %v2093, %v2090
        %2382 = vmatprep.subr.bf16.mxu0 %v2095
        %2383 = vmatpush1.bf16.msra.mxu0 %v2094
        %2384 = vmatprep.subr.bf16.mxu0 %v2098
        %2385 = vmatpush1.bf16.msra.mxu0 %v2097
        %2386 = vmatprep.subr.bf16.mxu0 %v2101
        %2387 = vmatpush1.bf16.msra.mxu0 %v2100
        %2388 = vmatprep.subr.bf16.mxu0 %v2104
        %2389 = vmatpush1.bf16.msra.mxu0 %v2103
        %2390 = vmatprep.subr.bf16.mxu0 %v2107
        %2391 = vmatpush1.bf16.msra.mxu0 %v2106
        %2392 = vmatprep.subr.bf16.mxu0 %v2110
        %2393 = vmatpush1.bf16.msra.mxu0 %v2109
        %2394 = vmatprep.subr.bf16.mxu0 %v2113
        %2395 = vmatpush1.bf16.msra.mxu0 %v2112
        %2396 = vmatprep.subr.bf16.mxu0 %v2116
        %2397 = vmatpush1.bf16.msra.mxu0 %v2115
        %2398 = vmatprep.subr.bf16.mxu0 %v2119
        %2399 = vmatpush1.bf16.msra.mxu0 %v2118
        %2400 = vmatprep.subr.bf16.mxu0 %v2122
        %2401 = vmatpush1.bf16.msra.mxu0 %v2121
        %2402 = vmatprep.subr.bf16.mxu0 %v2125
        %2403 = vmatpush1.bf16.msra.mxu0 %v2124
        %2404 = vmatprep.subr.bf16.mxu0 %v2128
        %2405 = vmatpush1.bf16.msra.mxu0 %v2127
        %2406 = vmatprep.subr.bf16.mxu0 %v2131
        %2407 = vmatpush1.bf16.msra.mxu0 %v2130
        %2408 = vmatprep.subr.bf16.mxu0 %v2134
        %2409 = vmatpush1.bf16.msra.mxu0 %v2133
        %2410 = vmatprep.subr.bf16.mxu0 %v2137
        %2411 = vmatpush1.bf16.msra.mxu0 %v2136
        %2412 = vmatprep.subr.bf16.mxu0 %v2140
        %2413 = vmatpush1.bf16.msra.mxu0 %v2139
        %2414 = vmatprep.mubr.bf16.mxu0 %v1400
        %2415 = vmatmul.mubr.bf16.gmra.mrb[0].mxu0 %v1399
        %v2416 = vpop.f32.mrb[0].mxu0
        %v2417 = vadd.f32 %v1602, %v2416
        %v2418 = vpop.f32.mrb[0].mxu0
        %v2419 = vadd.f32 %v1606, %v2418
        %v2420 = vpop.f32.mrb[0].mxu0
        %v2421 = vpop.f32.mrb[0].mxu0
        %2422 = vdwg.mxu0
        %2423 = vmatprep.subr.bf16.mxu0 %v2143
        %2424 = vmatpush1.bf16.msra.mxu0 %v2142
        %2425 = vmatprep.subr.bf16.mxu0 %v2146
        %2426 = vmatpush1.bf16.msra.mxu0 %v2145
        %2427 = vmatprep.subr.bf16.mxu0 %v2149
        %2428 = vmatpush1.bf16.msra.mxu0 %v2148
        %2429 = vmatprep.subr.bf16.mxu0 %v2152
        %2430 = vmatpush1.bf16.msra.mxu0 %v2151
        %2431 = vmatprep.subr.bf16.mxu0 %v2155
        %2432 = vmatpush1.bf16.msra.mxu0 %v2154
        %2433 = vmatprep.subr.bf16.mxu0 %v2158
        %2434 = vmatpush1.bf16.msra.mxu0 %v2157
        %2435 = vmatprep.subr.bf16.mxu0 %v2161
        %2436 = vmatpush1.bf16.msra.mxu0 %v2160
        %2437 = vmatprep.subr.bf16.mxu0 %v2164
        %2438 = vmatpush1.bf16.msra.mxu0 %v2163
        %2439 = vmatprep.subr.bf16.mxu0 %v2167
        %2440 = vmatpush1.bf16.msra.mxu0 %v2166
        %2441 = vmatprep.subr.bf16.mxu0 %v2170
        %2442 = vmatpush1.bf16.msra.mxu0 %v2169
        %2443 = vmatprep.subr.bf16.mxu0 %v2173
        %2444 = vmatpush1.bf16.msra.mxu0 %v2172
        %2445 = vmatprep.subr.bf16.mxu0 %v2176
        %2446 = vmatpush1.bf16.msra.mxu0 %v2175
        %2447 = vmatprep.subr.bf16.mxu0 %v2179
        %2448 = vmatpush1.bf16.msra.mxu0 %v2178
        %2449 = vmatprep.subr.bf16.mxu0 %v2182
        %2450 = vmatpush1.bf16.msra.mxu0 %v2181
        %2451 = vmatprep.subr.bf16.mxu0 %v2185
        %2452 = vmatpush1.bf16.msra.mxu0 %v2184
        %2453 = vmatprep.subr.bf16.mxu0 %v2188
        %2454 = vmatpush1.bf16.msra.mxu0 %v2187
        %2455 = vmatprep.mubr.bf16.mxu0 %v1402
        %2456 = vmatmul.mubr.bf16.gmra.mrb[0].mxu0 %v1401
        %v2457 = vpop.f32.mrb[0].mxu0
        %v2458 = vadd.f32 %v2417, %v2457
        %v2459 = vpop.f32.mrb[0].mxu0
        %v2460 = vadd.f32 %v2419, %v2459
        %v2461 = vpop.f32.mrb[0].mxu0
        %v2462 = vpop.f32.mrb[0].mxu0
        %2463 = vdwg.mxu0
        %2464 = vmatprep.subr.bf16.mxu0 %v2191
        %2465 = vmatpush1.bf16.msra.mxu0 %v2190
        %2466 = vmatprep.subr.bf16.mxu0 %v2194
        %2467 = vmatpush1.bf16.msra.mxu0 %v2193
        %2468 = vmatprep.subr.bf16.mxu0 %v2197
        %2469 = vmatpush1.bf16.msra.mxu0 %v2196
        %2470 = vmatprep.subr.bf16.mxu0 %v2200
        %2471 = vmatpush1.bf16.msra.mxu0 %v2199
        %2472 = vmatprep.subr.bf16.mxu0 %v2203
        %2473 = vmatpush1.bf16.msra.mxu0 %v2202
        %2474 = vmatprep.subr.bf16.mxu0 %v2206
        %2475 = vmatpush1.bf16.msra.mxu0 %v2205
        %2476 = vmatprep.subr.bf16.mxu0 %v2209
        %2477 = vmatpush1.bf16.msra.mxu0 %v2208
        %2478 = vmatprep.subr.bf16.mxu0 %v2212
        %2479 = vmatpush1.bf16.msra.mxu0 %v2211
        %2480 = vmatprep.subr.bf16.mxu0 %v2215
        %2481 = vmatpush1.bf16.msra.mxu0 %v2214
        %2482 = vmatprep.subr.bf16.mxu0 %v2218
        %2483 = vmatpush1.bf16.msra.mxu0 %v2217
        %2484 = vmatprep.subr.bf16.mxu0 %v2221
        %2485 = vmatpush1.bf16.msra.mxu0 %v2220
        %2486 = vmatprep.subr.bf16.mxu0 %v2224
        %2487 = vmatpush1.bf16.msra.mxu0 %v2223
        %2488 = vmatprep.subr.bf16.mxu0 %v2227
        %2489 = vmatpush1.bf16.msra.mxu0 %v2226
        %2490 = vmatprep.subr.bf16.mxu0 %v2230
        %2491 = vmatpush1.bf16.msra.mxu0 %v2229
        %2492 = vmatprep.subr.bf16.mxu0 %v2233
        %2493 = vmatpush1.bf16.msra.mxu0 %v2232
        %2494 = vmatprep.subr.bf16.mxu0 %v2236
        %2495 = vmatpush1.bf16.msra.mxu0 %v2235
        %2496 = vmatprep.mubr.bf16.mxu0 %v1404
        %2497 = vmatmul.mubr.bf16.gmra.mrb[0].mxu0 %v1403
        %v2498 = vpop.f32.mrb[0].mxu0
        %v2499 = vadd.f32 %v2458, %v2498
        %v2500 = vpop.f32.mrb[0].mxu0
        %v2501 = vadd.f32 %v2460, %v2500
        %v2502 = vpop.f32.mrb[0].mxu0
        %v2503 = vpop.f32.mrb[0].mxu0
        %2504 = vdwg.mxu0
        %2505 = vmatprep.subr.bf16.mxu0 0
        %2506 = vmatpush1.bf16.msra.mxu0 %v2096
        %2507 = vmatprep.subr.bf16.mxu0 0
        %2508 = vmatpush1.bf16.msra.mxu0 %v2099
        %2509 = vmatprep.subr.bf16.mxu0 0
        %2510 = vmatpush1.bf16.msra.mxu0 %v2102
        %2511 = vmatprep.subr.bf16.mxu0 0
        %2512 = vmatpush1.bf16.msra.mxu0 %v2105
        %2513 = vmatprep.subr.bf16.mxu0 0
        %2514 = vmatpush1.bf16.msra.mxu0 %v2108
        %2515 = vmatprep.subr.bf16.mxu0 0
        %2516 = vmatpush1.bf16.msra.mxu0 %v2111
        %2517 = vmatprep.subr.bf16.mxu0 0
        %2518 = vmatpush1.bf16.msra.mxu0 %v2114
        %2519 = vmatprep.subr.bf16.mxu0 0
        %2520 = vmatpush1.bf16.msra.mxu0 %v2117
        %2521 = vmatprep.subr.bf16.mxu0 0
        %2522 = vmatpush1.bf16.msra.mxu0 %v2120
        %2523 = vmatprep.subr.bf16.mxu0 0
        %2524 = vmatpush1.bf16.msra.mxu0 %v2123
        %2525 = vmatprep.subr.bf16.mxu0 0
        %2526 = vmatpush1.bf16.msra.mxu0 %v2126
        %2527 = vmatprep.subr.bf16.mxu0 0
        %2528 = vmatpush1.bf16.msra.mxu0 %v2129
        %2529 = vmatprep.subr.bf16.mxu0 0
        %2530 = vmatpush1.bf16.msra.mxu0 %v2132
        %2531 = vmatprep.subr.bf16.mxu0 0
        %2532 = vmatpush1.bf16.msra.mxu0 %v2135
        %2533 = vmatprep.subr.bf16.mxu0 0
        %2534 = vmatpush1.bf16.msra.mxu0 %v2138
        %2535 = vmatprep.subr.bf16.mxu0 0
        %2536 = vmatpush1.bf16.msra.mxu0 %v2141
        %2537 = vmatprep.mubr.bf16.mxu0 %v1400
        %2538 = vmatmul.mubr.bf16.gmra.mrb[0].mxu0 %v1399
        %v2539 = vpop.f32.mrb[0].mxu0
        %v2540 = vadd.f32 %v1610, %v2539
        %v2541 = vpop.f32.mrb[0].mxu0
        %v2542 = vpop.f32.mrb[0].mxu0
        %v2543 = vpop.f32.mrb[0].mxu0
        %2544 = vdwg.mxu0
        %2545 = vmatprep.subr.bf16.mxu0 0
        %2546 = vmatpush1.bf16.msra.mxu0 %v2144
        %2547 = vmatprep.subr.bf16.mxu0 0
        %2548 = vmatpush1.bf16.msra.mxu0 %v2147
        %2549 = vmatprep.subr.bf16.mxu0 0
        %2550 = vmatpush1.bf16.msra.mxu0 %v2150
        %2551 = vmatprep.subr.bf16.mxu0 0
        %2552 = vmatpush1.bf16.msra.mxu0 %v2153
        %2553 = vmatprep.subr.bf16.mxu0 0
        %2554 = vmatpush1.bf16.msra.mxu0 %v2156
        %2555 = vmatprep.subr.bf16.mxu0 0
        %2556 = vmatpush1.bf16.msra.mxu0 %v2159
        %2557 = vmatprep.subr.bf16.mxu0 0
        %2558 = vmatpush1.bf16.msra.mxu0 %v2162
        %2559 = vmatprep.subr.bf16.mxu0 0
        %2560 = vmatpush1.bf16.msra.mxu0 %v2165
        %2561 = vmatprep.subr.bf16.mxu0 0
        %2562 = vmatpush1.bf16.msra.mxu0 %v2168
        %2563 = vmatprep.subr.bf16.mxu0 0
        %2564 = vmatpush1.bf16.msra.mxu0 %v2171
        %2565 = vmatprep.subr.bf16.mxu0 0
        %2566 = vmatpush1.bf16.msra.mxu0 %v2174
        %2567 = vmatprep.subr.bf16.mxu0 0
        %2568 = vmatpush1.bf16.msra.mxu0 %v2177
        %2569 = vmatprep.subr.bf16.mxu0 0
        %2570 = vmatpush1.bf16.msra.mxu0 %v2180
        %2571 = vmatprep.subr.bf16.mxu0 0
        %2572 = vmatpush1.bf16.msra.mxu0 %v2183
        %2573 = vmatprep.subr.bf16.mxu0 0
        %2574 = vmatpush1.bf16.msra.mxu0 %v2186
        %2575 = vmatprep.subr.bf16.mxu0 0
        %2576 = vmatpush1.bf16.msra.mxu0 %v2189
        %2577 = vmatprep.mubr.bf16.mxu0 %v1402
        %2578 = vmatmul.mubr.bf16.gmra.mrb[0].mxu0 %v1401
        %v2579 = vpop.f32.mrb[0].mxu0
        %v2580 = vadd.f32 %v2540, %v2579
        %v2581 = vpop.f32.mrb[0].mxu0
        %v2582 = vpop.f32.mrb[0].mxu0
        %v2583 = vpop.f32.mrb[0].mxu0
        %2584 = vdwg.mxu0
        %2585 = vmatprep.subr.bf16.mxu0 0
        %2586 = vmatpush1.bf16.msra.mxu0 %v2192
        %2587 = vmatprep.subr.bf16.mxu0 0
        %2588 = vmatpush1.bf16.msra.mxu0 %v2195
        %2589 = vmatprep.subr.bf16.mxu0 0
        %2590 = vmatpush1.bf16.msra.mxu0 %v2198
        %2591 = vmatprep.subr.bf16.mxu0 0
        %2592 = vmatpush1.bf16.msra.mxu0 %v2201
        %2593 = vmatprep.subr.bf16.mxu0 0
        %2594 = vmatpush1.bf16.msra.mxu0 %v2204
        %2595 = vmatprep.subr.bf16.mxu0 0
        %2596 = vmatpush1.bf16.msra.mxu0 %v2207
        %2597 = vmatprep.subr.bf16.mxu0 0
        %2598 = vmatpush1.bf16.msra.mxu0 %v2210
        %2599 = vmatprep.subr.bf16.mxu0 0
        %2600 = vmatpush1.bf16.msra.mxu0 %v2213
        %2601 = vmatprep.subr.bf16.mxu0 0
        %2602 = vmatpush1.bf16.msra.mxu0 %v2216
        %2603 = vmatprep.subr.bf16.mxu0 0
        %2604 = vmatpush1.bf16.msra.mxu0 %v2219
        %2605 = vmatprep.subr.bf16.mxu0 0
        %2606 = vmatpush1.bf16.msra.mxu0 %v2222
        %2607 = vmatprep.subr.bf16.mxu0 0
        %2608 = vmatpush1.bf16.msra.mxu0 %v2225
        %2609 = vmatprep.subr.bf16.mxu0 0
        %2610 = vmatpush1.bf16.msra.mxu0 %v2228
        %2611 = vmatprep.subr.bf16.mxu0 0
        %2612 = vmatpush1.bf16.msra.mxu0 %v2231
        %2613 = vmatprep.subr.bf16.mxu0 0
        %2614 = vmatpush1.bf16.msra.mxu0 %v2234
        %2615 = vmatprep.subr.bf16.mxu0 0
        %2616 = vmatpush1.bf16.msra.mxu0 %v2237
        %2617 = vmatprep.mubr.bf16.mxu0 %v1404
        %2618 = vmatmul.mubr.bf16.gmra.mrb[0].mxu0 %v1403
        %v2619 = vpop.f32.mrb[0].mxu0
        %v2620 = vadd.f32 %v2580, %v2619
        %v2621 = vpop.f32.mrb[0].mxu0
        %v2622 = vpop.f32.mrb[0].mxu0
        %v2623 = vpop.f32.mrb[0].mxu0
        %2624 = vdwg.mxu0
        %v2625 = vmax.f32 %v2499, 0.0
        %v2626 = vmax.f32 %v2501, 0.0
        %v2627 = vpack.c.bf16 %v2625, %v2625
        %v2628 = vpack.c.bf16 %v2626, %v2626
        %v2629 = vmax.f32 %v2620, 0.0
        %v2630 = vpack.c.bf16 %v2629, %v2629
        %v2631 = vld [vmem:[%s6] sm:$0xff]
        %v2632 = vld [vmem:[%s6 + $0x8] sm:$0x11]
        %v2633 = vld [vmem:[%s7] sm:$0xff]
        %v2634 = vld [vmem:[%s7 + $0x8] sm:$0x1]
        %2636 = vset.pattern.permute.xlu0 0
        %2637 = vperm.xlu0 %2636, %v2633
        %v2638 = vpop.permute.xlu0 %2637
        %2641 = vset.pattern.permute.xlu0 0
        %2642 = vperm.xlu0 %2641, %v2634
        %v2643 = vpop.permute.xlu0 %2642
        %v2647 = vunpack.c.l.b16 %v2631
        %v2648 = vunpack.c.h.b16 %v2631
        %v2649 = vunpack.c.l.b16 %v2632
        %v2650 = vunpack.c.h.b16 %v2632
        %v2651 = vpack.c.b16 %v2649, %v2647
        %v2652 = vpack.c.b16 %v2650, %v2648
        %2655 = vmatprep.subr.bf16.mxu0 %v2628
        %2656 = vmatpush1.bf16.xpose.msra.mxu0 %v2627
        %2657 = vmatprep.subr.bf16.mxu0 0
        %2658 = vmatpush1.bf16.xpose.msra.mxu0 0
        %2659 = vmatprep.subr.bf16.mxu0 0
        %2660 = vmatpush1.bf16.xpose.msra.mxu0 0
        %2661 = vmatprep.subr.bf16.mxu0 0
        %2662 = vmatpush1.bf16.xpose.msra.mxu0 0
        %2663 = vmatprep.subr.bf16.mxu0 0
        %2664 = vmatpush1.bf16.xpose.msra.mxu0 0
        %2665 = vmatprep.subr.bf16.mxu0 0
        %2666 = vmatpush1.bf16.xpose.msra.mxu0 0
        %2667 = vmatprep.subr.bf16.mxu0 0
        %2668 = vmatpush1.bf16.xpose.msra.mxu0 0
        %2669 = vmatprep.subr.bf16.mxu0 0
        %2670 = vmatpush1.bf16.xpose.msra.mxu0 0
        %2671 = vmatprep.subr.bf16.mxu0 0
        %2672 = vmatpush1.bf16.xpose.msra.mxu0 0
        %2673 = vmatprep.subr.bf16.mxu0 0
        %2674 = vmatpush1.bf16.xpose.msra.mxu0 0
        %2675 = vmatprep.subr.bf16.mxu0 0
        %2676 = vmatpush1.bf16.xpose.msra.mxu0 0
        %2677 = vmatprep.subr.bf16.mxu0 0
        %2678 = vmatpush1.bf16.xpose.msra.mxu0 0
        %2679 = vmatprep.subr.bf16.mxu0 0
        %2680 = vmatpush1.bf16.xpose.msra.mxu0 0
        %2681 = vmatprep.subr.bf16.mxu0 0
        %2682 = vmatpush1.bf16.xpose.msra.mxu0 0
        %2683 = vmatprep.subr.bf16.mxu0 0
        %2684 = vmatpush1.bf16.xpose.msra.mxu0 0
        %2685 = vmatprep.subr.bf16.mxu0 0
        %2686 = vmatpush1.bf16.xpose.msra.mxu0 0
        %2687 = vmatprep.mubr.bf16.mxu0 %v2652
        %2688 = vmatmul.mubr.bf16.gmra.mrb[0].mxu0 %v2651
        %v2689 = vpop.f32.mrb[0].mxu0
        %v2690 = vadd.f32 %v2638, %v2689
        %v2691 = vpop.f32.mrb[0].mxu0
        %v2692 = vpop.f32.mrb[0].mxu0
        %v2693 = vadd.f32 %v2643, %v2692
        %v2694 = vpop.f32.mrb[0].mxu0
        %2695 = vdwg.mxu0
        %v2696 = vmul.f32 %v2690, 0.5
        %v2697 = vmul.f32 %v2693, 0.5
        %v2698 = vtanh.pop %v2696
        %v2699 = vtanh.pop %v2697
        %v2700 = vmul.f32 %v2698, 0.5
        %v2701 = vmul.f32 %v2699, 0.5
        %v2702 = vadd.f32 %v2700, 0.5
        %v2703 = vadd.f32 %v2701, 0.5
        %vm2704 = vcmask 64512
        %2705 = vst.msk [vmem:[%s613] sm:$0xff] %vm2704, %v2702
        %vm2706 = vcmask 57344
        %2707 = vst.msk [vmem:[%s613 + $0x8] sm:$0x1] %vm2706, %v2703
        %v2708 = vld [vmem:[%s8] sm:$0x3f]
        %v2709 = vld [vmem:[%s524] sm:$0xff]
        %v2710 = vld [vmem:[%s524 + $0x8] sm:$0xff]
        %v2711 = vld [vmem:[%s524 + $0x10] sm:$0xff]
        %v2712 = vld [vmem:[%s524 + $0x18] sm:$0xff]
        %v2713 = vld [vmem:[%s524 + $0x20] sm:$0xff]
        %v2714 = vld [vmem:[%s524 + $0x28] sm:$0xff]
        %v2715 = vpack.c.bf16 %v2709, %v2709
        %v2716 = vpack.c.bf16 %v2710, %v2710
        %v2717 = vpack.c.bf16 %v2711, %v2711
        %v2718 = vpack.c.bf16 %v2712, %v2712
        %v2719 = vpack.c.bf16 %v2713, %v2713
        %v2720 = vpack.c.bf16 %v2714, %v2714
        %s2721 = sld [smem:[#allocation8]]
        %v2722 = vstv %s2721
        %v2724 = vcombine.high %v2708, %v2708
        %v2726 = vunpack.c.l.s4 1966171168
        %v2727 = vunpack.c.0.s8 %v2726
        %v2728 = vlaneseq
        %v2729 = vshrl.u32 %v2728, 7
        %v2730 = vsub.s32 %v2727, %v2729
        %v2731 = vrot.slane %v2708, %v2730
        %v2733 = vunpack.c.l.s4 1966171168
        %v2734 = vunpack.c.0.s8 %v2733
        %v2735 = vlaneseq
        %v2736 = vshrl.u32 %v2735, 7
        %v2737 = vsub.s32 %v2734, %v2736
        %v2738 = vrot.slane %v2724, %v2737
        %v2739 = vcombine.high %v2731, %v2731
        %v2740 = vcombine.high %v2738, %v2738
        %v2742 = vunpack.c.l.s4 1966171168
        %v2743 = vunpack.c.0.s8 %v2742
        %v2744 = vlaneseq
        %v2745 = vshrl.u32 %v2744, 7
        %v2746 = vsub.s32 %v2743, %v2745
        %v2747 = vrot.slane %v2731, %v2746
        %v2749 = vunpack.c.l.s4 1966171168
        %v2750 = vunpack.c.0.s8 %v2749
        %v2751 = vlaneseq
        %v2752 = vshrl.u32 %v2751, 7
        %v2753 = vsub.s32 %v2750, %v2752
        %v2754 = vrot.slane %v2738, %v2753
        %v2756 = vunpack.c.l.s4 1966171168
        %v2757 = vunpack.c.0.s8 %v2756
        %v2758 = vlaneseq
        %v2759 = vshrl.u32 %v2758, 7
        %v2760 = vsub.s32 %v2757, %v2759
        %v2761 = vrot.slane %v2739, %v2760
        %v2763 = vunpack.c.l.s4 1966171168
        %v2764 = vunpack.c.0.s8 %v2763
        %v2765 = vlaneseq
        %v2766 = vshrl.u32 %v2765, 7
        %v2767 = vsub.s32 %v2764, %v2766
        %v2768 = vrot.slane %v2740, %v2767
        %v2769 = vcombine.high %v2747, %v2747
        %v2770 = vcombine.high %v2761, %v2761
        %2777 = vmatprep.subr.bf16.mxu0 %v2716
        %2778 = vmatpush1.bf16.xpose.msra.mxu0 %v2715
        %2779 = vmatprep.subr.bf16.mxu0 0
        %2780 = vmatpush1.bf16.xpose.msra.mxu0 0
        %2781 = vmatprep.subr.bf16.mxu0 0
        %2782 = vmatpush1.bf16.xpose.msra.mxu0 0
        %2783 = vmatprep.subr.bf16.mxu0 0
        %2784 = vmatpush1.bf16.xpose.msra.mxu0 0
        %2785 = vmatprep.subr.bf16.mxu0 0
        %2786 = vmatpush1.bf16.xpose.msra.mxu0 0
        %2787 = vmatprep.subr.bf16.mxu0 0
        %2788 = vmatpush1.bf16.xpose.msra.mxu0 0
        %2789 = vmatprep.subr.bf16.mxu0 0
        %2790 = vmatpush1.bf16.xpose.msra.mxu0 0
        %2791 = vmatprep.subr.bf16.mxu0 0
        %2792 = vmatpush1.bf16.xpose.msra.mxu0 0
        %2793 = vmatprep.subr.bf16.mxu0 0
        %2794 = vmatpush1.bf16.xpose.msra.mxu0 0
        %2795 = vmatprep.subr.bf16.mxu0 0
        %2796 = vmatpush1.bf16.xpose.msra.mxu0 0
        %2797 = vmatprep.subr.bf16.mxu0 0
        %2798 = vmatpush1.bf16.xpose.msra.mxu0 0
        %2799 = vmatprep.subr.bf16.mxu0 0
        %2800 = vmatpush1.bf16.xpose.msra.mxu0 0
        %2801 = vmatprep.subr.bf16.mxu0 0
        %2802 = vmatpush1.bf16.xpose.msra.mxu0 0
        %2803 = vmatprep.subr.bf16.mxu0 0
        %2804 = vmatpush1.bf16.xpose.msra.mxu0 0
        %2805 = vmatprep.subr.bf16.mxu0 0
        %2806 = vmatpush1.bf16.xpose.msra.mxu0 0
        %2807 = vmatprep.subr.bf16.mxu0 0
        %2808 = vmatpush1.bf16.xpose.msra.mxu0 0
        %2809 = vmatprep.mubr.bf16.mxu0 %v2761
        %2810 = vmatmul.mubr.bf16.gmra.mrb[0].mxu0 %v2747
        %v2811 = vpop.f32.mrb[0].mxu0
        %v2812 = vadd.f32 %v2722, %v2811
        %v2813 = vpop.f32.mrb[0].mxu0
        %v2814 = vpop.f32.mrb[0].mxu0
        %v2815 = vpop.f32.mrb[0].mxu0
        %2816 = vdwg.mxu0
        %2817 = vmatprep.subr.bf16.mxu0 %v2718
        %2818 = vmatpush1.bf16.xpose.msra.mxu0 %v2717
        %2819 = vmatprep.subr.bf16.mxu0 0
        %2820 = vmatpush1.bf16.xpose.msra.mxu0 0
        %2821 = vmatprep.subr.bf16.mxu0 0
        %2822 = vmatpush1.bf16.xpose.msra.mxu0 0
        %2823 = vmatprep.subr.bf16.mxu0 0
        %2824 = vmatpush1.bf16.xpose.msra.mxu0 0
        %2825 = vmatprep.subr.bf16.mxu0 0
        %2826 = vmatpush1.bf16.xpose.msra.mxu0 0
        %2827 = vmatprep.subr.bf16.mxu0 0
        %2828 = vmatpush1.bf16.xpose.msra.mxu0 0
        %2829 = vmatprep.subr.bf16.mxu0 0
        %2830 = vmatpush1.bf16.xpose.msra.mxu0 0
        %2831 = vmatprep.subr.bf16.mxu0 0
        %2832 = vmatpush1.bf16.xpose.msra.mxu0 0
        %2833 = vmatprep.subr.bf16.mxu0 0
        %2834 = vmatpush1.bf16.xpose.msra.mxu0 0
        %2835 = vmatprep.subr.bf16.mxu0 0
        %2836 = vmatpush1.bf16.xpose.msra.mxu0 0
        %2837 = vmatprep.subr.bf16.mxu0 0
        %2838 = vmatpush1.bf16.xpose.msra.mxu0 0
        %2839 = vmatprep.subr.bf16.mxu0 0
        %2840 = vmatpush1.bf16.xpose.msra.mxu0 0
        %2841 = vmatprep.subr.bf16.mxu0 0
        %2842 = vmatpush1.bf16.xpose.msra.mxu0 0
        %2843 = vmatprep.subr.bf16.mxu0 0
        %2844 = vmatpush1.bf16.xpose.msra.mxu0 0
        %2845 = vmatprep.subr.bf16.mxu0 0
        %2846 = vmatpush1.bf16.xpose.msra.mxu0 0
        %2847 = vmatprep.subr.bf16.mxu0 0
        %2848 = vmatpush1.bf16.xpose.msra.mxu0 0
        %2849 = vmatprep.mubr.bf16.mxu0 %v2770
        %2850 = vmatmul.mubr.bf16.gmra.mrb[0].mxu0 %v2769
        %v2851 = vpop.f32.mrb[0].mxu0
        %v2852 = vadd.f32 %v2812, %v2851
        %v2853 = vpop.f32.mrb[0].mxu0
        %v2854 = vpop.f32.mrb[0].mxu0
        %v2855 = vpop.f32.mrb[0].mxu0
        %2856 = vdwg.mxu0
        %2857 = vmatprep.subr.bf16.mxu0 %v2720
        %2858 = vmatpush1.bf16.xpose.msra.mxu0 %v2719
        %2859 = vmatprep.subr.bf16.mxu0 0
        %2860 = vmatpush1.bf16.xpose.msra.mxu0 0
        %2861 = vmatprep.subr.bf16.mxu0 0
        %2862 = vmatpush1.bf16.xpose.msra.mxu0 0
        %2863 = vmatprep.subr.bf16.mxu0 0
        %2864 = vmatpush1.bf16.xpose.msra.mxu0 0
        %2865 = vmatprep.subr.bf16.mxu0 0
        %2866 = vmatpush1.bf16.xpose.msra.mxu0 0
        %2867 = vmatprep.subr.bf16.mxu0 0
        %2868 = vmatpush1.bf16.xpose.msra.mxu0 0
        %2869 = vmatprep.subr.bf16.mxu0 0
        %2870 = vmatpush1.bf16.xpose.msra.mxu0 0
        %2871 = vmatprep.subr.bf16.mxu0 0
        %2872 = vmatpush1.bf16.xpose.msra.mxu0 0
        %2873 = vmatprep.subr.bf16.mxu0 0
        %2874 = vmatpush1.bf16.xpose.msra.mxu0 0
        %2875 = vmatprep.subr.bf16.mxu0 0
        %2876 = vmatpush1.bf16.xpose.msra.mxu0 0
        %2877 = vmatprep.subr.bf16.mxu0 0
        %2878 = vmatpush1.bf16.xpose.msra.mxu0 0
        %2879 = vmatprep.subr.bf16.mxu0 0
        %2880 = vmatpush1.bf16.xpose.msra.mxu0 0
        %2881 = vmatprep.subr.bf16.mxu0 0
        %2882 = vmatpush1.bf16.xpose.msra.mxu0 0
        %2883 = vmatprep.subr.bf16.mxu0 0
        %2884 = vmatpush1.bf16.xpose.msra.mxu0 0
        %2885 = vmatprep.subr.bf16.mxu0 0
        %2886 = vmatpush1.bf16.xpose.msra.mxu0 0
        %2887 = vmatprep.subr.bf16.mxu0 0
        %2888 = vmatpush1.bf16.xpose.msra.mxu0 0
        %2889 = vmatprep.mubr.bf16.mxu0 %v2768
        %2890 = vmatmul.mubr.bf16.gmra.mrb[0].mxu0 %v2754
        %v2891 = vpop.f32.mrb[0].mxu0
        %v2892 = vadd.f32 %v2852, %v2891
        %v2893 = vpop.f32.mrb[0].mxu0
        %v2894 = vpop.f32.mrb[0].mxu0
        %v2895 = vpop.f32.mrb[0].mxu0
        %2896 = vdwg.mxu0
        %v2897 = vmul.f32 %v2892, 0.5
        %v2898 = vtanh.pop %v2897
        %v2899 = vmul.f32 %v2898, 0.5
        %v2900 = vadd.f32 %v2899, 0.5
        %2901 = vst.msk [vmem:[%s587] sm:$0x1] %vm2706, %v2900
        %v2902 = vld [vmem:[%s9] sm:$0xf]
        %v2903 = vld [vmem:[%s9 + $0x4] sm:$0xf]
        %v2904 = vld [vmem:[%s9 + $0x8] sm:$0xf]
        %v2905 = vld [vmem:[%s9 + $0xc] sm:$0xf]
        %v2906 = vld [vmem:[%s9 + $0x10] sm:$0xf]
        %v2907 = vld [vmem:[%s9 + $0x14] sm:$0xf]
        %v2908 = vld [vmem:[%s9 + $0x18] sm:$0xf]
        %v2909 = vld [vmem:[%s9 + $0x1c] sm:$0xf]
        %v2910 = vld [vmem:[%s9 + $0x20] sm:$0xf]
        %v2911 = vld [vmem:[%s9 + $0x24] sm:$0xf]
        %v2912 = vld [vmem:[%s9 + $0x28] sm:$0xf]
        %v2913 = vld [vmem:[%s9 + $0x2c] sm:$0xf]
        %v2914 = vld [vmem:[%s9 + $0x30] sm:$0xf]
        %v2915 = vld [vmem:[%s9 + $0x34] sm:$0xf]
        %v2916 = vld [vmem:[%s9 + $0x38] sm:$0xf]
        %v2917 = vld [vmem:[%s9 + $0x3c] sm:$0xf]
        %v2934 = vunpack.c.l.b16 %v2902
        %v2935 = vunpack.c.l.b16 %v2903
        %v2936 = vunpack.c.l.b16 %v2904
        %v2937 = vunpack.c.l.b16 %v2905
        %v2938 = vunpack.c.l.b16 %v2906
        %v2939 = vunpack.c.l.b16 %v2907
        %v2940 = vunpack.c.l.b16 %v2908
        %v2941 = vunpack.c.l.b16 %v2909
        %v2942 = vunpack.c.l.b16 %v2910
        %v2943 = vunpack.c.l.b16 %v2911
        %v2944 = vunpack.c.l.b16 %v2912
        %v2945 = vunpack.c.l.b16 %v2913
        %v2946 = vunpack.c.l.b16 %v2914
        %v2947 = vunpack.c.l.b16 %v2915
        %v2948 = vunpack.c.l.b16 %v2916
        %v2949 = vunpack.c.l.b16 %v2917
        %v2950 = vpack.c.b16 %v2935, %v2934
        %v2951 = vpack.c.b16 %v2937, %v2936
        %v2952 = vpack.c.b16 %v2939, %v2938
        %v2953 = vpack.c.b16 %v2941, %v2940
        %v2954 = vpack.c.b16 %v2943, %v2942
        %v2955 = vpack.c.b16 %v2945, %v2944
        %v2956 = vpack.c.b16 %v2947, %v2946
        %v2957 = vpack.c.b16 %v2949, %v2948
        %2966 = vmatprep.subr.bf16.mxu0 0
        %2967 = vmatpush1.bf16.msra.mxu0 %v2950
        %2968 = vmatprep.subr.bf16.mxu0 0
        %2969 = vmatpush1.bf16.msra.mxu0 %v2951
        %2970 = vmatprep.subr.bf16.mxu0 0
        %2971 = vmatpush1.bf16.msra.mxu0 %v2952
        %2972 = vmatprep.subr.bf16.mxu0 0
        %2973 = vmatpush1.bf16.msra.mxu0 %v2953
        %2974 = vmatprep.subr.bf16.mxu0 0
        %2975 = vmatpush1.bf16.msra.mxu0 %v2954
        %2976 = vmatprep.subr.bf16.mxu0 0
        %2977 = vmatpush1.bf16.msra.mxu0 %v2955
        %2978 = vmatprep.subr.bf16.mxu0 0
        %2979 = vmatpush1.bf16.msra.mxu0 %v2956
        %2980 = vmatprep.subr.bf16.mxu0 0
        %2981 = vmatpush1.bf16.msra.mxu0 %v2957
        %2982 = vmatprep.subr.bf16.mxu0 0
        %2983 = vmatpush1.bf16.msra.mxu0 0
        %2984 = vmatprep.subr.bf16.mxu0 0
        %2985 = vmatpush1.bf16.msra.mxu0 0
        %2986 = vmatprep.subr.bf16.mxu0 0
        %2987 = vmatpush1.bf16.msra.mxu0 0
        %2988 = vmatprep.subr.bf16.mxu0 0
        %2989 = vmatpush1.bf16.msra.mxu0 0
        %2990 = vmatprep.subr.bf16.mxu0 0
        %2991 = vmatpush1.bf16.msra.mxu0 0
        %2992 = vmatprep.subr.bf16.mxu0 0
        %2993 = vmatpush1.bf16.msra.mxu0 0
        %2994 = vmatprep.subr.bf16.mxu0 0
        %2995 = vmatpush1.bf16.msra.mxu0 0
        %2996 = vmatprep.subr.bf16.mxu0 0
        %2997 = vmatpush1.bf16.msra.mxu0 0
        %2998 = vmatprep.mubr.bf16.mxu0 0
        %2999 = vmatmul.mubr.bf16.gmra.mrb[0].mxu0 %v2630
        %v3000 = vpop.f32.mrb[0].mxu0
        %v3001 = vadd.f32 0.0, %v3000
        %v3002 = vpop.f32.mrb[0].mxu0
        %v3003 = vpop.f32.mrb[0].mxu0
        %v3004 = vpop.f32.mrb[0].mxu0
        %3005 = vdwg.mxu0
        %3007 = vset.pattern.permute.xlu0 0
        %3008 = vperm.xlu0 %3007, %v3001
        %v3009 = vpop.permute.xlu0 %3008
        %v3011 = vlaneseq
        %v3012 = vshrl.u32 %v3011, 7
        %v3013 = vsub.s32 0, %v3012
        %v3014 = vrot.slane %v1383, %v3013
        %v3015 = vadd.f32 %v3009, %v3014
        %s3016 = sld [smem:[#allocation8 + $0x1]]
        %v3017 = vstv %s3016
        %v3018 = vadd.f32 %v3015, %v3017
        %v3019 = vmul.f32 %v3018, 0.5
        %v3020 = vtanh.pop %v3019
        %v3021 = vmul.f32 %v3020, 0.5
        %v3022 = vadd.f32 %v3021, 0.5
        %3023 = vst.msk [vmem:[%s600] sm:$0xff] %vm2704, %v3022
        %p3024 = scmp.lt.s32.totalorder %s42, 1
        %s3025 = scalar_select %p3024, %s42, 1
        %p3026 = scmp.lt.s32.totalorder %s43, 0
        %s3027 = scalar_select %p3026, %s43, 0
        %s3028 = smul.addr %s3025, 2
        %s3029 = sadd.s32 %s3027, %s3028
        %s3030 = smul.addr %s3029, 8
        %s3031 = scalar_lea.vmem %s12, %s3030
        %s3032 = sand.u32 %s352, 1
        %s3033 = scalar_lea.sflag [#allocation4], %s3032
        %s3034 = sand.u32 %s352, 1
        %s3035 = scalar_lea.vmem [#allocation9], %s3034
        %s3036 = sand.u32 %s38, 1
        %s3037 = scalar_lea.sflag [#allocation11], %s3036
        %s3038 = sand.u32 %s378, 1
        %s3039 = scalar_lea.vmem [#allocation10], %s3038
        %s3040 = sand.u32 %s38, 1
        %s3041 = scalar_lea.sflag [#allocation11], %s3040
        %s3042 = sand.u32 %s406, 1
        %s3043 = smul.addr %s3042, 8
        %s3044 = scalar_lea.vmem [#allocation12], %s3043
        // Predicated region
        $region81: #{tpu_custom_call.1} parent=67 // pred_check
          %p3045 = pneg %p334
        $region82: #{tpu_custom_call.1} parent=67 // pred_check_branch
          %3047 = sbr.rel (%p3045) target = $region84
        $region83: #{tpu_custom_call.1} parent=67 // pred_region
          _
        $region84: #{tpu_custom_call.1} parent=67 // pred_fallthru
          _
        // Predicated region
        $region85: #{tpu_custom_call.1} parent=67 // pred_check
          %p3048 = pneg %p362
        $region86: #{tpu_custom_call.1} parent=67 // pred_check_branch
          %3050 = sbr.rel (%p3048) target = $region88
        $region87: #{tpu_custom_call.1} parent=67 // pred_region
          %s3052 = ssub.s32 16, 16
          %3053 = vsyncadd %s3033, %s3052
          %s3054 = sadd.s32 %s43, %s42
          %s3055 = smul.addr %s3054, 16
          %s3056 = scalar_lea.hbm %s13, %s3055
          %s3058 = sshll.u32 %s3035, 4
          %s3059 = int_to_ptr.vmem [resolvable:$true] %s3058
          %3061 = dma.vmem_to_hbm [thread:$0]  %s3059, 16, %s3056, %s3033
        $region88: #{tpu_custom_call.1} parent=67 // pred_fallthru
          _
        // Predicated region
        $region89: #{tpu_custom_call.1} parent=67 // pred_check
          %p3062 = pneg %p388
        $region90: #{tpu_custom_call.1} parent=67 // pred_check_branch
          %3064 = sbr.rel (%p3062) target = $region92
        $region91: #{tpu_custom_call.1} parent=67 // pred_region
          %s3066 = ssub.s32 16, 16
          %3067 = vsyncadd %s3037, %s3066
          %s3068 = smul.addr %s42, 16
          %s3069 = scalar_lea.hbm %s14, %s3068
          %s3071 = sshll.u32 %s3039, 4
          %s3072 = int_to_ptr.vmem [resolvable:$true] %s3071
          %3074 = dma.vmem_to_hbm [thread:$0]  %s3072, 16, %s3069, %s3037
        $region92: #{tpu_custom_call.1} parent=67 // pred_fallthru
          _
        // Predicated region
        $region93: #{tpu_custom_call.1} parent=67 // pred_check
          %p3075 = pneg %p416
        $region94: #{tpu_custom_call.1} parent=67 // pred_check_branch
          %3077 = sbr.rel (%p3075) target = $region96
        $region95: #{tpu_custom_call.1} parent=67 // pred_region
          %s3079 = ssub.s32 128, 128
          %3080 = vsyncadd %s3041, %s3079
          %s3081 = sadd.s32 %s43, %s42
          %s3082 = smul.addr %s3081, 128
          %s3083 = scalar_lea.hbm %s15, %s3082
          %s3085 = sshll.u32 %s3044, 4
          %s3086 = int_to_ptr.vmem [resolvable:$true] %s3085
          %3088 = dma.vmem_to_hbm [thread:$0]  %s3086, 128, %s3083, %s3041
        $region96: #{tpu_custom_call.1} parent=67 // pred_fallthru
          _
      $region68: #{tpu_custom_call.1} parent=5 // pred_fallthru
        _
      %p3089 = scmp.le.s32.totalorder 2, %s33
      // Predicated region
      $region97: #{tpu_custom_call.1} parent=5 // pred_check
        %p3090 = pneg %p3089
      $region98: #{tpu_custom_call.1} parent=5 // pred_check_branch
        %3092 = sbr.rel (%p3090) target = $region100
      $region99: #{tpu_custom_call.1} parent=5 // pred_region
        %s3093 = ssub.s32 %s33, 2
        // Predicated region
        $region101: #{tpu_custom_call.1} parent=99 // pred_check
          %p3094 = pneg %p340
        $region102: #{tpu_custom_call.1} parent=99 // pred_check_branch
          %3096 = sbr.rel (%p3094) target = $region104
        $region103: #{tpu_custom_call.1} parent=99 // pred_region
          %p3097 = scmp.lt.s32.totalorder %s44, 1
          %s3098 = scalar_select %p3097, %s44, 1
          %p3099 = scmp.lt.s32.totalorder %s45, 0
          %s3100 = scalar_select %p3099, %s45, 0
          %s3101 = smul.addr %s3098, 2
          %s3102 = sadd.s32 %s3100, %s3101
          %s3103 = smul.addr %s3102, 8
          %s3104 = scalar_lea.vmem %s12, %s3103
        $region104: #{tpu_custom_call.1} parent=99 // pred_fallthru
          _
        // Predicated region
        $region105: #{tpu_custom_call.1} parent=99 // pred_check
          %p3105 = pneg %p368
        $region106: #{tpu_custom_call.1} parent=99 // pred_check_branch
          %3107 = sbr.rel (%p3105) target = $region108
        $region107: #{tpu_custom_call.1} parent=99 // pred_region
          %s3108 = sand.u32 %s353, 1
          %s3109 = scalar_lea.sflag [#allocation4], %s3108
          %s3110 = sand.u32 %s353, 1
          %s3111 = scalar_lea.vmem [#allocation9], %s3110
          %3112 = dma.done %s3109, 16
        $region108: #{tpu_custom_call.1} parent=99 // pred_fallthru
          _
        // Predicated region
        $region109: #{tpu_custom_call.1} parent=99 // pred_check
          %p3113 = pneg %p394
        $region110: #{tpu_custom_call.1} parent=99 // pred_check_branch
          %3115 = sbr.rel (%p3113) target = $region112
        $region111: #{tpu_custom_call.1} parent=99 // pred_region
          %s3116 = sand.u32 %s39, 1
          %s3117 = scalar_lea.sflag [#allocation11], %s3116
          %s3118 = sand.u32 %s379, 1
          %s3119 = scalar_lea.vmem [#allocation10], %s3118
          %3120 = dma.done %s3117, 16
        $region112: #{tpu_custom_call.1} parent=99 // pred_fallthru
          _
        // Predicated region
        $region113: #{tpu_custom_call.1} parent=99 // pred_check
          %p3121 = pneg %p422
        $region114: #{tpu_custom_call.1} parent=99 // pred_check_branch
          %3123 = sbr.rel (%p3121) target = $region116
        $region115: #{tpu_custom_call.1} parent=99 // pred_region
          %s3124 = sand.u32 %s39, 1
          %s3125 = scalar_lea.sflag [#allocation11], %s3124
          %s3126 = sand.u32 %s407, 1
          %s3127 = smul.addr %s3126, 8
          %s3128 = scalar_lea.vmem [#allocation12], %s3127
          %3129 = dma.done %s3125, 128
        $region116: #{tpu_custom_call.1} parent=99 // pred_fallthru
          _
      $region100: #{tpu_custom_call.1} parent=5 // pred_fallthru
        _
    $region6: #{tpu_custom_call.1} parent=1 // loop_footer
      %s37 = sadd.s32 1, %s33
    $region7: #{tpu_custom_call.1} parent=1 // loop_footer_branch
      %32 = sbr.rel target = $region3
    $region8: #{tpu_custom_call.1} parent=1 // loop_exit
      _
    %3130 = vsyncpa [#allocation3], 1
    %s3131 = scalar_lea.sflag [#allocation3], 1
    %3132 = vsyncpa %s3131, 1
    %3133 = vsyncpa [#allocation7], 1
    %3134 = vsyncpa [#allocation4], 1
    %s3135 = scalar_lea.sflag [#allocation4], 1
    %3136 = vsyncpa %s3135, 1
    %3137 = vsyncpa [#allocation11], 1
    %s3138 = scalar_lea.sflag [#allocation11], 1
    %3139 = vsyncpa %s3138, 1
    %3140 = vsyncpa [#allocation5], 1
    %s3141 = scalar_lea.sflag [#allocation5], 1
    %3142 = vsyncpa %s3141, 1

</llo_original>
